<compile_context>
chip_gen: v7x
topology: tpu7x:2x2x1
jax: 0.10.0
libtpu: 0.0.40
codegen_flags: <defaults>
</compile_context>

<pallas_src>
import math

import numpy as np
import jax
import jax.numpy as jnp
from jax import lax
from jax.experimental import pallas as pl
from jax.experimental.pallas import tpu as pltpu


# ----------------------- host-side sampling (mirrors _sample_latent) -----------------------

def _sample_latent_np(n, width, height, scale, ratio, rng):
    """numpy port of RandomResizedCropLayer._sample_latent (host-side, like the original)."""
    area = width * height
    target_area = rng.uniform(scale[0], scale[1], n * 10) * area
    log_ratio = (math.log(ratio[0]), math.log(ratio[1]))
    aspect_ratio = np.exp(rng.uniform(log_ratio[0], log_ratio[1], n * 10))
    w = np.round(np.sqrt(target_area * aspect_ratio))
    h = np.round(np.sqrt(target_area / aspect_ratio))
    cond = (0 < w) * (w <= width) * (0 < h) * (h <= height)
    w = w[cond]
    h = h[cond]
    cond_len = w.shape[0]
    if cond_len >= n:
        w = w[:n]
        h = h[:n]
    else:
        w = np.concatenate([w, np.ones(n - cond_len) * width])
        h = np.concatenate([h, np.ones(n - cond_len) * height])
    w_bias = rng.randint((w - width).astype(np.int64),
                         (width - w + 1).astype(np.int64)) / width
    h_bias = rng.randint((h - height).astype(np.int64),
                         (height - h + 1).astype(np.int64)) / height
    w = w / width
    h = h / height
    return np.column_stack([w, h, w_bias, h_bias])          # (N, 4) float64


# ------------------ interpolation coordinates (shared math, numpy reference) ----------------

def _coords(size, a, b):
    """Per-output-index source indices/weights along one axis for
    affine_grid(align_corners=False) + grid_sample(bilinear, reflection, align_corners=False)
    with axis-aligned theta entries (scale a, translation b).  numpy / float64 version."""
    k = np.arange(size, dtype=np.float64)
    norm = a * ((2.0 * k + 1.0) / size - 1.0) + b            # affine_grid base coords * theta
    coord = ((norm + 1.0) * size - 1.0) / 2.0                # unnormalize (align_corners=False)
    span = float(size)                                       # reflect about [-0.5, size - 0.5]
    c = np.abs(coord + 0.5)
    extra = np.mod(c, span)
    flips = np.floor(c / span)
    coord = np.where(np.mod(flips, 2.0) == 0.0, extra - 0.5, span - extra - 0.5)
    coord = np.clip(coord, 0.0, size - 1.0)
    i0 = np.floor(coord)
    frac = coord - i0
    i0 = np.clip(i0.astype(np.int64), 0, size - 1)
    i1 = np.minimum(i0 + 1, size - 1)                        # weight is exactly 0 when clamped
    return i0, i1, 1.0 - frac, frac
# TODO(synk): validate reflection for coords that wrap more than one period (large |bias|).


# -------------- on-device (jnp) construction of the separable interpolation matrices --------

def _interp_matrices_jnp(size, a, b):
    """Batched one-axis bilinear resampling matrices R (B, size, size) built on device.
    R[n, k, i] = weight of input index i for output index k (same math as _coords)."""
    a = a.astype(jnp.float32)[:, None]
    b = b.astype(jnp.float32)[:, None]
    k = jnp.arange(size, dtype=jnp.float32)[None, :]
    norm = a * ((2.0 * k + 1.0) / size - 1.0) + b
    coord = ((norm + 1.0) * size - 1.0) / 2.0
    span = float(size)
    cpos = jnp.abs(coord + 0.5)
    extra = jnp.mod(cpos, span)
    flips = jnp.floor(cpos / span)
    coord = jnp.where(jnp.mod(flips, 2.0) == 0.0, extra - 0.5, span - extra - 0.5)
    coord = jnp.clip(coord, 0.0, size - 1.0)
    i0f = jnp.floor(coord)
    frac = coord - i0f
    i0 = jnp.clip(i0f.astype(jnp.int32), 0, size - 1)
    i1 = jnp.minimum(i0 + 1, size - 1)                       # tap weight is 0 when clamped
    cols = jnp.arange(size, dtype=jnp.int32)[None, None, :]
    r = ((1.0 - frac)[:, :, None] * (cols == i0[:, :, None]).astype(jnp.float32)
         + frac[:, :, None] * (cols == i1[:, :, None]).astype(jnp.float32))
    return r                                                 # (B, size, size) float32


# --------------------------------------- kernel --------------------------------------------

def _resample_kernel(x_ref, ry_ref, rxt_ref, o_ref):
    """x_ref: (Bt, C, H, W); ry_ref: (Bt, H, H); rxt_ref: (Bt, W, W); o_ref: (Bt, C, H, W).

    out[b, c] = Ry_b @ x[b, c] @ Rx_b^T as two batched MXU matmuls.  The (Bt, C) leading
    dims are merged into one einsum batch dim with leading-dim-only reshapes/broadcasts
    (no tiled-dim relayouts inside the kernel)."""
    bt, c, h, w = x_ref.shape
    x = x_ref[...].reshape(bt * c, h, w)                                   # leading-dim merge
    ry = jnp.broadcast_to(ry_ref[...][:, None], (bt, c, h, h)).reshape(bt * c, h, h)
    rxt = jnp.broadcast_to(rxt_ref[...][:, None], (bt, c, w, w)).reshape(bt * c, w, w)
    # height pass: t[n] = Ry @ x[n]   (f32 operands; HIGHEST is negligible at K=16)
    t = jnp.einsum('nij,njk->nik', ry, x,
                   preferred_element_type=jnp.float32, precision=lax.Precision.HIGHEST)
    # width pass:  o[n] = t[n] @ Rx^T
    o = jnp.einsum('nij,njk->nik', t, rxt,
                   preferred_element_type=jnp.float32, precision=lax.Precision.HIGHEST)
    o_ref[...] = o.reshape(bt, c, h, w).astype(o_ref.dtype)                # leading-dim split


def _pick_block_batch(b):
    """Largest divisor of b that is <= 8 samples/step and (when b >= 2) leaves >= 2 grid
    steps, so grid-step overhead is amortised while both v7x TensorCores stay busy."""
    best = 1
    for cand in range(1, min(b, 8) + 1):
        if b % cand != 0:
            continue
        if b > 1 and b // cand < 2:
            continue
        best = cand
    return best


def random_resized_crop_forward(x, whbias=None, *, size=None,
                                scale=(0.08, 1.0), ratio=(3.0 / 4.0, 4.0 / 3.0),
                                host_seed=0):
    b, c, h, w = x.shape
    if whbias is None:
        rng = np.random.RandomState(host_seed)                # host RNG, like the original
        whbias = _sample_latent_np(b, w, h, scale, ratio, rng)
    whbias = np.asarray(whbias, dtype=np.float64)

    # Only whbias (B,4) crosses PCIe; the tiny separable interpolation matrices are built on
    # device with plain jnp (outside the kernel).
    wh_dev = jnp.asarray(whbias, dtype=jnp.float32)
    ry = _interp_matrices_jnp(h, wh_dev[:, 1], wh_dev[:, 3])  # (B, H, H): [out y, in y]
    rx = _interp_matrices_jnp(w, wh_dev[:, 0], wh_dev[:, 2])  # (B, W, W): [out x, in x]
    rxt = jnp.swapaxes(rx, 1, 2)                              # (B, W, W): [in x, out x]

    bt = _pick_block_batch(b)

    out = pl.pallas_call(
        _resample_kernel,
        out_shape=jax.ShapeDtypeStruct((b, c, h, w), x.dtype),
        grid_spec=pltpu.PrefetchScalarGridSpec(
            num_scalar_prefetch=0,
            grid=(b // bt,),
            in_specs=[pl.BlockSpec((bt, c, h, w), lambda i: (i, 0, 0, 0)),
                      pl.BlockSpec((bt, h, h), lambda i: (i, 0, 0)),
                      pl.BlockSpec((bt, w, w), lambda i: (i, 0, 0))],
            out_specs=pl.BlockSpec((bt, c, h, w), lambda i: (i, 0, 0, 0)),
        ),
        # Tiny per-step tiles -> no vmem_limit_bytes tuning needed (fits v7x's 64 MiB easily).
        compiler_params=pltpu.CompilerParams(dimension_semantics=("parallel",)),
    )(x, ry, rxt)

    if size is not None:
        # TODO(synk): adaptive_avg_pool2d(output, size[:2]) not implemented in-kernel.
        raise NotImplementedError("size / adaptive_avg_pool2d path not implemented")
    return out, whbias


# ------------------------------------ pure reference ---------------------------------------

def reference(x_np, whbias):
    """Pure-numpy f64 reference: affine_grid + grid_sample(bilinear, reflection,
    align_corners=False) as an explicit 4-tap gather (independent of the separable-matmul
    composition used by the kernel path)."""
    bsz, c, h, w = x_np.shape
    out = np.zeros((bsz, c, h, w), dtype=np.float64)
    for i in range(bsz):
        w_, h_, wb_, hb_ = whbias[i]
        x0, x1, wx0, wx1 = _coords(w, w_, wb_)   # along width  (grid x)
        y0, y1, wy0, wy1 = _coords(h, h_, hb_)   # along height (grid y)
        xb = x_np[i].astype(np.float64)          # (C, H, W)
        g00 = xb[:, y0[:, None], x0[None, :]]
        g01 = xb[:, y0[:, None], x1[None, :]]
        g10 = xb[:, y1[:, None], x0[None, :]]
        g11 = xb[:, y1[:, None], x1[None, :]]
        out[i] = (wy0[:, None] * wx0[None, :] * g00 + wy0[:, None] * wx1[None, :] * g01
                  + wy1[:, None] * wx0[None, :] * g10 + wy1[:, None] * wx1[None, :] * g11)
    return out


if __name__ == "__main__":
    key = jax.random.PRNGKey(0)
    B, C, H, W = 2, 4, 16, 16
    x = jax.random.normal(key, (B, C, H, W), dtype=jnp.float32)

    out, whbias = random_resized_crop_forward(x, host_seed=0)
    out = jax.block_until_ready(out)

    ref = reference(np.asarray(x, dtype=np.float64), whbias)
    assert out.shape == (B, C, H, W)
    # f32 operands at HIGHEST precision on tiny matrices -> near-exact vs the f64 reference
    # (remaining diff is the on-device f32 coordinate/weight math, ~1e-6).
    np.testing.assert_allclose(np.asarray(out, dtype=np.float64), ref, rtol=1e-3, atol=1e-4)
    print("KERNEL_OK")
</pallas_src>

<mosaic_0001>
module attributes {stable_mosaic.version = 11 : i64} {
  func.func @_resample_kernel(%arg0: i32, %arg1: memref<1x4x16x16xf32, #tpu.memory_space<vmem>>, %arg2: memref<1x16x16xf32, #tpu.memory_space<vmem>>, %arg3: memref<1x16x16xf32, #tpu.memory_space<vmem>>, %arg4: memref<1x4x16x16xf32, #tpu.memory_space<vmem>>) attributes {dimension_semantics = [#tpu.dimension_semantics<parallel>], iteration_bounds = array<i64: 2>, scalar_prefetch = 0 : i64, scratch_operands = 0 : i64, tpu.core_type = #tpu.core_type<tc>, window_params = [{transform_indices = @transform_0, window_bounds = array<i64: 1, 4, 16, 16>}, {transform_indices = @transform_1, window_bounds = array<i64: 1, 16, 16>}, {transform_indices = @transform_2, window_bounds = array<i64: 1, 16, 16>}, {transform_indices = @transform_3, window_bounds = array<i64: 1, 4, 16, 16>}]} {
    %c0 = arith.constant 0 : index
    %c0_0 = arith.constant 0 : index
    %c0_1 = arith.constant 0 : index
    %c0_2 = arith.constant 0 : index
    %0 = vector.load %arg1[%c0, %c0_0, %c0_1, %c0_2] : memref<1x4x16x16xf32, #tpu.memory_space<vmem>>, vector<1x4x16x16xf32>
    %1 = vector.shape_cast %0 : vector<1x4x16x16xf32> to vector<4x16x16xf32>
    %c0_3 = arith.constant 0 : index
    %c0_4 = arith.constant 0 : index
    %c0_5 = arith.constant 0 : index
    %2 = vector.load %arg2[%c0_3, %c0_4, %c0_5] : memref<1x16x16xf32, #tpu.memory_space<vmem>>, vector<1x16x16xf32>
    %3 = vector.shape_cast %2 : vector<1x16x16xf32> to vector<1x1x16x16xf32>
    %4 = vector.shape_cast %3 : vector<1x1x16x16xf32> to vector<1x1x16x16xf32>
    %5 = vector.broadcast %4 : vector<1x1x16x16xf32> to vector<1x4x16x16xf32>
    %6 = vector.shape_cast %5 : vector<1x4x16x16xf32> to vector<4x16x16xf32>
    %c0_6 = arith.constant 0 : index
    %c0_7 = arith.constant 0 : index
    %c0_8 = arith.constant 0 : index
    %7 = vector.load %arg3[%c0_6, %c0_7, %c0_8] : memref<1x16x16xf32, #tpu.memory_space<vmem>>, vector<1x16x16xf32>
    %8 = vector.shape_cast %7 : vector<1x16x16xf32> to vector<1x1x16x16xf32>
    %9 = vector.shape_cast %8 : vector<1x1x16x16xf32> to vector<1x1x16x16xf32>
    %10 = vector.broadcast %9 : vector<1x1x16x16xf32> to vector<1x4x16x16xf32>
    %11 = vector.shape_cast %10 : vector<1x4x16x16xf32> to vector<4x16x16xf32>
    "tpu.trace_start"() <{level = 10 : i32, message = "nij,njk->nik"}> : () -> ()
    %cst = arith.constant dense<0.000000e+00> : vector<4x16x16xf32>
    %12 = tpu.matmul %6, %1, %cst {dimension_numbers = #tpu.dot_dimension_numbers<[2], [1], [1], [2], [0, 0, 0, 1, 1, 2], [0], [0]>, precision = #tpu.contract_precision<fp32>} : vector<4x16x16xf32>, vector<4x16x16xf32>, vector<4x16x16xf32> -> vector<4x16x16xf32>
    %cst_9 = arith.constant dense<0.000000e+00> : vector<4x16x16xf32>
    %13 = tpu.matmul %12, %11, %cst_9 {dimension_numbers = #tpu.dot_dimension_numbers<[2], [1], [1], [2], [0, 0, 0, 1, 1, 2], [0], [0]>, precision = #tpu.contract_precision<fp32>} : vector<4x16x16xf32>, vector<4x16x16xf32>, vector<4x16x16xf32> -> vector<4x16x16xf32>
    "tpu.trace_stop"() : () -> ()
    %14 = vector.shape_cast %13 : vector<4x16x16xf32> to vector<1x4x16x16xf32>
    %c0_10 = arith.constant 0 : index
    %c0_11 = arith.constant 0 : index
    %c0_12 = arith.constant 0 : index
    %c0_13 = arith.constant 0 : index
    %15 = vector.load %arg4[%c0_10, %c0_11, %c0_12, %c0_13] : memref<1x4x16x16xf32, #tpu.memory_space<vmem>>, vector<1x4x16x16xf32>
    tpu.vector_store %arg4[%c0_10, %c0_11, %c0_12, %c0_13], %14 {strides = array<i32>} : memref<1x4x16x16xf32, #tpu.memory_space<vmem>>, vector<1x4x16x16xf32>,
    return
  }
  func.func @transform_0(%arg0: i32) -> (i32, i32, i32, i32) {
    %c0_i32 = arith.constant 0 : i32
    %c0_i32_0 = arith.constant 0 : i32
    %c0_i32_1 = arith.constant 0 : i32
    %c0_i32_2 = arith.constant 0 : i32
    return %arg0, %c0_i32, %c0_i32_0, %c0_i32_1 : i32, i32, i32, i32
  }
  func.func @transform_1(%arg0: i32) -> (i32, i32, i32) {
    %c0_i32 = arith.constant 0 : i32
    %c0_i32_0 = arith.constant 0 : i32
    %c0_i32_1 = arith.constant 0 : i32
    return %arg0, %c0_i32, %c0_i32_0 : i32, i32, i32
  }
  func.func @transform_2(%arg0: i32) -> (i32, i32, i32) {
    %c0_i32 = arith.constant 0 : i32
    %c0_i32_0 = arith.constant 0 : i32
    %c0_i32_1 = arith.constant 0 : i32
    return %arg0, %c0_i32, %c0_i32_0 : i32, i32, i32
  }
  func.func @transform_3(%arg0: i32) -> (i32, i32, i32, i32) {
    %c0_i32 = arith.constant 0 : i32
    %c0_i32_0 = arith.constant 0 : i32
    %c0_i32_1 = arith.constant 0 : i32
    %c0_i32_2 = arith.constant 0 : i32
    return %arg0, %c0_i32, %c0_i32_0, %c0_i32_1 : i32, i32, i32, i32
  }
}

</mosaic_0001>

<llo_original>
// kernel: tpu_custom_call.1
$region0: #{tpu_custom_call.1}
  #allocation0 [shape = 'u32[]', space=smem, size = 0x4, offset = 0x4, fixed_abs, tag = 'smem constant byte address 0x4 - core index']
  #allocation1 [shape = 'u32[144,128]{1,0:T(1,128)}', space=vmem, size = 0x12000, scoped, tag = 'internal scratch']
  %s0 = inlined_call_operand.hbm [shape: f32[2,4,16,16], index: 0, kind: input, shape index: {}]
  %s1 = inlined_call_operand.hbm [shape: f32[2,16,16], index: 1, kind: input, shape index: {}]
  %s2 = inlined_call_operand.hbm [shape: f32[2,16,16], index: 2, kind: input, shape index: {}]
  %s3 = inlined_call_operand.hbm [shape: f32[2,4,16,16], index: 3, kind: output, shape index: {}]
  %s4 = sld [smem:[#allocation0]]
  $region57: #{tpu_custom_call.1} parent=0
    _
  %s6 = ssub.s32 1, %s4
  %s7 = scalar_select 0, %s6, %s4
  $region1: #{tpu_custom_call.1} parent=0
    #allocation2 [shape = 'u8[65536]{0}', space=vmem, size = 0x10000, scoped, tag = 'input window, operand 0']
    #allocation3 [shape = 's32[2]{0}', space=sflag, size = 0x8, scoped, tag = 'scoped memory for tpu_custom_call.1']
    #allocation4 [shape = 's32[2]{0}', space=sflag, size = 0x8, scoped, tag = 'scoped memory for tpu_custom_call.1']
    #allocation5 [shape = 'u8[16384]{0}', space=vmem, size = 0x4000, scoped, tag = 'input window, operand 1']
    #allocation6 [shape = 's32[2]{0}', space=sflag, size = 0x8, scoped, tag = 'scoped memory for tpu_custom_call.1']
    #allocation7 [shape = 'u8[16384]{0}', space=vmem, size = 0x4000, scoped, tag = 'input window, operand 2']
    #allocation8 [shape = 'u8[65536]{0}', space=vmem, size = 0x10000, scoped, tag = 'output window, operand 0']
    %8 = vsyncpa [#allocation3], 0
    %s9 = scalar_lea.sflag [#allocation3], 1
    %10 = vsyncpa %s9, 0
    %11 = vsyncpa [#allocation6], 0
    %s12 = scalar_lea.sflag [#allocation6], 1
    %13 = vsyncpa %s12, 0
    %14 = vsyncpa [#allocation4], 0
    %s15 = scalar_lea.sflag [#allocation4], 1
    %16 = vsyncpa %s15, 0
    loop: start=0, step=1, limit=4
    $region2: #{tpu_custom_call.1} parent=1 // loop_pre_header
      _
    $region3: #{tpu_custom_call.1} parent=1 // loop_header
      %s18 = sphi 0, %s22
      %p19 = scmp.ge.s32.totalorder %s18, 4
      %s28 = sphi 0, %s30
      %s31 = sphi 0, %s28
      %s32 = sphi 0, %s31
      %s48 = sphi 0, %s32
      %s54 = sphi 0, %s56
      %s57 = sphi 0, %s54
      %s58 = sphi 0, %s57
      %s74 = sphi 0, %s58
      %s80 = sphi 0, %s82
      %s83 = sphi 0, %s80
      %s84 = sphi 0, %s83
      %s100 = sphi 0, %s84
      %s106 = sphi 0, %s108
      %s109 = sphi 0, %s106
      %s110 = sphi 0, %s109
      %s126 = sphi 0, %s110
    $region4: #{tpu_custom_call.1} parent=1 // loop_header_branch
      %21 = sbr.rel (%p19) target = $region8
    $region5: #{tpu_custom_call.1} parent=1 // loop_body
      %s23 = ssub.s32 %s18, 1
      %s24 = ssub.s32 %s18, 2
      %s25 = sadd.s32 %s18, 1
      %s26 = ssub.s32 %s18, %s25
      %p27 = scmp.eq.s32.totalorder %s26, 0
      %s29 = sadd.s32 %s28, 1
      %s30 = scalar_select %p27, %s28, %s29
      %p33 = pneg %p27
      %p34 = scmp.eq.s32.totalorder %s18, 1
      %p35 = por %p33, %p34
      %p36 = scmp.ne.s32.totalorder %s28, %s31
      %p37 = scmp.eq.s32.totalorder %s18, 0
      %p38 = por %p36, %p37
      %p39 = scmp.ne.s32.totalorder %s28, %s31
      %p40 = scmp.eq.s32.totalorder %s23, 1
      %p41 = por %p39, %p40
      %p42 = scmp.ne.s32.totalorder %s31, %s32
      %p43 = scmp.eq.s32.totalorder %s23, 0
      %p44 = por %p42, %p43
      %p45 = scmp.ne.s32.totalorder %s31, %s32
      %p46 = scmp.eq.s32.totalorder %s24, 1
      %p47 = por %p45, %p46
      %p49 = scmp.ne.s32.totalorder %s32, %s48
      %p50 = scmp.eq.s32.totalorder %s24, 0
      %p51 = por %p49, %p50
      %s52 = ssub.s32 %s18, %s25
      %p53 = scmp.eq.s32.totalorder %s52, 0
      %s55 = sadd.s32 %s54, 1
      %s56 = scalar_select %p53, %s54, %s55
      %p59 = pneg %p53
      %p60 = scmp.eq.s32.totalorder %s18, 1
      %p61 = por %p59, %p60
      %p62 = scmp.ne.s32.totalorder %s54, %s57
      %p63 = scmp.eq.s32.totalorder %s18, 0
      %p64 = por %p62, %p63
      %p65 = scmp.ne.s32.totalorder %s54, %s57
      %p66 = scmp.eq.s32.totalorder %s23, 1
      %p67 = por %p65, %p66
      %p68 = scmp.ne.s32.totalorder %s57, %s58
      %p69 = scmp.eq.s32.totalorder %s23, 0
      %p70 = por %p68, %p69
      %p71 = scmp.ne.s32.totalorder %s57, %s58
      %p72 = scmp.eq.s32.totalorder %s24, 1
      %p73 = por %p71, %p72
      %p75 = scmp.ne.s32.totalorder %s58, %s74
      %p76 = scmp.eq.s32.totalorder %s24, 0
      %p77 = por %p75, %p76
      %s78 = ssub.s32 %s18, %s25
      %p79 = scmp.eq.s32.totalorder %s78, 0
      %s81 = sadd.s32 %s80, 1
      %s82 = scalar_select %p79, %s80, %s81
      %p85 = pneg %p79
      %p86 = scmp.eq.s32.totalorder %s18, 1
      %p87 = por %p85, %p86
      %p88 = scmp.ne.s32.totalorder %s80, %s83
      %p89 = scmp.eq.s32.totalorder %s18, 0
      %p90 = por %p88, %p89
      %p91 = scmp.ne.s32.totalorder %s80, %s83
      %p92 = scmp.eq.s32.totalorder %s23, 1
      %p93 = por %p91, %p92
      %p94 = scmp.ne.s32.totalorder %s83, %s84
      %p95 = scmp.eq.s32.totalorder %s23, 0
      %p96 = por %p94, %p95
      %p97 = scmp.ne.s32.totalorder %s83, %s84
      %p98 = scmp.eq.s32.totalorder %s24, 1
      %p99 = por %p97, %p98
      %p101 = scmp.ne.s32.totalorder %s84, %s100
      %p102 = scmp.eq.s32.totalorder %s24, 0
      %p103 = por %p101, %p102
      %s104 = ssub.s32 %s18, %s25
      %p105 = scmp.eq.s32.totalorder %s104, 0
      %s107 = sadd.s32 %s106, 1
      %s108 = scalar_select %p105, %s106, %s107
      %p111 = pneg %p105
      %p112 = scmp.eq.s32.totalorder %s18, 1
      %p113 = por %p111, %p112
      %p114 = scmp.ne.s32.totalorder %s106, %s109
      %p115 = scmp.eq.s32.totalorder %s18, 0
      %p116 = por %p114, %p115
      %p117 = scmp.ne.s32.totalorder %s106, %s109
      %p118 = scmp.eq.s32.totalorder %s23, 1
      %p119 = por %p117, %p118
      %p120 = scmp.ne.s32.totalorder %s109, %s110
      %p121 = scmp.eq.s32.totalorder %s23, 0
      %p122 = por %p120, %p121
      %p123 = scmp.ne.s32.totalorder %s109, %s110
      %p124 = scmp.eq.s32.totalorder %s24, 1
      %p125 = por %p123, %p124
      %p127 = scmp.ne.s32.totalorder %s110, %s126
      %p128 = scmp.eq.s32.totalorder %s24, 0
      %p129 = por %p127, %p128
      %p130 = scmp.le.s32.totalorder 1, %s18
      %p131 = scmp.lt.s32.totalorder %s18, 3
      %p132 = pnand %p130, %p131
      %p133 = pneg %p132
      // Predicated region
      $region9: #{tpu_custom_call.1} parent=5 // pred_check
        _
      $region10: #{tpu_custom_call.1} parent=5 // pred_check_branch
        %135 = sbr.rel (%p132) target = $region12
      $region11: #{tpu_custom_call.1} parent=5 // pred_region
        %s136 = ssub.s32 %s18, 1
      $region12: #{tpu_custom_call.1} parent=5 // pred_fallthru
        _
      %p137 = scmp.lt.s32.totalorder %s18, 2
      // Predicated region
      $region13: #{tpu_custom_call.1} parent=5 // pred_check
        %p138 = pneg %p137
      $region14: #{tpu_custom_call.1} parent=5 // pred_check_branch
        %140 = sbr.rel (%p138) target = $region16
      $region15: #{tpu_custom_call.1} parent=5 // pred_region
        // Predicated region
        $region17: #{tpu_custom_call.1} parent=15 // pred_check
          %p141 = pneg %p38
        $region18: #{tpu_custom_call.1} parent=15 // pred_check_branch
          %143 = sbr.rel (%p141) target = $region20
        $region19: #{tpu_custom_call.1} parent=15 // pred_region
          %s144 = sand.u32 %s28, 1
          %s145 = scalar_lea.sflag [#allocation3], %s144
          %s146 = sand.u32 %s28, 1
          %s147 = smul.addr %s146, 64
          %s148 = scalar_lea.vmem [#allocation2], %s147
          %s150 = ssub.s32 1024, 1024
          %151 = vsyncadd %s145, %s150
          %s152 = smul.addr %s18, 8
          %s153 = smul.addr %s152, 128
          %s154 = scalar_lea.hbm %s0, %s153
          %s155 = sshll.u32 %s148, 4
          %s156 = int_to_ptr.vmem [resolvable:$true] %s155
          %161 = dma.hbm_to_vmem [thread:$0]  %s154, 1024, %s156, %s145, 128, 128, 8
        $region20: #{tpu_custom_call.1} parent=15 // pred_fallthru
          _
        // Predicated region
        $region21: #{tpu_custom_call.1} parent=15 // pred_check
          %p162 = pneg %p64
        $region22: #{tpu_custom_call.1} parent=15 // pred_check_branch
          %164 = sbr.rel (%p162) target = $region24
        $region23: #{tpu_custom_call.1} parent=15 // pred_region
          %s165 = sand.u32 %s18, 1
          %s166 = scalar_lea.sflag [#allocation6], %s165
          %s167 = sand.u32 %s54, 1
          %s168 = smul.addr %s167, 16
          %s169 = scalar_lea.vmem [#allocation5], %s168
          %s171 = ssub.s32 256, 256
          %172 = vsyncadd %s166, %s171
          %s173 = smul.addr %s18, 2
          %s174 = smul.addr %s173, 128
          %s175 = scalar_lea.hbm %s1, %s174
          %s176 = sshll.u32 %s169, 4
          %s177 = int_to_ptr.vmem [resolvable:$true] %s176
          %182 = dma.hbm_to_vmem [thread:$0]  %s175, 256, %s177, %s166, 128, 128, 8
        $region24: #{tpu_custom_call.1} parent=15 // pred_fallthru
          _
        // Predicated region
        $region25: #{tpu_custom_call.1} parent=15 // pred_check
          %p183 = pneg %p90
        $region26: #{tpu_custom_call.1} parent=15 // pred_check_branch
          %185 = sbr.rel (%p183) target = $region28
        $region27: #{tpu_custom_call.1} parent=15 // pred_region
          %s186 = sand.u32 %s18, 1
          %s187 = scalar_lea.sflag [#allocation6], %s186
          %s188 = sand.u32 %s80, 1
          %s189 = smul.addr %s188, 16
          %s190 = scalar_lea.vmem [#allocation7], %s189
          %s192 = ssub.s32 256, 256
          %193 = vsyncadd %s187, %s192
          %s194 = smul.addr %s18, 2
          %s195 = smul.addr %s194, 128
          %s196 = scalar_lea.hbm %s2, %s195
          %s197 = sshll.u32 %s190, 4
          %s198 = int_to_ptr.vmem [resolvable:$true] %s197
          %203 = dma.hbm_to_vmem [thread:$0]  %s196, 256, %s198, %s187, 128, 128, 8
        $region28: #{tpu_custom_call.1} parent=15 // pred_fallthru
          _
      $region16: #{tpu_custom_call.1} parent=5 // pred_fallthru
        _
      %p204 = scmp.le.s32.totalorder 1, %s18
      %p205 = scmp.lt.s32.totalorder %s18, 3
      %p206 = pnand %p204, %p205
      %p207 = pneg %p206
      // Predicated region
      $region29: #{tpu_custom_call.1} parent=5 // pred_check
        _
      $region30: #{tpu_custom_call.1} parent=5 // pred_check_branch
        %209 = sbr.rel (%p206) target = $region32
      $region31: #{tpu_custom_call.1} parent=5 // pred_region
        %s210 = ssub.s32 %s18, 1
        %s211 = sand.u32 %s31, 1
        %s212 = scalar_lea.sflag [#allocation3], %s211
        %s213 = sand.u32 %s31, 1
        %s214 = smul.addr %s213, 64
        %s215 = scalar_lea.vmem [#allocation2], %s214
        // Predicated region
        $region33: #{tpu_custom_call.1} parent=31 // pred_check
          %p216 = pneg %p44
        $region34: #{tpu_custom_call.1} parent=31 // pred_check_branch
          %218 = sbr.rel (%p216) target = $region36
        $region35: #{tpu_custom_call.1} parent=31 // pred_region
          %219 = dma.done %s212, 1024
        $region36: #{tpu_custom_call.1} parent=31 // pred_fallthru
          _
        %s220 = sand.u32 %s23, 1
        %s221 = scalar_lea.sflag [#allocation6], %s220
        %s222 = sand.u32 %s57, 1
        %s223 = smul.addr %s222, 16
        %s224 = scalar_lea.vmem [#allocation5], %s223
        // Predicated region
        $region37: #{tpu_custom_call.1} parent=31 // pred_check
          %p225 = pneg %p70
        $region38: #{tpu_custom_call.1} parent=31 // pred_check_branch
          %227 = sbr.rel (%p225) target = $region40
        $region39: #{tpu_custom_call.1} parent=31 // pred_region
          %228 = dma.done %s221, 256
        $region40: #{tpu_custom_call.1} parent=31 // pred_fallthru
          _
        %s229 = sand.u32 %s23, 1
        %s230 = scalar_lea.sflag [#allocation6], %s229
        %s231 = sand.u32 %s83, 1
        %s232 = smul.addr %s231, 16
        %s233 = scalar_lea.vmem [#allocation7], %s232
        // Predicated region
        $region41: #{tpu_custom_call.1} parent=31 // pred_check
          %p234 = pneg %p96
        $region42: #{tpu_custom_call.1} parent=31 // pred_check_branch
          %236 = sbr.rel (%p234) target = $region44
        $region43: #{tpu_custom_call.1} parent=31 // pred_region
          %237 = dma.done %s230, 256
        $region44: #{tpu_custom_call.1} parent=31 // pred_fallthru
          _
        %s238 = sand.u32 %s31, 1
        %s239 = scalar_lea.sflag [#allocation3], %s238
        %s240 = sand.u32 %s31, 1
        %s241 = smul.addr %s240, 64
        %s242 = scalar_lea.vmem [#allocation2], %s241
        %p243 = pneg %p44
        %p244 = pneg %p41
        %s245 = sand.u32 %s23, 1
        %s246 = scalar_lea.sflag [#allocation6], %s245
        %s247 = sand.u32 %s57, 1
        %s248 = smul.addr %s247, 16
        %s249 = scalar_lea.vmem [#allocation5], %s248
        %p250 = pneg %p70
        %p251 = pneg %p67
        %s252 = sand.u32 %s23, 1
        %s253 = scalar_lea.sflag [#allocation6], %s252
        %s254 = sand.u32 %s83, 1
        %s255 = smul.addr %s254, 16
        %s256 = scalar_lea.vmem [#allocation7], %s255
        %p257 = pneg %p96
        %p258 = pneg %p93
        %p259 = pneg %p122
        %p260 = pneg %p119
        %s261 = sand.u32 %s109, 1
        %s262 = scalar_lea.sflag [#allocation4], %s261
        %s263 = sand.u32 %s109, 1
        %s264 = smul.addr %s263, 64
        %s265 = scalar_lea.vmem [#allocation8], %s264
        %v266 = vld [vmem:[%s215] sm:$0xff]
        %v267 = vld [vmem:[%s215 + $0x8] sm:$0xff]
        %v268 = vld [vmem:[%s215 + $0x10] sm:$0xff]
        %v269 = vld [vmem:[%s215 + $0x18] sm:$0xff]
        %v270 = vld [vmem:[%s215 + $0x20] sm:$0xff]
        %v271 = vld [vmem:[%s215 + $0x28] sm:$0xff]
        %v272 = vld [vmem:[%s215 + $0x30] sm:$0xff]
        %v273 = vld [vmem:[%s215 + $0x38] sm:$0xff]
        %v274 = vld [vmem:[%s224] sm:$0xff]
        %v275 = vld [vmem:[%s224 + $0x8] sm:$0xff]
        %v276 = vld [vmem:[%s233] sm:$0xff]
        %v277 = vld [vmem:[%s233 + $0x8] sm:$0xff]
        %vm278 = vcmask 130048
        %v280 = vsel %vm278, %v274, 0
        %v283 = vsel %vm278, %v275, 0
        %285 = vmatprep.subr.mxu0 0.0
        %v286 = vand.u32 %v266, 4294901760
        %287 = vmatpush1.msra.mxu0 %v286
        %288 = vmatprep.subr.mxu0 0.0
        %v289 = vand.u32 %v267, 4294901760
        %290 = vmatpush1.msra.mxu0 %v289
        %291 = vmatprep.subr.mxu0 0.0
        %292 = vmatpush1.msra.mxu0 0.0
        %293 = vmatprep.subr.mxu0 0.0
        %294 = vmatpush1.msra.mxu0 0.0
        %295 = vmatprep.subr.mxu0 0.0
        %296 = vmatpush1.msra.mxu0 0.0
        %297 = vmatprep.subr.mxu0 0.0
        %298 = vmatpush1.msra.mxu0 0.0
        %299 = vmatprep.subr.mxu0 0.0
        %300 = vmatpush1.msra.mxu0 0.0
        %301 = vmatprep.subr.mxu0 0.0
        %302 = vmatpush1.msra.mxu0 0.0
        %303 = vmatprep.subr.mxu0 0.0
        %304 = vmatpush1.msra.mxu0 0.0
        %305 = vmatprep.subr.mxu0 0.0
        %306 = vmatpush1.msra.mxu0 0.0
        %307 = vmatprep.subr.mxu0 0.0
        %308 = vmatpush1.msra.mxu0 0.0
        %309 = vmatprep.subr.mxu0 0.0
        %310 = vmatpush1.msra.mxu0 0.0
        %311 = vmatprep.subr.mxu0 0.0
        %312 = vmatpush1.msra.mxu0 0.0
        %313 = vmatprep.subr.mxu0 0.0
        %314 = vmatpush1.msra.mxu0 0.0
        %315 = vmatprep.subr.mxu0 0.0
        %316 = vmatpush1.msra.mxu0 0.0
        %317 = vmatprep.subr.mxu0 0.0
        %318 = vmatpush1.msra.mxu0 0.0
        %319 = vmatprep.subr.mxu0 0.0
        %320 = vmatpush1.msra.mxu0 0.0
        %321 = vmatprep.subr.mxu0 0.0
        %322 = vmatpush1.msra.mxu0 0.0
        %323 = vmatprep.subr.mxu0 0.0
        %324 = vmatpush1.msra.mxu0 0.0
        %325 = vmatprep.subr.mxu0 0.0
        %326 = vmatpush1.msra.mxu0 0.0
        %327 = vmatprep.subr.mxu0 0.0
        %328 = vmatpush1.msra.mxu0 0.0
        %329 = vmatprep.subr.mxu0 0.0
        %330 = vmatpush1.msra.mxu0 0.0
        %331 = vmatprep.subr.mxu0 0.0
        %332 = vmatpush1.msra.mxu0 0.0
        %333 = vmatprep.subr.mxu0 0.0
        %334 = vmatpush1.msra.mxu0 0.0
        %335 = vmatprep.subr.mxu0 0.0
        %336 = vmatpush1.msra.mxu0 0.0
        %337 = vmatprep.subr.mxu0 0.0
        %338 = vmatpush1.msra.mxu0 0.0
        %339 = vmatprep.subr.mxu0 0.0
        %340 = vmatpush1.msra.mxu0 0.0
        %341 = vmatprep.subr.mxu0 0.0
        %342 = vmatpush1.msra.mxu0 0.0
        %343 = vmatprep.subr.mxu0 0.0
        %344 = vmatpush1.msra.mxu0 0.0
        %345 = vmatprep.subr.mxu0 0.0
        %346 = vmatpush1.msra.mxu0 0.0
        %347 = vmatprep.subr.mxu0 0.0
        %348 = vmatpush1.msra.mxu0 0.0
        %349 = vmatprep.subr.mxu0 0.0
        %350 = vmatpush1.msra.mxu0 0.0
        %351 = vmatprep.mubr.f32.mxu0 0.0
        %v352 = vand.u32 %v280, 4294901760
        %v353 = vsub.f32 %v280, %v352
        %v354 = vand.u32 %v353, 4294901760
        %v355 = vsub.f32 %v353, %v354
        %v356 = vand.u32 %v355, 4294901760
        %357 = vmatmul.mubr.f32.gmra.mrb[0].mxu0 %v356
        %v358 = vpop.f32.mrb[0].mxu0
        %v359 = vadd.f32 0.0, %v358
        %v360 = vpop.f32.mrb[0].mxu0
        %361 = vmatprep.mubr.f32.mxu0 0.0
        %v362 = vand.u32 %v283, 4294901760
        %v363 = vsub.f32 %v283, %v362
        %v364 = vand.u32 %v363, 4294901760
        %v365 = vsub.f32 %v363, %v364
        %v366 = vand.u32 %v365, 4294901760
        %367 = vmatmul.mubr.f32.gmra.mrb[0].mxu0 %v366
        %v368 = vpop.f32.mrb[0].mxu0
        %v369 = vadd.f32 0.0, %v368
        %v370 = vpop.f32.mrb[0].mxu0
        %371 = vdwg.mxu0
        %372 = vmatprep.subr.mxu0 0.0
        %v373 = vand.u32 %v266, 4294901760
        %v374 = vsub.f32 %v266, %v373
        %v375 = vand.u32 %v374, 4294901760
        %v376 = vsub.f32 %v374, %v375
        %v377 = vand.u32 %v376, 4294901760
        %378 = vmatpush1.msra.mxu0 %v377
        %379 = vmatprep.subr.mxu0 0.0
        %v380 = vand.u32 %v267, 4294901760
        %v381 = vsub.f32 %v267, %v380
        %v382 = vand.u32 %v381, 4294901760
        %v383 = vsub.f32 %v381, %v382
        %v384 = vand.u32 %v383, 4294901760
        %385 = vmatpush1.msra.mxu0 %v384
        %386 = vmatprep.subr.mxu0 0.0
        %387 = vmatpush1.msra.mxu0 0.0
        %388 = vmatprep.subr.mxu0 0.0
        %389 = vmatpush1.msra.mxu0 0.0
        %390 = vmatprep.subr.mxu0 0.0
        %391 = vmatpush1.msra.mxu0 0.0
        %392 = vmatprep.subr.mxu0 0.0
        %393 = vmatpush1.msra.mxu0 0.0
        %394 = vmatprep.subr.mxu0 0.0
        %395 = vmatpush1.msra.mxu0 0.0
        %396 = vmatprep.subr.mxu0 0.0
        %397 = vmatpush1.msra.mxu0 0.0
        %398 = vmatprep.subr.mxu0 0.0
        %399 = vmatpush1.msra.mxu0 0.0
        %400 = vmatprep.subr.mxu0 0.0
        %401 = vmatpush1.msra.mxu0 0.0
        %402 = vmatprep.subr.mxu0 0.0
        %403 = vmatpush1.msra.mxu0 0.0
        %404 = vmatprep.subr.mxu0 0.0
        %405 = vmatpush1.msra.mxu0 0.0
        %406 = vmatprep.subr.mxu0 0.0
        %407 = vmatpush1.msra.mxu0 0.0
        %408 = vmatprep.subr.mxu0 0.0
        %409 = vmatpush1.msra.mxu0 0.0
        %410 = vmatprep.subr.mxu0 0.0
        %411 = vmatpush1.msra.mxu0 0.0
        %412 = vmatprep.subr.mxu0 0.0
        %413 = vmatpush1.msra.mxu0 0.0
        %414 = vmatprep.subr.mxu0 0.0
        %415 = vmatpush1.msra.mxu0 0.0
        %416 = vmatprep.subr.mxu0 0.0
        %417 = vmatpush1.msra.mxu0 0.0
        %418 = vmatprep.subr.mxu0 0.0
        %419 = vmatpush1.msra.mxu0 0.0
        %420 = vmatprep.subr.mxu0 0.0
        %421 = vmatpush1.msra.mxu0 0.0
        %422 = vmatprep.subr.mxu0 0.0
        %423 = vmatpush1.msra.mxu0 0.0
        %424 = vmatprep.subr.mxu0 0.0
        %425 = vmatpush1.msra.mxu0 0.0
        %426 = vmatprep.subr.mxu0 0.0
        %427 = vmatpush1.msra.mxu0 0.0
        %428 = vmatprep.subr.mxu0 0.0
        %429 = vmatpush1.msra.mxu0 0.0
        %430 = vmatprep.subr.mxu0 0.0
        %431 = vmatpush1.msra.mxu0 0.0
        %432 = vmatprep.subr.mxu0 0.0
        %433 = vmatpush1.msra.mxu0 0.0
        %434 = vmatprep.subr.mxu0 0.0
        %435 = vmatpush1.msra.mxu0 0.0
        %436 = vmatprep.subr.mxu0 0.0
        %437 = vmatpush1.msra.mxu0 0.0
        %438 = vmatprep.subr.mxu0 0.0
        %439 = vmatpush1.msra.mxu0 0.0
        %440 = vmatprep.subr.mxu0 0.0
        %441 = vmatpush1.msra.mxu0 0.0
        %442 = vmatprep.subr.mxu0 0.0
        %443 = vmatpush1.msra.mxu0 0.0
        %444 = vmatprep.subr.mxu0 0.0
        %445 = vmatpush1.msra.mxu0 0.0
        %446 = vmatprep.mubr.f32.mxu0 0.0
        %v447 = vand.u32 %v280, 4294901760
        %448 = vmatmul.mubr.f32.gmra.mrb[0].mxu0 %v447
        %v449 = vpop.f32.mrb[0].mxu0
        %v450 = vadd.f32 %v359, %v449
        %v451 = vpop.f32.mrb[0].mxu0
        %452 = vmatprep.mubr.f32.mxu0 0.0
        %v453 = vand.u32 %v283, 4294901760
        %454 = vmatmul.mubr.f32.gmra.mrb[0].mxu0 %v453
        %v455 = vpop.f32.mrb[0].mxu0
        %v456 = vadd.f32 %v369, %v455
        %v457 = vpop.f32.mrb[0].mxu0
        %458 = vdwg.mxu0
        %459 = vmatprep.subr.mxu0 0.0
        %v460 = vand.u32 %v266, 4294901760
        %v461 = vsub.f32 %v266, %v460
        %462 = vmatpush1.msra.mxu0 %v461
        %463 = vmatprep.subr.mxu0 0.0
        %v464 = vand.u32 %v267, 4294901760
        %v465 = vsub.f32 %v267, %v464
        %466 = vmatpush1.msra.mxu0 %v465
        %467 = vmatprep.subr.mxu0 0.0
        %468 = vmatpush1.msra.mxu0 0.0
        %469 = vmatprep.subr.mxu0 0.0
        %470 = vmatpush1.msra.mxu0 0.0
        %471 = vmatprep.subr.mxu0 0.0
        %472 = vmatpush1.msra.mxu0 0.0
        %473 = vmatprep.subr.mxu0 0.0
        %474 = vmatpush1.msra.mxu0 0.0
        %475 = vmatprep.subr.mxu0 0.0
        %476 = vmatpush1.msra.mxu0 0.0
        %477 = vmatprep.subr.mxu0 0.0
        %478 = vmatpush1.msra.mxu0 0.0
        %479 = vmatprep.subr.mxu0 0.0
        %480 = vmatpush1.msra.mxu0 0.0
        %481 = vmatprep.subr.mxu0 0.0
        %482 = vmatpush1.msra.mxu0 0.0
        %483 = vmatprep.subr.mxu0 0.0
        %484 = vmatpush1.msra.mxu0 0.0
        %485 = vmatprep.subr.mxu0 0.0
        %486 = vmatpush1.msra.mxu0 0.0
        %487 = vmatprep.subr.mxu0 0.0
        %488 = vmatpush1.msra.mxu0 0.0
        %489 = vmatprep.subr.mxu0 0.0
        %490 = vmatpush1.msra.mxu0 0.0
        %491 = vmatprep.subr.mxu0 0.0
        %492 = vmatpush1.msra.mxu0 0.0
        %493 = vmatprep.subr.mxu0 0.0
        %494 = vmatpush1.msra.mxu0 0.0
        %495 = vmatprep.subr.mxu0 0.0
        %496 = vmatpush1.msra.mxu0 0.0
        %497 = vmatprep.subr.mxu0 0.0
        %498 = vmatpush1.msra.mxu0 0.0
        %499 = vmatprep.subr.mxu0 0.0
        %500 = vmatpush1.msra.mxu0 0.0
        %501 = vmatprep.subr.mxu0 0.0
        %502 = vmatpush1.msra.mxu0 0.0
        %503 = vmatprep.subr.mxu0 0.0
        %504 = vmatpush1.msra.mxu0 0.0
        %505 = vmatprep.subr.mxu0 0.0
        %506 = vmatpush1.msra.mxu0 0.0
        %507 = vmatprep.subr.mxu0 0.0
        %508 = vmatpush1.msra.mxu0 0.0
        %509 = vmatprep.subr.mxu0 0.0
        %510 = vmatpush1.msra.mxu0 0.0
        %511 = vmatprep.subr.mxu0 0.0
        %512 = vmatpush1.msra.mxu0 0.0
        %513 = vmatprep.subr.mxu0 0.0
        %514 = vmatpush1.msra.mxu0 0.0
        %515 = vmatprep.subr.mxu0 0.0
        %516 = vmatpush1.msra.mxu0 0.0
        %517 = vmatprep.subr.mxu0 0.0
        %518 = vmatpush1.msra.mxu0 0.0
        %519 = vmatprep.subr.mxu0 0.0
        %520 = vmatpush1.msra.mxu0 0.0
        %521 = vmatprep.subr.mxu0 0.0
        %522 = vmatpush1.msra.mxu0 0.0
        %523 = vmatprep.subr.mxu0 0.0
        %524 = vmatpush1.msra.mxu0 0.0
        %525 = vmatprep.subr.mxu0 0.0
        %526 = vmatpush1.msra.mxu0 0.0
        %527 = vmatprep.mubr.f32.mxu0 0.0
        %v528 = vand.u32 %v280, 4294901760
        %v529 = vsub.f32 %v280, %v528
        %530 = vmatmul.mubr.f32.gmra.mrb[0].mxu0 %v529
        %v531 = vpop.f32.mrb[0].mxu0
        %v532 = vadd.f32 %v450, %v531
        %v533 = vpop.f32.mrb[0].mxu0
        %534 = vmatprep.mubr.f32.mxu0 0.0
        %v535 = vand.u32 %v283, 4294901760
        %v536 = vsub.f32 %v283, %v535
        %537 = vmatmul.mubr.f32.gmra.mrb[0].mxu0 %v536
        %v538 = vpop.f32.mrb[0].mxu0
        %v539 = vadd.f32 %v456, %v538
        %v540 = vpop.f32.mrb[0].mxu0
        %541 = vdwg.mxu0
        %542 = vmatprep.subr.mxu0 0.0
        %v543 = vand.u32 %v266, 4294901760
        %544 = vmatpush1.msra.mxu0 %v543
        %545 = vmatprep.subr.mxu0 0.0
        %v546 = vand.u32 %v267, 4294901760
        %547 = vmatpush1.msra.mxu0 %v546
        %548 = vmatprep.subr.mxu0 0.0
        %549 = vmatpush1.msra.mxu0 0.0
        %550 = vmatprep.subr.mxu0 0.0
        %551 = vmatpush1.msra.mxu0 0.0
        %552 = vmatprep.subr.mxu0 0.0
        %553 = vmatpush1.msra.mxu0 0.0
        %554 = vmatprep.subr.mxu0 0.0
        %555 = vmatpush1.msra.mxu0 0.0
        %556 = vmatprep.subr.mxu0 0.0
        %557 = vmatpush1.msra.mxu0 0.0
        %558 = vmatprep.subr.mxu0 0.0
        %559 = vmatpush1.msra.mxu0 0.0
        %560 = vmatprep.subr.mxu0 0.0
        %561 = vmatpush1.msra.mxu0 0.0
        %562 = vmatprep.subr.mxu0 0.0
        %563 = vmatpush1.msra.mxu0 0.0
        %564 = vmatprep.subr.mxu0 0.0
        %565 = vmatpush1.msra.mxu0 0.0
        %566 = vmatprep.subr.mxu0 0.0
        %567 = vmatpush1.msra.mxu0 0.0
        %568 = vmatprep.subr.mxu0 0.0
        %569 = vmatpush1.msra.mxu0 0.0
        %570 = vmatprep.subr.mxu0 0.0
        %571 = vmatpush1.msra.mxu0 0.0
        %572 = vmatprep.subr.mxu0 0.0
        %573 = vmatpush1.msra.mxu0 0.0
        %574 = vmatprep.subr.mxu0 0.0
        %575 = vmatpush1.msra.mxu0 0.0
        %576 = vmatprep.subr.mxu0 0.0
        %577 = vmatpush1.msra.mxu0 0.0
        %578 = vmatprep.subr.mxu0 0.0
        %579 = vmatpush1.msra.mxu0 0.0
        %580 = vmatprep.subr.mxu0 0.0
        %581 = vmatpush1.msra.mxu0 0.0
        %582 = vmatprep.subr.mxu0 0.0
        %583 = vmatpush1.msra.mxu0 0.0
        %584 = vmatprep.subr.mxu0 0.0
        %585 = vmatpush1.msra.mxu0 0.0
        %586 = vmatprep.subr.mxu0 0.0
        %587 = vmatpush1.msra.mxu0 0.0
        %588 = vmatprep.subr.mxu0 0.0
        %589 = vmatpush1.msra.mxu0 0.0
        %590 = vmatprep.subr.mxu0 0.0
        %591 = vmatpush1.msra.mxu0 0.0
        %592 = vmatprep.subr.mxu0 0.0
        %593 = vmatpush1.msra.mxu0 0.0
        %594 = vmatprep.subr.mxu0 0.0
        %595 = vmatpush1.msra.mxu0 0.0
        %596 = vmatprep.subr.mxu0 0.0
        %597 = vmatpush1.msra.mxu0 0.0
        %598 = vmatprep.subr.mxu0 0.0
        %599 = vmatpush1.msra.mxu0 0.0
        %600 = vmatprep.subr.mxu0 0.0
        %601 = vmatpush1.msra.mxu0 0.0
        %602 = vmatprep.subr.mxu0 0.0
        %603 = vmatpush1.msra.mxu0 0.0
        %604 = vmatprep.subr.mxu0 0.0
        %605 = vmatpush1.msra.mxu0 0.0
        %606 = vmatprep.subr.mxu0 0.0
        %607 = vmatpush1.msra.mxu0 0.0
        %608 = vmatprep.mubr.f32.mxu0 0.0
        %v609 = vand.u32 %v280, 4294901760
        %v610 = vsub.f32 %v280, %v609
        %v611 = vand.u32 %v610, 4294901760
        %612 = vmatmul.mubr.f32.gmra.mrb[0].mxu0 %v611
        %v613 = vpop.f32.mrb[0].mxu0
        %v614 = vadd.f32 %v532, %v613
        %v615 = vpop.f32.mrb[0].mxu0
        %616 = vmatprep.mubr.f32.mxu0 0.0
        %v617 = vand.u32 %v283, 4294901760
        %v618 = vsub.f32 %v283, %v617
        %v619 = vand.u32 %v618, 4294901760
        %620 = vmatmul.mubr.f32.gmra.mrb[0].mxu0 %v619
        %v621 = vpop.f32.mrb[0].mxu0
        %v622 = vadd.f32 %v539, %v621
        %v623 = vpop.f32.mrb[0].mxu0
        %624 = vdwg.mxu0
        %625 = vmatprep.subr.mxu0 0.0
        %v626 = vand.u32 %v266, 4294901760
        %v627 = vsub.f32 %v266, %v626
        %v628 = vand.u32 %v627, 4294901760
        %629 = vmatpush1.msra.mxu0 %v628
        %630 = vmatprep.subr.mxu0 0.0
        %v631 = vand.u32 %v267, 4294901760
        %v632 = vsub.f32 %v267, %v631
        %v633 = vand.u32 %v632, 4294901760
        %634 = vmatpush1.msra.mxu0 %v633
        %635 = vmatprep.subr.mxu0 0.0
        %636 = vmatpush1.msra.mxu0 0.0
        %637 = vmatprep.subr.mxu0 0.0
        %638 = vmatpush1.msra.mxu0 0.0
        %639 = vmatprep.subr.mxu0 0.0
        %640 = vmatpush1.msra.mxu0 0.0
        %641 = vmatprep.subr.mxu0 0.0
        %642 = vmatpush1.msra.mxu0 0.0
        %643 = vmatprep.subr.mxu0 0.0
        %644 = vmatpush1.msra.mxu0 0.0
        %645 = vmatprep.subr.mxu0 0.0
        %646 = vmatpush1.msra.mxu0 0.0
        %647 = vmatprep.subr.mxu0 0.0
        %648 = vmatpush1.msra.mxu0 0.0
        %649 = vmatprep.subr.mxu0 0.0
        %650 = vmatpush1.msra.mxu0 0.0
        %651 = vmatprep.subr.mxu0 0.0
        %652 = vmatpush1.msra.mxu0 0.0
        %653 = vmatprep.subr.mxu0 0.0
        %654 = vmatpush1.msra.mxu0 0.0
        %655 = vmatprep.subr.mxu0 0.0
        %656 = vmatpush1.msra.mxu0 0.0
        %657 = vmatprep.subr.mxu0 0.0
        %658 = vmatpush1.msra.mxu0 0.0
        %659 = vmatprep.subr.mxu0 0.0
        %660 = vmatpush1.msra.mxu0 0.0
        %661 = vmatprep.subr.mxu0 0.0
        %662 = vmatpush1.msra.mxu0 0.0
        %663 = vmatprep.subr.mxu0 0.0
        %664 = vmatpush1.msra.mxu0 0.0
        %665 = vmatprep.subr.mxu0 0.0
        %666 = vmatpush1.msra.mxu0 0.0
        %667 = vmatprep.subr.mxu0 0.0
        %668 = vmatpush1.msra.mxu0 0.0
        %669 = vmatprep.subr.mxu0 0.0
        %670 = vmatpush1.msra.mxu0 0.0
        %671 = vmatprep.subr.mxu0 0.0
        %672 = vmatpush1.msra.mxu0 0.0
        %673 = vmatprep.subr.mxu0 0.0
        %674 = vmatpush1.msra.mxu0 0.0
        %675 = vmatprep.subr.mxu0 0.0
        %676 = vmatpush1.msra.mxu0 0.0
        %677 = vmatprep.subr.mxu0 0.0
        %678 = vmatpush1.msra.mxu0 0.0
        %679 = vmatprep.subr.mxu0 0.0
        %680 = vmatpush1.msra.mxu0 0.0
        %681 = vmatprep.subr.mxu0 0.0
        %682 = vmatpush1.msra.mxu0 0.0
        %683 = vmatprep.subr.mxu0 0.0
        %684 = vmatpush1.msra.mxu0 0.0
        %685 = vmatprep.subr.mxu0 0.0
        %686 = vmatpush1.msra.mxu0 0.0
        %687 = vmatprep.subr.mxu0 0.0
        %688 = vmatpush1.msra.mxu0 0.0
        %689 = vmatprep.subr.mxu0 0.0
        %690 = vmatpush1.msra.mxu0 0.0
        %691 = vmatprep.subr.mxu0 0.0
        %692 = vmatpush1.msra.mxu0 0.0
        %693 = vmatprep.subr.mxu0 0.0
        %694 = vmatpush1.msra.mxu0 0.0
        %695 = vmatprep.mubr.f32.mxu0 0.0
        %v696 = vand.u32 %v280, 4294901760
        %697 = vmatmul.mubr.f32.gmra.mrb[0].mxu0 %v696
        %v698 = vpop.f32.mrb[0].mxu0
        %v699 = vadd.f32 %v614, %v698
        %v700 = vpop.f32.mrb[0].mxu0
        %701 = vmatprep.mubr.f32.mxu0 0.0
        %v702 = vand.u32 %v283, 4294901760
        %703 = vmatmul.mubr.f32.gmra.mrb[0].mxu0 %v702
        %v704 = vpop.f32.mrb[0].mxu0
        %v705 = vadd.f32 %v622, %v704
        %v706 = vpop.f32.mrb[0].mxu0
        %707 = vdwg.mxu0
        %708 = vmatprep.subr.mxu0 0.0
        %v709 = vand.u32 %v266, 4294901760
        %710 = vmatpush1.msra.mxu0 %v709
        %711 = vmatprep.subr.mxu0 0.0
        %v712 = vand.u32 %v267, 4294901760
        %713 = vmatpush1.msra.mxu0 %v712
        %714 = vmatprep.subr.mxu0 0.0
        %715 = vmatpush1.msra.mxu0 0.0
        %716 = vmatprep.subr.mxu0 0.0
        %717 = vmatpush1.msra.mxu0 0.0
        %718 = vmatprep.subr.mxu0 0.0
        %719 = vmatpush1.msra.mxu0 0.0
        %720 = vmatprep.subr.mxu0 0.0
        %721 = vmatpush1.msra.mxu0 0.0
        %722 = vmatprep.subr.mxu0 0.0
        %723 = vmatpush1.msra.mxu0 0.0
        %724 = vmatprep.subr.mxu0 0.0
        %725 = vmatpush1.msra.mxu0 0.0
        %726 = vmatprep.subr.mxu0 0.0
        %727 = vmatpush1.msra.mxu0 0.0
        %728 = vmatprep.subr.mxu0 0.0
        %729 = vmatpush1.msra.mxu0 0.0
        %730 = vmatprep.subr.mxu0 0.0
        %731 = vmatpush1.msra.mxu0 0.0
        %732 = vmatprep.subr.mxu0 0.0
        %733 = vmatpush1.msra.mxu0 0.0
        %734 = vmatprep.subr.mxu0 0.0
        %735 = vmatpush1.msra.mxu0 0.0
        %736 = vmatprep.subr.mxu0 0.0
        %737 = vmatpush1.msra.mxu0 0.0
        %738 = vmatprep.subr.mxu0 0.0
        %739 = vmatpush1.msra.mxu0 0.0
        %740 = vmatprep.subr.mxu0 0.0
        %741 = vmatpush1.msra.mxu0 0.0
        %742 = vmatprep.subr.mxu0 0.0
        %743 = vmatpush1.msra.mxu0 0.0
        %744 = vmatprep.subr.mxu0 0.0
        %745 = vmatpush1.msra.mxu0 0.0
        %746 = vmatprep.subr.mxu0 0.0
        %747 = vmatpush1.msra.mxu0 0.0
        %748 = vmatprep.subr.mxu0 0.0
        %749 = vmatpush1.msra.mxu0 0.0
        %750 = vmatprep.subr.mxu0 0.0
        %751 = vmatpush1.msra.mxu0 0.0
        %752 = vmatprep.subr.mxu0 0.0
        %753 = vmatpush1.msra.mxu0 0.0
        %754 = vmatprep.subr.mxu0 0.0
        %755 = vmatpush1.msra.mxu0 0.0
        %756 = vmatprep.subr.mxu0 0.0
        %757 = vmatpush1.msra.mxu0 0.0
        %758 = vmatprep.subr.mxu0 0.0
        %759 = vmatpush1.msra.mxu0 0.0
        %760 = vmatprep.subr.mxu0 0.0
        %761 = vmatpush1.msra.mxu0 0.0
        %762 = vmatprep.subr.mxu0 0.0
        %763 = vmatpush1.msra.mxu0 0.0
        %764 = vmatprep.subr.mxu0 0.0
        %765 = vmatpush1.msra.mxu0 0.0
        %766 = vmatprep.subr.mxu0 0.0
        %767 = vmatpush1.msra.mxu0 0.0
        %768 = vmatprep.subr.mxu0 0.0
        %769 = vmatpush1.msra.mxu0 0.0
        %770 = vmatprep.subr.mxu0 0.0
        %771 = vmatpush1.msra.mxu0 0.0
        %772 = vmatprep.subr.mxu0 0.0
        %773 = vmatpush1.msra.mxu0 0.0
        %774 = vmatprep.mubr.f32.mxu0 0.0
        %v775 = vand.u32 %v280, 4294901760
        %776 = vmatmul.mubr.f32.gmra.mrb[0].mxu0 %v775
        %v777 = vpop.f32.mrb[0].mxu0
        %v778 = vadd.f32 %v699, %v777
        %v779 = vpop.f32.mrb[0].mxu0
        %780 = vmatprep.mubr.f32.mxu0 0.0
        %v781 = vand.u32 %v283, 4294901760
        %782 = vmatmul.mubr.f32.gmra.mrb[0].mxu0 %v781
        %v783 = vpop.f32.mrb[0].mxu0
        %v784 = vadd.f32 %v705, %v783
        %v785 = vpop.f32.mrb[0].mxu0
        %786 = vdwg.mxu0
        %787 = vmatprep.subr.mxu0 0.0
        %v788 = vand.u32 %v268, 4294901760
        %789 = vmatpush1.msra.mxu0 %v788
        %790 = vmatprep.subr.mxu0 0.0
        %v791 = vand.u32 %v269, 4294901760
        %792 = vmatpush1.msra.mxu0 %v791
        %793 = vmatprep.subr.mxu0 0.0
        %794 = vmatpush1.msra.mxu0 0.0
        %795 = vmatprep.subr.mxu0 0.0
        %796 = vmatpush1.msra.mxu0 0.0
        %797 = vmatprep.subr.mxu0 0.0
        %798 = vmatpush1.msra.mxu0 0.0
        %799 = vmatprep.subr.mxu0 0.0
        %800 = vmatpush1.msra.mxu0 0.0
        %801 = vmatprep.subr.mxu0 0.0
        %802 = vmatpush1.msra.mxu0 0.0
        %803 = vmatprep.subr.mxu0 0.0
        %804 = vmatpush1.msra.mxu0 0.0
        %805 = vmatprep.subr.mxu0 0.0
        %806 = vmatpush1.msra.mxu0 0.0
        %807 = vmatprep.subr.mxu0 0.0
        %808 = vmatpush1.msra.mxu0 0.0
        %809 = vmatprep.subr.mxu0 0.0
        %810 = vmatpush1.msra.mxu0 0.0
        %811 = vmatprep.subr.mxu0 0.0
        %812 = vmatpush1.msra.mxu0 0.0
        %813 = vmatprep.subr.mxu0 0.0
        %814 = vmatpush1.msra.mxu0 0.0
        %815 = vmatprep.subr.mxu0 0.0
        %816 = vmatpush1.msra.mxu0 0.0
        %817 = vmatprep.subr.mxu0 0.0
        %818 = vmatpush1.msra.mxu0 0.0
        %819 = vmatprep.subr.mxu0 0.0
        %820 = vmatpush1.msra.mxu0 0.0
        %821 = vmatprep.subr.mxu0 0.0
        %822 = vmatpush1.msra.mxu0 0.0
        %823 = vmatprep.subr.mxu0 0.0
        %824 = vmatpush1.msra.mxu0 0.0
        %825 = vmatprep.subr.mxu0 0.0
        %826 = vmatpush1.msra.mxu0 0.0
        %827 = vmatprep.subr.mxu0 0.0
        %828 = vmatpush1.msra.mxu0 0.0
        %829 = vmatprep.subr.mxu0 0.0
        %830 = vmatpush1.msra.mxu0 0.0
        %831 = vmatprep.subr.mxu0 0.0
        %832 = vmatpush1.msra.mxu0 0.0
        %833 = vmatprep.subr.mxu0 0.0
        %834 = vmatpush1.msra.mxu0 0.0
        %835 = vmatprep.subr.mxu0 0.0
        %836 = vmatpush1.msra.mxu0 0.0
        %837 = vmatprep.subr.mxu0 0.0
        %838 = vmatpush1.msra.mxu0 0.0
        %839 = vmatprep.subr.mxu0 0.0
        %840 = vmatpush1.msra.mxu0 0.0
        %841 = vmatprep.subr.mxu0 0.0
        %842 = vmatpush1.msra.mxu0 0.0
        %843 = vmatprep.subr.mxu0 0.0
        %844 = vmatpush1.msra.mxu0 0.0
        %845 = vmatprep.subr.mxu0 0.0
        %846 = vmatpush1.msra.mxu0 0.0
        %847 = vmatprep.subr.mxu0 0.0
        %848 = vmatpush1.msra.mxu0 0.0
        %849 = vmatprep.subr.mxu0 0.0
        %850 = vmatpush1.msra.mxu0 0.0
        %851 = vmatprep.subr.mxu0 0.0
        %852 = vmatpush1.msra.mxu0 0.0
        %853 = vmatprep.mubr.f32.mxu0 0.0
        %v854 = vand.u32 %v280, 4294901760
        %v855 = vsub.f32 %v280, %v854
        %v856 = vand.u32 %v855, 4294901760
        %v857 = vsub.f32 %v855, %v856
        %v858 = vand.u32 %v857, 4294901760
        %859 = vmatmul.mubr.f32.gmra.mrb[0].mxu0 %v858
        %v860 = vpop.f32.mrb[0].mxu0
        %v861 = vadd.f32 0.0, %v860
        %v862 = vpop.f32.mrb[0].mxu0
        %863 = vmatprep.mubr.f32.mxu0 0.0
        %v864 = vand.u32 %v283, 4294901760
        %v865 = vsub.f32 %v283, %v864
        %v866 = vand.u32 %v865, 4294901760
        %v867 = vsub.f32 %v865, %v866
        %v868 = vand.u32 %v867, 4294901760
        %869 = vmatmul.mubr.f32.gmra.mrb[0].mxu0 %v868
        %v870 = vpop.f32.mrb[0].mxu0
        %v871 = vadd.f32 0.0, %v870
        %v872 = vpop.f32.mrb[0].mxu0
        %873 = vdwg.mxu0
        %874 = vmatprep.subr.mxu0 0.0
        %v875 = vand.u32 %v268, 4294901760
        %v876 = vsub.f32 %v268, %v875
        %v877 = vand.u32 %v876, 4294901760
        %v878 = vsub.f32 %v876, %v877
        %v879 = vand.u32 %v878, 4294901760
        %880 = vmatpush1.msra.mxu0 %v879
        %881 = vmatprep.subr.mxu0 0.0
        %v882 = vand.u32 %v269, 4294901760
        %v883 = vsub.f32 %v269, %v882
        %v884 = vand.u32 %v883, 4294901760
        %v885 = vsub.f32 %v883, %v884
        %v886 = vand.u32 %v885, 4294901760
        %887 = vmatpush1.msra.mxu0 %v886
        %888 = vmatprep.subr.mxu0 0.0
        %889 = vmatpush1.msra.mxu0 0.0
        %890 = vmatprep.subr.mxu0 0.0
        %891 = vmatpush1.msra.mxu0 0.0
        %892 = vmatprep.subr.mxu0 0.0
        %893 = vmatpush1.msra.mxu0 0.0
        %894 = vmatprep.subr.mxu0 0.0
        %895 = vmatpush1.msra.mxu0 0.0
        %896 = vmatprep.subr.mxu0 0.0
        %897 = vmatpush1.msra.mxu0 0.0
        %898 = vmatprep.subr.mxu0 0.0
        %899 = vmatpush1.msra.mxu0 0.0
        %900 = vmatprep.subr.mxu0 0.0
        %901 = vmatpush1.msra.mxu0 0.0
        %902 = vmatprep.subr.mxu0 0.0
        %903 = vmatpush1.msra.mxu0 0.0
        %904 = vmatprep.subr.mxu0 0.0
        %905 = vmatpush1.msra.mxu0 0.0
        %906 = vmatprep.subr.mxu0 0.0
        %907 = vmatpush1.msra.mxu0 0.0
        %908 = vmatprep.subr.mxu0 0.0
        %909 = vmatpush1.msra.mxu0 0.0
        %910 = vmatprep.subr.mxu0 0.0
        %911 = vmatpush1.msra.mxu0 0.0
        %912 = vmatprep.subr.mxu0 0.0
        %913 = vmatpush1.msra.mxu0 0.0
        %914 = vmatprep.subr.mxu0 0.0
        %915 = vmatpush1.msra.mxu0 0.0
        %916 = vmatprep.subr.mxu0 0.0
        %917 = vmatpush1.msra.mxu0 0.0
        %918 = vmatprep.subr.mxu0 0.0
        %919 = vmatpush1.msra.mxu0 0.0
        %920 = vmatprep.subr.mxu0 0.0
        %921 = vmatpush1.msra.mxu0 0.0
        %922 = vmatprep.subr.mxu0 0.0
        %923 = vmatpush1.msra.mxu0 0.0
        %924 = vmatprep.subr.mxu0 0.0
        %925 = vmatpush1.msra.mxu0 0.0
        %926 = vmatprep.subr.mxu0 0.0
        %927 = vmatpush1.msra.mxu0 0.0
        %928 = vmatprep.subr.mxu0 0.0
        %929 = vmatpush1.msra.mxu0 0.0
        %930 = vmatprep.subr.mxu0 0.0
        %931 = vmatpush1.msra.mxu0 0.0
        %932 = vmatprep.subr.mxu0 0.0
        %933 = vmatpush1.msra.mxu0 0.0
        %934 = vmatprep.subr.mxu0 0.0
        %935 = vmatpush1.msra.mxu0 0.0
        %936 = vmatprep.subr.mxu0 0.0
        %937 = vmatpush1.msra.mxu0 0.0
        %938 = vmatprep.subr.mxu0 0.0
        %939 = vmatpush1.msra.mxu0 0.0
        %940 = vmatprep.subr.mxu0 0.0
        %941 = vmatpush1.msra.mxu0 0.0
        %942 = vmatprep.subr.mxu0 0.0
        %943 = vmatpush1.msra.mxu0 0.0
        %944 = vmatprep.subr.mxu0 0.0
        %945 = vmatpush1.msra.mxu0 0.0
        %946 = vmatprep.subr.mxu0 0.0
        %947 = vmatpush1.msra.mxu0 0.0
        %948 = vmatprep.mubr.f32.mxu0 0.0
        %v949 = vand.u32 %v280, 4294901760
        %950 = vmatmul.mubr.f32.gmra.mrb[0].mxu0 %v949
        %v951 = vpop.f32.mrb[0].mxu0
        %v952 = vadd.f32 %v861, %v951
        %v953 = vpop.f32.mrb[0].mxu0
        %954 = vmatprep.mubr.f32.mxu0 0.0
        %v955 = vand.u32 %v283, 4294901760
        %956 = vmatmul.mubr.f32.gmra.mrb[0].mxu0 %v955
        %v957 = vpop.f32.mrb[0].mxu0
        %v958 = vadd.f32 %v871, %v957
        %v959 = vpop.f32.mrb[0].mxu0
        %960 = vdwg.mxu0
        %961 = vmatprep.subr.mxu0 0.0
        %v962 = vand.u32 %v268, 4294901760
        %v963 = vsub.f32 %v268, %v962
        %964 = vmatpush1.msra.mxu0 %v963
        %965 = vmatprep.subr.mxu0 0.0
        %v966 = vand.u32 %v269, 4294901760
        %v967 = vsub.f32 %v269, %v966
        %968 = vmatpush1.msra.mxu0 %v967
        %969 = vmatprep.subr.mxu0 0.0
        %970 = vmatpush1.msra.mxu0 0.0
        %971 = vmatprep.subr.mxu0 0.0
        %972 = vmatpush1.msra.mxu0 0.0
        %973 = vmatprep.subr.mxu0 0.0
        %974 = vmatpush1.msra.mxu0 0.0
        %975 = vmatprep.subr.mxu0 0.0
        %976 = vmatpush1.msra.mxu0 0.0
        %977 = vmatprep.subr.mxu0 0.0
        %978 = vmatpush1.msra.mxu0 0.0
        %979 = vmatprep.subr.mxu0 0.0
        %980 = vmatpush1.msra.mxu0 0.0
        %981 = vmatprep.subr.mxu0 0.0
        %982 = vmatpush1.msra.mxu0 0.0
        %983 = vmatprep.subr.mxu0 0.0
        %984 = vmatpush1.msra.mxu0 0.0
        %985 = vmatprep.subr.mxu0 0.0
        %986 = vmatpush1.msra.mxu0 0.0
        %987 = vmatprep.subr.mxu0 0.0
        %988 = vmatpush1.msra.mxu0 0.0
        %989 = vmatprep.subr.mxu0 0.0
        %990 = vmatpush1.msra.mxu0 0.0
        %991 = vmatprep.subr.mxu0 0.0
        %992 = vmatpush1.msra.mxu0 0.0
        %993 = vmatprep.subr.mxu0 0.0
        %994 = vmatpush1.msra.mxu0 0.0
        %995 = vmatprep.subr.mxu0 0.0
        %996 = vmatpush1.msra.mxu0 0.0
        %997 = vmatprep.subr.mxu0 0.0
        %998 = vmatpush1.msra.mxu0 0.0
        %999 = vmatprep.subr.mxu0 0.0
        %1000 = vmatpush1.msra.mxu0 0.0
        %1001 = vmatprep.subr.mxu0 0.0
        %1002 = vmatpush1.msra.mxu0 0.0
        %1003 = vmatprep.subr.mxu0 0.0
        %1004 = vmatpush1.msra.mxu0 0.0
        %1005 = vmatprep.subr.mxu0 0.0
        %1006 = vmatpush1.msra.mxu0 0.0
        %1007 = vmatprep.subr.mxu0 0.0
        %1008 = vmatpush1.msra.mxu0 0.0
        %1009 = vmatprep.subr.mxu0 0.0
        %1010 = vmatpush1.msra.mxu0 0.0
        %1011 = vmatprep.subr.mxu0 0.0
        %1012 = vmatpush1.msra.mxu0 0.0
        %1013 = vmatprep.subr.mxu0 0.0
        %1014 = vmatpush1.msra.mxu0 0.0
        %1015 = vmatprep.subr.mxu0 0.0
        %1016 = vmatpush1.msra.mxu0 0.0
        %1017 = vmatprep.subr.mxu0 0.0
        %1018 = vmatpush1.msra.mxu0 0.0
        %1019 = vmatprep.subr.mxu0 0.0
        %1020 = vmatpush1.msra.mxu0 0.0
        %1021 = vmatprep.subr.mxu0 0.0
        %1022 = vmatpush1.msra.mxu0 0.0
        %1023 = vmatprep.subr.mxu0 0.0
        %1024 = vmatpush1.msra.mxu0 0.0
        %1025 = vmatprep.subr.mxu0 0.0
        %1026 = vmatpush1.msra.mxu0 0.0
        %1027 = vmatprep.subr.mxu0 0.0
        %1028 = vmatpush1.msra.mxu0 0.0
        %1029 = vmatprep.mubr.f32.mxu0 0.0
        %v1030 = vand.u32 %v280, 4294901760
        %v1031 = vsub.f32 %v280, %v1030
        %1032 = vmatmul.mubr.f32.gmra.mrb[0].mxu0 %v1031
        %v1033 = vpop.f32.mrb[0].mxu0
        %v1034 = vadd.f32 %v952, %v1033
        %v1035 = vpop.f32.mrb[0].mxu0
        %1036 = vmatprep.mubr.f32.mxu0 0.0
        %v1037 = vand.u32 %v283, 4294901760
        %v1038 = vsub.f32 %v283, %v1037
        %1039 = vmatmul.mubr.f32.gmra.mrb[0].mxu0 %v1038
        %v1040 = vpop.f32.mrb[0].mxu0
        %v1041 = vadd.f32 %v958, %v1040
        %v1042 = vpop.f32.mrb[0].mxu0
        %1043 = vdwg.mxu0
        %1044 = vmatprep.subr.mxu0 0.0
        %v1045 = vand.u32 %v268, 4294901760
        %1046 = vmatpush1.msra.mxu0 %v1045
        %1047 = vmatprep.subr.mxu0 0.0
        %v1048 = vand.u32 %v269, 4294901760
        %1049 = vmatpush1.msra.mxu0 %v1048
        %1050 = vmatprep.subr.mxu0 0.0
        %1051 = vmatpush1.msra.mxu0 0.0
        %1052 = vmatprep.subr.mxu0 0.0
        %1053 = vmatpush1.msra.mxu0 0.0
        %1054 = vmatprep.subr.mxu0 0.0
        %1055 = vmatpush1.msra.mxu0 0.0
        %1056 = vmatprep.subr.mxu0 0.0
        %1057 = vmatpush1.msra.mxu0 0.0
        %1058 = vmatprep.subr.mxu0 0.0
        %1059 = vmatpush1.msra.mxu0 0.0
        %1060 = vmatprep.subr.mxu0 0.0
        %1061 = vmatpush1.msra.mxu0 0.0
        %1062 = vmatprep.subr.mxu0 0.0
        %1063 = vmatpush1.msra.mxu0 0.0
        %1064 = vmatprep.subr.mxu0 0.0
        %1065 = vmatpush1.msra.mxu0 0.0
        %1066 = vmatprep.subr.mxu0 0.0
        %1067 = vmatpush1.msra.mxu0 0.0
        %1068 = vmatprep.subr.mxu0 0.0
        %1069 = vmatpush1.msra.mxu0 0.0
        %1070 = vmatprep.subr.mxu0 0.0
        %1071 = vmatpush1.msra.mxu0 0.0
        %1072 = vmatprep.subr.mxu0 0.0
        %1073 = vmatpush1.msra.mxu0 0.0
        %1074 = vmatprep.subr.mxu0 0.0
        %1075 = vmatpush1.msra.mxu0 0.0
        %1076 = vmatprep.subr.mxu0 0.0
        %1077 = vmatpush1.msra.mxu0 0.0
        %1078 = vmatprep.subr.mxu0 0.0
        %1079 = vmatpush1.msra.mxu0 0.0
        %1080 = vmatprep.subr.mxu0 0.0
        %1081 = vmatpush1.msra.mxu0 0.0
        %1082 = vmatprep.subr.mxu0 0.0
        %1083 = vmatpush1.msra.mxu0 0.0
        %1084 = vmatprep.subr.mxu0 0.0
        %1085 = vmatpush1.msra.mxu0 0.0
        %1086 = vmatprep.subr.mxu0 0.0
        %1087 = vmatpush1.msra.mxu0 0.0
        %1088 = vmatprep.subr.mxu0 0.0
        %1089 = vmatpush1.msra.mxu0 0.0
        %1090 = vmatprep.subr.mxu0 0.0
        %1091 = vmatpush1.msra.mxu0 0.0
        %1092 = vmatprep.subr.mxu0 0.0
        %1093 = vmatpush1.msra.mxu0 0.0
        %1094 = vmatprep.subr.mxu0 0.0
        %1095 = vmatpush1.msra.mxu0 0.0
        %1096 = vmatprep.subr.mxu0 0.0
        %1097 = vmatpush1.msra.mxu0 0.0
        %1098 = vmatprep.subr.mxu0 0.0
        %1099 = vmatpush1.msra.mxu0 0.0
        %1100 = vmatprep.subr.mxu0 0.0
        %1101 = vmatpush1.msra.mxu0 0.0
        %1102 = vmatprep.subr.mxu0 0.0
        %1103 = vmatpush1.msra.mxu0 0.0
        %1104 = vmatprep.subr.mxu0 0.0
        %1105 = vmatpush1.msra.mxu0 0.0
        %1106 = vmatprep.subr.mxu0 0.0
        %1107 = vmatpush1.msra.mxu0 0.0
        %1108 = vmatprep.subr.mxu0 0.0
        %1109 = vmatpush1.msra.mxu0 0.0
        %1110 = vmatprep.mubr.f32.mxu0 0.0
        %v1111 = vand.u32 %v280, 4294901760
        %v1112 = vsub.f32 %v280, %v1111
        %v1113 = vand.u32 %v1112, 4294901760
        %1114 = vmatmul.mubr.f32.gmra.mrb[0].mxu0 %v1113
        %v1115 = vpop.f32.mrb[0].mxu0
        %v1116 = vadd.f32 %v1034, %v1115
        %v1117 = vpop.f32.mrb[0].mxu0
        %1118 = vmatprep.mubr.f32.mxu0 0.0
        %v1119 = vand.u32 %v283, 4294901760
        %v1120 = vsub.f32 %v283, %v1119
        %v1121 = vand.u32 %v1120, 4294901760
        %1122 = vmatmul.mubr.f32.gmra.mrb[0].mxu0 %v1121
        %v1123 = vpop.f32.mrb[0].mxu0
        %v1124 = vadd.f32 %v1041, %v1123
        %v1125 = vpop.f32.mrb[0].mxu0
        %1126 = vdwg.mxu0
        %1127 = vmatprep.subr.mxu0 0.0
        %v1128 = vand.u32 %v268, 4294901760
        %v1129 = vsub.f32 %v268, %v1128
        %v1130 = vand.u32 %v1129, 4294901760
        %1131 = vmatpush1.msra.mxu0 %v1130
        %1132 = vmatprep.subr.mxu0 0.0
        %v1133 = vand.u32 %v269, 4294901760
        %v1134 = vsub.f32 %v269, %v1133
        %v1135 = vand.u32 %v1134, 4294901760
        %1136 = vmatpush1.msra.mxu0 %v1135
        %1137 = vmatprep.subr.mxu0 0.0
        %1138 = vmatpush1.msra.mxu0 0.0
        %1139 = vmatprep.subr.mxu0 0.0
        %1140 = vmatpush1.msra.mxu0 0.0
        %1141 = vmatprep.subr.mxu0 0.0
        %1142 = vmatpush1.msra.mxu0 0.0
        %1143 = vmatprep.subr.mxu0 0.0
        %1144 = vmatpush1.msra.mxu0 0.0
        %1145 = vmatprep.subr.mxu0 0.0
        %1146 = vmatpush1.msra.mxu0 0.0
        %1147 = vmatprep.subr.mxu0 0.0
        %1148 = vmatpush1.msra.mxu0 0.0
        %1149 = vmatprep.subr.mxu0 0.0
        %1150 = vmatpush1.msra.mxu0 0.0
        %1151 = vmatprep.subr.mxu0 0.0
        %1152 = vmatpush1.msra.mxu0 0.0
        %1153 = vmatprep.subr.mxu0 0.0
        %1154 = vmatpush1.msra.mxu0 0.0
        %1155 = vmatprep.subr.mxu0 0.0
        %1156 = vmatpush1.msra.mxu0 0.0
        %1157 = vmatprep.subr.mxu0 0.0
        %1158 = vmatpush1.msra.mxu0 0.0
        %1159 = vmatprep.subr.mxu0 0.0
        %1160 = vmatpush1.msra.mxu0 0.0
        %1161 = vmatprep.subr.mxu0 0.0
        %1162 = vmatpush1.msra.mxu0 0.0
        %1163 = vmatprep.subr.mxu0 0.0
        %1164 = vmatpush1.msra.mxu0 0.0
        %1165 = vmatprep.subr.mxu0 0.0
        %1166 = vmatpush1.msra.mxu0 0.0
        %1167 = vmatprep.subr.mxu0 0.0
        %1168 = vmatpush1.msra.mxu0 0.0
        %1169 = vmatprep.subr.mxu0 0.0
        %1170 = vmatpush1.msra.mxu0 0.0
        %1171 = vmatprep.subr.mxu0 0.0
        %1172 = vmatpush1.msra.mxu0 0.0
        %1173 = vmatprep.subr.mxu0 0.0
        %1174 = vmatpush1.msra.mxu0 0.0
        %1175 = vmatprep.subr.mxu0 0.0
        %1176 = vmatpush1.msra.mxu0 0.0
        %1177 = vmatprep.subr.mxu0 0.0
        %1178 = vmatpush1.msra.mxu0 0.0
        %1179 = vmatprep.subr.mxu0 0.0
        %1180 = vmatpush1.msra.mxu0 0.0
        %1181 = vmatprep.subr.mxu0 0.0
        %1182 = vmatpush1.msra.mxu0 0.0
        %1183 = vmatprep.subr.mxu0 0.0
        %1184 = vmatpush1.msra.mxu0 0.0
        %1185 = vmatprep.subr.mxu0 0.0
        %1186 = vmatpush1.msra.mxu0 0.0
        %1187 = vmatprep.subr.mxu0 0.0
        %1188 = vmatpush1.msra.mxu0 0.0
        %1189 = vmatprep.subr.mxu0 0.0
        %1190 = vmatpush1.msra.mxu0 0.0
        %1191 = vmatprep.subr.mxu0 0.0
        %1192 = vmatpush1.msra.mxu0 0.0
        %1193 = vmatprep.subr.mxu0 0.0
        %1194 = vmatpush1.msra.mxu0 0.0
        %1195 = vmatprep.subr.mxu0 0.0
        %1196 = vmatpush1.msra.mxu0 0.0
        %1197 = vmatprep.mubr.f32.mxu0 0.0
        %v1198 = vand.u32 %v280, 4294901760
        %1199 = vmatmul.mubr.f32.gmra.mrb[0].mxu0 %v1198
        %v1200 = vpop.f32.mrb[0].mxu0
        %v1201 = vadd.f32 %v1116, %v1200
        %v1202 = vpop.f32.mrb[0].mxu0
        %1203 = vmatprep.mubr.f32.mxu0 0.0
        %v1204 = vand.u32 %v283, 4294901760
        %1205 = vmatmul.mubr.f32.gmra.mrb[0].mxu0 %v1204
        %v1206 = vpop.f32.mrb[0].mxu0
        %v1207 = vadd.f32 %v1124, %v1206
        %v1208 = vpop.f32.mrb[0].mxu0
        %1209 = vdwg.mxu0
        %1210 = vmatprep.subr.mxu0 0.0
        %v1211 = vand.u32 %v268, 4294901760
        %1212 = vmatpush1.msra.mxu0 %v1211
        %1213 = vmatprep.subr.mxu0 0.0
        %v1214 = vand.u32 %v269, 4294901760
        %1215 = vmatpush1.msra.mxu0 %v1214
        %1216 = vmatprep.subr.mxu0 0.0
        %1217 = vmatpush1.msra.mxu0 0.0
        %1218 = vmatprep.subr.mxu0 0.0
        %1219 = vmatpush1.msra.mxu0 0.0
        %1220 = vmatprep.subr.mxu0 0.0
        %1221 = vmatpush1.msra.mxu0 0.0
        %1222 = vmatprep.subr.mxu0 0.0
        %1223 = vmatpush1.msra.mxu0 0.0
        %1224 = vmatprep.subr.mxu0 0.0
        %1225 = vmatpush1.msra.mxu0 0.0
        %1226 = vmatprep.subr.mxu0 0.0
        %1227 = vmatpush1.msra.mxu0 0.0
        %1228 = vmatprep.subr.mxu0 0.0
        %1229 = vmatpush1.msra.mxu0 0.0
        %1230 = vmatprep.subr.mxu0 0.0
        %1231 = vmatpush1.msra.mxu0 0.0
        %1232 = vmatprep.subr.mxu0 0.0
        %1233 = vmatpush1.msra.mxu0 0.0
        %1234 = vmatprep.subr.mxu0 0.0
        %1235 = vmatpush1.msra.mxu0 0.0
        %1236 = vmatprep.subr.mxu0 0.0
        %1237 = vmatpush1.msra.mxu0 0.0
        %1238 = vmatprep.subr.mxu0 0.0
        %1239 = vmatpush1.msra.mxu0 0.0
        %1240 = vmatprep.subr.mxu0 0.0
        %1241 = vmatpush1.msra.mxu0 0.0
        %1242 = vmatprep.subr.mxu0 0.0
        %1243 = vmatpush1.msra.mxu0 0.0
        %1244 = vmatprep.subr.mxu0 0.0
        %1245 = vmatpush1.msra.mxu0 0.0
        %1246 = vmatprep.subr.mxu0 0.0
        %1247 = vmatpush1.msra.mxu0 0.0
        %1248 = vmatprep.subr.mxu0 0.0
        %1249 = vmatpush1.msra.mxu0 0.0
        %1250 = vmatprep.subr.mxu0 0.0
        %1251 = vmatpush1.msra.mxu0 0.0
        %1252 = vmatprep.subr.mxu0 0.0
        %1253 = vmatpush1.msra.mxu0 0.0
        %1254 = vmatprep.subr.mxu0 0.0
        %1255 = vmatpush1.msra.mxu0 0.0
        %1256 = vmatprep.subr.mxu0 0.0
        %1257 = vmatpush1.msra.mxu0 0.0
        %1258 = vmatprep.subr.mxu0 0.0
        %1259 = vmatpush1.msra.mxu0 0.0
        %1260 = vmatprep.subr.mxu0 0.0
        %1261 = vmatpush1.msra.mxu0 0.0
        %1262 = vmatprep.subr.mxu0 0.0
        %1263 = vmatpush1.msra.mxu0 0.0
        %1264 = vmatprep.subr.mxu0 0.0
        %1265 = vmatpush1.msra.mxu0 0.0
        %1266 = vmatprep.subr.mxu0 0.0
        %1267 = vmatpush1.msra.mxu0 0.0
        %1268 = vmatprep.subr.mxu0 0.0
        %1269 = vmatpush1.msra.mxu0 0.0
        %1270 = vmatprep.subr.mxu0 0.0
        %1271 = vmatpush1.msra.mxu0 0.0
        %1272 = vmatprep.subr.mxu0 0.0
        %1273 = vmatpush1.msra.mxu0 0.0
        %1274 = vmatprep.subr.mxu0 0.0
        %1275 = vmatpush1.msra.mxu0 0.0
        %1276 = vmatprep.mubr.f32.mxu0 0.0
        %v1277 = vand.u32 %v280, 4294901760
        %1278 = vmatmul.mubr.f32.gmra.mrb[0].mxu0 %v1277
        %v1279 = vpop.f32.mrb[0].mxu0
        %v1280 = vadd.f32 %v1201, %v1279
        %v1281 = vpop.f32.mrb[0].mxu0
        %1282 = vmatprep.mubr.f32.mxu0 0.0
        %v1283 = vand.u32 %v283, 4294901760
        %1284 = vmatmul.mubr.f32.gmra.mrb[0].mxu0 %v1283
        %v1285 = vpop.f32.mrb[0].mxu0
        %v1286 = vadd.f32 %v1207, %v1285
        %v1287 = vpop.f32.mrb[0].mxu0
        %1288 = vdwg.mxu0
        %1289 = vmatprep.subr.mxu0 0.0
        %v1290 = vand.u32 %v270, 4294901760
        %1291 = vmatpush1.msra.mxu0 %v1290
        %1292 = vmatprep.subr.mxu0 0.0
        %v1293 = vand.u32 %v271, 4294901760
        %1294 = vmatpush1.msra.mxu0 %v1293
        %1295 = vmatprep.subr.mxu0 0.0
        %1296 = vmatpush1.msra.mxu0 0.0
        %1297 = vmatprep.subr.mxu0 0.0
        %1298 = vmatpush1.msra.mxu0 0.0
        %1299 = vmatprep.subr.mxu0 0.0
        %1300 = vmatpush1.msra.mxu0 0.0
        %1301 = vmatprep.subr.mxu0 0.0
        %1302 = vmatpush1.msra.mxu0 0.0
        %1303 = vmatprep.subr.mxu0 0.0
        %1304 = vmatpush1.msra.mxu0 0.0
        %1305 = vmatprep.subr.mxu0 0.0
        %1306 = vmatpush1.msra.mxu0 0.0
        %1307 = vmatprep.subr.mxu0 0.0
        %1308 = vmatpush1.msra.mxu0 0.0
        %1309 = vmatprep.subr.mxu0 0.0
        %1310 = vmatpush1.msra.mxu0 0.0
        %1311 = vmatprep.subr.mxu0 0.0
        %1312 = vmatpush1.msra.mxu0 0.0
        %1313 = vmatprep.subr.mxu0 0.0
        %1314 = vmatpush1.msra.mxu0 0.0
        %1315 = vmatprep.subr.mxu0 0.0
        %1316 = vmatpush1.msra.mxu0 0.0
        %1317 = vmatprep.subr.mxu0 0.0
        %1318 = vmatpush1.msra.mxu0 0.0
        %1319 = vmatprep.subr.mxu0 0.0
        %1320 = vmatpush1.msra.mxu0 0.0
        %1321 = vmatprep.subr.mxu0 0.0
        %1322 = vmatpush1.msra.mxu0 0.0
        %1323 = vmatprep.subr.mxu0 0.0
        %1324 = vmatpush1.msra.mxu0 0.0
        %1325 = vmatprep.subr.mxu0 0.0
        %1326 = vmatpush1.msra.mxu0 0.0
        %1327 = vmatprep.subr.mxu0 0.0
        %1328 = vmatpush1.msra.mxu0 0.0
        %1329 = vmatprep.subr.mxu0 0.0
        %1330 = vmatpush1.msra.mxu0 0.0
        %1331 = vmatprep.subr.mxu0 0.0
        %1332 = vmatpush1.msra.mxu0 0.0
        %1333 = vmatprep.subr.mxu0 0.0
        %1334 = vmatpush1.msra.mxu0 0.0
        %1335 = vmatprep.subr.mxu0 0.0
        %1336 = vmatpush1.msra.mxu0 0.0
        %1337 = vmatprep.subr.mxu0 0.0
        %1338 = vmatpush1.msra.mxu0 0.0
        %1339 = vmatprep.subr.mxu0 0.0
        %1340 = vmatpush1.msra.mxu0 0.0
        %1341 = vmatprep.subr.mxu0 0.0
        %1342 = vmatpush1.msra.mxu0 0.0
        %1343 = vmatprep.subr.mxu0 0.0
        %1344 = vmatpush1.msra.mxu0 0.0
        %1345 = vmatprep.subr.mxu0 0.0
        %1346 = vmatpush1.msra.mxu0 0.0
        %1347 = vmatprep.subr.mxu0 0.0
        %1348 = vmatpush1.msra.mxu0 0.0
        %1349 = vmatprep.subr.mxu0 0.0
        %1350 = vmatpush1.msra.mxu0 0.0
        %1351 = vmatprep.subr.mxu0 0.0
        %1352 = vmatpush1.msra.mxu0 0.0
        %1353 = vmatprep.subr.mxu0 0.0
        %1354 = vmatpush1.msra.mxu0 0.0
        %1355 = vmatprep.mubr.f32.mxu0 0.0
        %v1356 = vand.u32 %v280, 4294901760
        %v1357 = vsub.f32 %v280, %v1356
        %v1358 = vand.u32 %v1357, 4294901760
        %v1359 = vsub.f32 %v1357, %v1358
        %v1360 = vand.u32 %v1359, 4294901760
        %1361 = vmatmul.mubr.f32.gmra.mrb[0].mxu0 %v1360
        %v1362 = vpop.f32.mrb[0].mxu0
        %v1363 = vadd.f32 0.0, %v1362
        %v1364 = vpop.f32.mrb[0].mxu0
        %1365 = vmatprep.mubr.f32.mxu0 0.0
        %v1366 = vand.u32 %v283, 4294901760
        %v1367 = vsub.f32 %v283, %v1366
        %v1368 = vand.u32 %v1367, 4294901760
        %v1369 = vsub.f32 %v1367, %v1368
        %v1370 = vand.u32 %v1369, 4294901760
        %1371 = vmatmul.mubr.f32.gmra.mrb[0].mxu0 %v1370
        %v1372 = vpop.f32.mrb[0].mxu0
        %v1373 = vadd.f32 0.0, %v1372
        %v1374 = vpop.f32.mrb[0].mxu0
        %1375 = vdwg.mxu0
        %1376 = vmatprep.subr.mxu0 0.0
        %v1377 = vand.u32 %v270, 4294901760
        %v1378 = vsub.f32 %v270, %v1377
        %v1379 = vand.u32 %v1378, 4294901760
        %v1380 = vsub.f32 %v1378, %v1379
        %v1381 = vand.u32 %v1380, 4294901760
        %1382 = vmatpush1.msra.mxu0 %v1381
        %1383 = vmatprep.subr.mxu0 0.0
        %v1384 = vand.u32 %v271, 4294901760
        %v1385 = vsub.f32 %v271, %v1384
        %v1386 = vand.u32 %v1385, 4294901760
        %v1387 = vsub.f32 %v1385, %v1386
        %v1388 = vand.u32 %v1387, 4294901760
        %1389 = vmatpush1.msra.mxu0 %v1388
        %1390 = vmatprep.subr.mxu0 0.0
        %1391 = vmatpush1.msra.mxu0 0.0
        %1392 = vmatprep.subr.mxu0 0.0
        %1393 = vmatpush1.msra.mxu0 0.0
        %1394 = vmatprep.subr.mxu0 0.0
        %1395 = vmatpush1.msra.mxu0 0.0
        %1396 = vmatprep.subr.mxu0 0.0
        %1397 = vmatpush1.msra.mxu0 0.0
        %1398 = vmatprep.subr.mxu0 0.0
        %1399 = vmatpush1.msra.mxu0 0.0
        %1400 = vmatprep.subr.mxu0 0.0
        %1401 = vmatpush1.msra.mxu0 0.0
        %1402 = vmatprep.subr.mxu0 0.0
        %1403 = vmatpush1.msra.mxu0 0.0
        %1404 = vmatprep.subr.mxu0 0.0
        %1405 = vmatpush1.msra.mxu0 0.0
        %1406 = vmatprep.subr.mxu0 0.0
        %1407 = vmatpush1.msra.mxu0 0.0
        %1408 = vmatprep.subr.mxu0 0.0
        %1409 = vmatpush1.msra.mxu0 0.0
        %1410 = vmatprep.subr.mxu0 0.0
        %1411 = vmatpush1.msra.mxu0 0.0
        %1412 = vmatprep.subr.mxu0 0.0
        %1413 = vmatpush1.msra.mxu0 0.0
        %1414 = vmatprep.subr.mxu0 0.0
        %1415 = vmatpush1.msra.mxu0 0.0
        %1416 = vmatprep.subr.mxu0 0.0
        %1417 = vmatpush1.msra.mxu0 0.0
        %1418 = vmatprep.subr.mxu0 0.0
        %1419 = vmatpush1.msra.mxu0 0.0
        %1420 = vmatprep.subr.mxu0 0.0
        %1421 = vmatpush1.msra.mxu0 0.0
        %1422 = vmatprep.subr.mxu0 0.0
        %1423 = vmatpush1.msra.mxu0 0.0
        %1424 = vmatprep.subr.mxu0 0.0
        %1425 = vmatpush1.msra.mxu0 0.0
        %1426 = vmatprep.subr.mxu0 0.0
        %1427 = vmatpush1.msra.mxu0 0.0
        %1428 = vmatprep.subr.mxu0 0.0
        %1429 = vmatpush1.msra.mxu0 0.0
        %1430 = vmatprep.subr.mxu0 0.0
        %1431 = vmatpush1.msra.mxu0 0.0
        %1432 = vmatprep.subr.mxu0 0.0
        %1433 = vmatpush1.msra.mxu0 0.0
        %1434 = vmatprep.subr.mxu0 0.0
        %1435 = vmatpush1.msra.mxu0 0.0
        %1436 = vmatprep.subr.mxu0 0.0
        %1437 = vmatpush1.msra.mxu0 0.0
        %1438 = vmatprep.subr.mxu0 0.0
        %1439 = vmatpush1.msra.mxu0 0.0
        %1440 = vmatprep.subr.mxu0 0.0
        %1441 = vmatpush1.msra.mxu0 0.0
        %1442 = vmatprep.subr.mxu0 0.0
        %1443 = vmatpush1.msra.mxu0 0.0
        %1444 = vmatprep.subr.mxu0 0.0
        %1445 = vmatpush1.msra.mxu0 0.0
        %1446 = vmatprep.subr.mxu0 0.0
        %1447 = vmatpush1.msra.mxu0 0.0
        %1448 = vmatprep.subr.mxu0 0.0
        %1449 = vmatpush1.msra.mxu0 0.0
        %1450 = vmatprep.mubr.f32.mxu0 0.0
        %v1451 = vand.u32 %v280, 4294901760
        %1452 = vmatmul.mubr.f32.gmra.mrb[0].mxu0 %v1451
        %v1453 = vpop.f32.mrb[0].mxu0
        %v1454 = vadd.f32 %v1363, %v1453
        %v1455 = vpop.f32.mrb[0].mxu0
        %1456 = vmatprep.mubr.f32.mxu0 0.0
        %v1457 = vand.u32 %v283, 4294901760
        %1458 = vmatmul.mubr.f32.gmra.mrb[0].mxu0 %v1457
        %v1459 = vpop.f32.mrb[0].mxu0
        %v1460 = vadd.f32 %v1373, %v1459
        %v1461 = vpop.f32.mrb[0].mxu0
        %1462 = vdwg.mxu0
        %1463 = vmatprep.subr.mxu0 0.0
        %v1464 = vand.u32 %v270, 4294901760
        %v1465 = vsub.f32 %v270, %v1464
        %1466 = vmatpush1.msra.mxu0 %v1465
        %1467 = vmatprep.subr.mxu0 0.0
        %v1468 = vand.u32 %v271, 4294901760
        %v1469 = vsub.f32 %v271, %v1468
        %1470 = vmatpush1.msra.mxu0 %v1469
        %1471 = vmatprep.subr.mxu0 0.0
        %1472 = vmatpush1.msra.mxu0 0.0
        %1473 = vmatprep.subr.mxu0 0.0
        %1474 = vmatpush1.msra.mxu0 0.0
        %1475 = vmatprep.subr.mxu0 0.0
        %1476 = vmatpush1.msra.mxu0 0.0
        %1477 = vmatprep.subr.mxu0 0.0
        %1478 = vmatpush1.msra.mxu0 0.0
        %1479 = vmatprep.subr.mxu0 0.0
        %1480 = vmatpush1.msra.mxu0 0.0
        %1481 = vmatprep.subr.mxu0 0.0
        %1482 = vmatpush1.msra.mxu0 0.0
        %1483 = vmatprep.subr.mxu0 0.0
        %1484 = vmatpush1.msra.mxu0 0.0
        %1485 = vmatprep.subr.mxu0 0.0
        %1486 = vmatpush1.msra.mxu0 0.0
        %1487 = vmatprep.subr.mxu0 0.0
        %1488 = vmatpush1.msra.mxu0 0.0
        %1489 = vmatprep.subr.mxu0 0.0
        %1490 = vmatpush1.msra.mxu0 0.0
        %1491 = vmatprep.subr.mxu0 0.0
        %1492 = vmatpush1.msra.mxu0 0.0
        %1493 = vmatprep.subr.mxu0 0.0
        %1494 = vmatpush1.msra.mxu0 0.0
        %1495 = vmatprep.subr.mxu0 0.0
        %1496 = vmatpush1.msra.mxu0 0.0
        %1497 = vmatprep.subr.mxu0 0.0
        %1498 = vmatpush1.msra.mxu0 0.0
        %1499 = vmatprep.subr.mxu0 0.0
        %1500 = vmatpush1.msra.mxu0 0.0
        %1501 = vmatprep.subr.mxu0 0.0
        %1502 = vmatpush1.msra.mxu0 0.0
        %1503 = vmatprep.subr.mxu0 0.0
        %1504 = vmatpush1.msra.mxu0 0.0
        %1505 = vmatprep.subr.mxu0 0.0
        %1506 = vmatpush1.msra.mxu0 0.0
        %1507 = vmatprep.subr.mxu0 0.0
        %1508 = vmatpush1.msra.mxu0 0.0
        %1509 = vmatprep.subr.mxu0 0.0
        %1510 = vmatpush1.msra.mxu0 0.0
        %1511 = vmatprep.subr.mxu0 0.0
        %1512 = vmatpush1.msra.mxu0 0.0
        %1513 = vmatprep.subr.mxu0 0.0
        %1514 = vmatpush1.msra.mxu0 0.0
        %1515 = vmatprep.subr.mxu0 0.0
        %1516 = vmatpush1.msra.mxu0 0.0
        %1517 = vmatprep.subr.mxu0 0.0
        %1518 = vmatpush1.msra.mxu0 0.0
        %1519 = vmatprep.subr.mxu0 0.0
        %1520 = vmatpush1.msra.mxu0 0.0
        %1521 = vmatprep.subr.mxu0 0.0
        %1522 = vmatpush1.msra.mxu0 0.0
        %1523 = vmatprep.subr.mxu0 0.0
        %1524 = vmatpush1.msra.mxu0 0.0
        %1525 = vmatprep.subr.mxu0 0.0
        %1526 = vmatpush1.msra.mxu0 0.0
        %1527 = vmatprep.subr.mxu0 0.0
        %1528 = vmatpush1.msra.mxu0 0.0
        %1529 = vmatprep.subr.mxu0 0.0
        %1530 = vmatpush1.msra.mxu0 0.0
        %1531 = vmatprep.mubr.f32.mxu0 0.0
        %v1532 = vand.u32 %v280, 4294901760
        %v1533 = vsub.f32 %v280, %v1532
        %1534 = vmatmul.mubr.f32.gmra.mrb[0].mxu0 %v1533
        %v1535 = vpop.f32.mrb[0].mxu0
        %v1536 = vadd.f32 %v1454, %v1535
        %v1537 = vpop.f32.mrb[0].mxu0
        %1538 = vmatprep.mubr.f32.mxu0 0.0
        %v1539 = vand.u32 %v283, 4294901760
        %v1540 = vsub.f32 %v283, %v1539
        %1541 = vmatmul.mubr.f32.gmra.mrb[0].mxu0 %v1540
        %v1542 = vpop.f32.mrb[0].mxu0
        %v1543 = vadd.f32 %v1460, %v1542
        %v1544 = vpop.f32.mrb[0].mxu0
        %1545 = vdwg.mxu0
        %1546 = vmatprep.subr.mxu0 0.0
        %v1547 = vand.u32 %v270, 4294901760
        %1548 = vmatpush1.msra.mxu0 %v1547
        %1549 = vmatprep.subr.mxu0 0.0
        %v1550 = vand.u32 %v271, 4294901760
        %1551 = vmatpush1.msra.mxu0 %v1550
        %1552 = vmatprep.subr.mxu0 0.0
        %1553 = vmatpush1.msra.mxu0 0.0
        %1554 = vmatprep.subr.mxu0 0.0
        %1555 = vmatpush1.msra.mxu0 0.0
        %1556 = vmatprep.subr.mxu0 0.0
        %1557 = vmatpush1.msra.mxu0 0.0
        %1558 = vmatprep.subr.mxu0 0.0
        %1559 = vmatpush1.msra.mxu0 0.0
        %1560 = vmatprep.subr.mxu0 0.0
        %1561 = vmatpush1.msra.mxu0 0.0
        %1562 = vmatprep.subr.mxu0 0.0
        %1563 = vmatpush1.msra.mxu0 0.0
        %1564 = vmatprep.subr.mxu0 0.0
        %1565 = vmatpush1.msra.mxu0 0.0
        %1566 = vmatprep.subr.mxu0 0.0
        %1567 = vmatpush1.msra.mxu0 0.0
        %1568 = vmatprep.subr.mxu0 0.0
        %1569 = vmatpush1.msra.mxu0 0.0
        %1570 = vmatprep.subr.mxu0 0.0
        %1571 = vmatpush1.msra.mxu0 0.0
        %1572 = vmatprep.subr.mxu0 0.0
        %1573 = vmatpush1.msra.mxu0 0.0
        %1574 = vmatprep.subr.mxu0 0.0
        %1575 = vmatpush1.msra.mxu0 0.0
        %1576 = vmatprep.subr.mxu0 0.0
        %1577 = vmatpush1.msra.mxu0 0.0
        %1578 = vmatprep.subr.mxu0 0.0
        %1579 = vmatpush1.msra.mxu0 0.0
        %1580 = vmatprep.subr.mxu0 0.0
        %1581 = vmatpush1.msra.mxu0 0.0
        %1582 = vmatprep.subr.mxu0 0.0
        %1583 = vmatpush1.msra.mxu0 0.0
        %1584 = vmatprep.subr.mxu0 0.0
        %1585 = vmatpush1.msra.mxu0 0.0
        %1586 = vmatprep.subr.mxu0 0.0
        %1587 = vmatpush1.msra.mxu0 0.0
        %1588 = vmatprep.subr.mxu0 0.0
        %1589 = vmatpush1.msra.mxu0 0.0
        %1590 = vmatprep.subr.mxu0 0.0
        %1591 = vmatpush1.msra.mxu0 0.0
        %1592 = vmatprep.subr.mxu0 0.0
        %1593 = vmatpush1.msra.mxu0 0.0
        %1594 = vmatprep.subr.mxu0 0.0
        %1595 = vmatpush1.msra.mxu0 0.0
        %1596 = vmatprep.subr.mxu0 0.0
        %1597 = vmatpush1.msra.mxu0 0.0
        %1598 = vmatprep.subr.mxu0 0.0
        %1599 = vmatpush1.msra.mxu0 0.0
        %1600 = vmatprep.subr.mxu0 0.0
        %1601 = vmatpush1.msra.mxu0 0.0
        %1602 = vmatprep.subr.mxu0 0.0
        %1603 = vmatpush1.msra.mxu0 0.0
        %1604 = vmatprep.subr.mxu0 0.0
        %1605 = vmatpush1.msra.mxu0 0.0
        %1606 = vmatprep.subr.mxu0 0.0
        %1607 = vmatpush1.msra.mxu0 0.0
        %1608 = vmatprep.subr.mxu0 0.0
        %1609 = vmatpush1.msra.mxu0 0.0
        %1610 = vmatprep.subr.mxu0 0.0
        %1611 = vmatpush1.msra.mxu0 0.0
        %1612 = vmatprep.mubr.f32.mxu0 0.0
        %v1613 = vand.u32 %v280, 4294901760
        %v1614 = vsub.f32 %v280, %v1613
        %v1615 = vand.u32 %v1614, 4294901760
        %1616 = vmatmul.mubr.f32.gmra.mrb[0].mxu0 %v1615
        %v1617 = vpop.f32.mrb[0].mxu0
        %v1618 = vadd.f32 %v1536, %v1617
        %v1619 = vpop.f32.mrb[0].mxu0
        %1620 = vmatprep.mubr.f32.mxu0 0.0
        %v1621 = vand.u32 %v283, 4294901760
        %v1622 = vsub.f32 %v283, %v1621
        %v1623 = vand.u32 %v1622, 4294901760
        %1624 = vmatmul.mubr.f32.gmra.mrb[0].mxu0 %v1623
        %v1625 = vpop.f32.mrb[0].mxu0
        %v1626 = vadd.f32 %v1543, %v1625
        %v1627 = vpop.f32.mrb[0].mxu0
        %1628 = vdwg.mxu0
        %1629 = vmatprep.subr.mxu0 0.0
        %v1630 = vand.u32 %v270, 4294901760
        %v1631 = vsub.f32 %v270, %v1630
        %v1632 = vand.u32 %v1631, 4294901760
        %1633 = vmatpush1.msra.mxu0 %v1632
        %1634 = vmatprep.subr.mxu0 0.0
        %v1635 = vand.u32 %v271, 4294901760
        %v1636 = vsub.f32 %v271, %v1635
        %v1637 = vand.u32 %v1636, 4294901760
        %1638 = vmatpush1.msra.mxu0 %v1637
        %1639 = vmatprep.subr.mxu0 0.0
        %1640 = vmatpush1.msra.mxu0 0.0
        %1641 = vmatprep.subr.mxu0 0.0
        %1642 = vmatpush1.msra.mxu0 0.0
        %1643 = vmatprep.subr.mxu0 0.0
        %1644 = vmatpush1.msra.mxu0 0.0
        %1645 = vmatprep.subr.mxu0 0.0
        %1646 = vmatpush1.msra.mxu0 0.0
        %1647 = vmatprep.subr.mxu0 0.0
        %1648 = vmatpush1.msra.mxu0 0.0
        %1649 = vmatprep.subr.mxu0 0.0
        %1650 = vmatpush1.msra.mxu0 0.0
        %1651 = vmatprep.subr.mxu0 0.0
        %1652 = vmatpush1.msra.mxu0 0.0
        %1653 = vmatprep.subr.mxu0 0.0
        %1654 = vmatpush1.msra.mxu0 0.0
        %1655 = vmatprep.subr.mxu0 0.0
        %1656 = vmatpush1.msra.mxu0 0.0
        %1657 = vmatprep.subr.mxu0 0.0
        %1658 = vmatpush1.msra.mxu0 0.0
        %1659 = vmatprep.subr.mxu0 0.0
        %1660 = vmatpush1.msra.mxu0 0.0
        %1661 = vmatprep.subr.mxu0 0.0
        %1662 = vmatpush1.msra.mxu0 0.0
        %1663 = vmatprep.subr.mxu0 0.0
        %1664 = vmatpush1.msra.mxu0 0.0
        %1665 = vmatprep.subr.mxu0 0.0
        %1666 = vmatpush1.msra.mxu0 0.0
        %1667 = vmatprep.subr.mxu0 0.0
        %1668 = vmatpush1.msra.mxu0 0.0
        %1669 = vmatprep.subr.mxu0 0.0
        %1670 = vmatpush1.msra.mxu0 0.0
        %1671 = vmatprep.subr.mxu0 0.0
        %1672 = vmatpush1.msra.mxu0 0.0
        %1673 = vmatprep.subr.mxu0 0.0
        %1674 = vmatpush1.msra.mxu0 0.0
        %1675 = vmatprep.subr.mxu0 0.0
        %1676 = vmatpush1.msra.mxu0 0.0
        %1677 = vmatprep.subr.mxu0 0.0
        %1678 = vmatpush1.msra.mxu0 0.0
        %1679 = vmatprep.subr.mxu0 0.0
        %1680 = vmatpush1.msra.mxu0 0.0
        %1681 = vmatprep.subr.mxu0 0.0
        %1682 = vmatpush1.msra.mxu0 0.0
        %1683 = vmatprep.subr.mxu0 0.0
        %1684 = vmatpush1.msra.mxu0 0.0
        %1685 = vmatprep.subr.mxu0 0.0
        %1686 = vmatpush1.msra.mxu0 0.0
        %1687 = vmatprep.subr.mxu0 0.0
        %1688 = vmatpush1.msra.mxu0 0.0
        %1689 = vmatprep.subr.mxu0 0.0
        %1690 = vmatpush1.msra.mxu0 0.0
        %1691 = vmatprep.subr.mxu0 0.0
        %1692 = vmatpush1.msra.mxu0 0.0
        %1693 = vmatprep.subr.mxu0 0.0
        %1694 = vmatpush1.msra.mxu0 0.0
        %1695 = vmatprep.subr.mxu0 0.0
        %1696 = vmatpush1.msra.mxu0 0.0
        %1697 = vmatprep.subr.mxu0 0.0
        %1698 = vmatpush1.msra.mxu0 0.0
        %1699 = vmatprep.mubr.f32.mxu0 0.0
        %v1700 = vand.u32 %v280, 4294901760
        %1701 = vmatmul.mubr.f32.gmra.mrb[0].mxu0 %v1700
        %v1702 = vpop.f32.mrb[0].mxu0
        %v1703 = vadd.f32 %v1618, %v1702
        %v1704 = vpop.f32.mrb[0].mxu0
        %1705 = vmatprep.mubr.f32.mxu0 0.0
        %v1706 = vand.u32 %v283, 4294901760
        %1707 = vmatmul.mubr.f32.gmra.mrb[0].mxu0 %v1706
        %v1708 = vpop.f32.mrb[0].mxu0
        %v1709 = vadd.f32 %v1626, %v1708
        %v1710 = vpop.f32.mrb[0].mxu0
        %1711 = vdwg.mxu0
        %1712 = vmatprep.subr.mxu0 0.0
        %v1713 = vand.u32 %v270, 4294901760
        %1714 = vmatpush1.msra.mxu0 %v1713
        %1715 = vmatprep.subr.mxu0 0.0
        %v1716 = vand.u32 %v271, 4294901760
        %1717 = vmatpush1.msra.mxu0 %v1716
        %1718 = vmatprep.subr.mxu0 0.0
        %1719 = vmatpush1.msra.mxu0 0.0
        %1720 = vmatprep.subr.mxu0 0.0
        %1721 = vmatpush1.msra.mxu0 0.0
        %1722 = vmatprep.subr.mxu0 0.0
        %1723 = vmatpush1.msra.mxu0 0.0
        %1724 = vmatprep.subr.mxu0 0.0
        %1725 = vmatpush1.msra.mxu0 0.0
        %1726 = vmatprep.subr.mxu0 0.0
        %1727 = vmatpush1.msra.mxu0 0.0
        %1728 = vmatprep.subr.mxu0 0.0
        %1729 = vmatpush1.msra.mxu0 0.0
        %1730 = vmatprep.subr.mxu0 0.0
        %1731 = vmatpush1.msra.mxu0 0.0
        %1732 = vmatprep.subr.mxu0 0.0
        %1733 = vmatpush1.msra.mxu0 0.0
        %1734 = vmatprep.subr.mxu0 0.0
        %1735 = vmatpush1.msra.mxu0 0.0
        %1736 = vmatprep.subr.mxu0 0.0
        %1737 = vmatpush1.msra.mxu0 0.0
        %1738 = vmatprep.subr.mxu0 0.0
        %1739 = vmatpush1.msra.mxu0 0.0
        %1740 = vmatprep.subr.mxu0 0.0
        %1741 = vmatpush1.msra.mxu0 0.0
        %1742 = vmatprep.subr.mxu0 0.0
        %1743 = vmatpush1.msra.mxu0 0.0
        %1744 = vmatprep.subr.mxu0 0.0
        %1745 = vmatpush1.msra.mxu0 0.0
        %1746 = vmatprep.subr.mxu0 0.0
        %1747 = vmatpush1.msra.mxu0 0.0
        %1748 = vmatprep.subr.mxu0 0.0
        %1749 = vmatpush1.msra.mxu0 0.0
        %1750 = vmatprep.subr.mxu0 0.0
        %1751 = vmatpush1.msra.mxu0 0.0
        %1752 = vmatprep.subr.mxu0 0.0
        %1753 = vmatpush1.msra.mxu0 0.0
        %1754 = vmatprep.subr.mxu0 0.0
        %1755 = vmatpush1.msra.mxu0 0.0
        %1756 = vmatprep.subr.mxu0 0.0
        %1757 = vmatpush1.msra.mxu0 0.0
        %1758 = vmatprep.subr.mxu0 0.0
        %1759 = vmatpush1.msra.mxu0 0.0
        %1760 = vmatprep.subr.mxu0 0.0
        %1761 = vmatpush1.msra.mxu0 0.0
        %1762 = vmatprep.subr.mxu0 0.0
        %1763 = vmatpush1.msra.mxu0 0.0
        %1764 = vmatprep.subr.mxu0 0.0
        %1765 = vmatpush1.msra.mxu0 0.0
        %1766 = vmatprep.subr.mxu0 0.0
        %1767 = vmatpush1.msra.mxu0 0.0
        %1768 = vmatprep.subr.mxu0 0.0
        %1769 = vmatpush1.msra.mxu0 0.0
        %1770 = vmatprep.subr.mxu0 0.0
        %1771 = vmatpush1.msra.mxu0 0.0
        %1772 = vmatprep.subr.mxu0 0.0
        %1773 = vmatpush1.msra.mxu0 0.0
        %1774 = vmatprep.subr.mxu0 0.0
        %1775 = vmatpush1.msra.mxu0 0.0
        %1776 = vmatprep.subr.mxu0 0.0
        %1777 = vmatpush1.msra.mxu0 0.0
        %1778 = vmatprep.mubr.f32.mxu0 0.0
        %v1779 = vand.u32 %v280, 4294901760
        %1780 = vmatmul.mubr.f32.gmra.mrb[0].mxu0 %v1779
        %v1781 = vpop.f32.mrb[0].mxu0
        %v1782 = vadd.f32 %v1703, %v1781
        %v1783 = vpop.f32.mrb[0].mxu0
        %1784 = vmatprep.mubr.f32.mxu0 0.0
        %v1785 = vand.u32 %v283, 4294901760
        %1786 = vmatmul.mubr.f32.gmra.mrb[0].mxu0 %v1785
        %v1787 = vpop.f32.mrb[0].mxu0
        %v1788 = vadd.f32 %v1709, %v1787
        %v1789 = vpop.f32.mrb[0].mxu0
        %1790 = vdwg.mxu0
        %1791 = vmatprep.subr.mxu0 0.0
        %v1792 = vand.u32 %v272, 4294901760
        %1793 = vmatpush1.msra.mxu0 %v1792
        %1794 = vmatprep.subr.mxu0 0.0
        %v1795 = vand.u32 %v273, 4294901760
        %1796 = vmatpush1.msra.mxu0 %v1795
        %1797 = vmatprep.subr.mxu0 0.0
        %1798 = vmatpush1.msra.mxu0 0.0
        %1799 = vmatprep.subr.mxu0 0.0
        %1800 = vmatpush1.msra.mxu0 0.0
        %1801 = vmatprep.subr.mxu0 0.0
        %1802 = vmatpush1.msra.mxu0 0.0
        %1803 = vmatprep.subr.mxu0 0.0
        %1804 = vmatpush1.msra.mxu0 0.0
        %1805 = vmatprep.subr.mxu0 0.0
        %1806 = vmatpush1.msra.mxu0 0.0
        %1807 = vmatprep.subr.mxu0 0.0
        %1808 = vmatpush1.msra.mxu0 0.0
        %1809 = vmatprep.subr.mxu0 0.0
        %1810 = vmatpush1.msra.mxu0 0.0
        %1811 = vmatprep.subr.mxu0 0.0
        %1812 = vmatpush1.msra.mxu0 0.0
        %1813 = vmatprep.subr.mxu0 0.0
        %1814 = vmatpush1.msra.mxu0 0.0
        %1815 = vmatprep.subr.mxu0 0.0
        %1816 = vmatpush1.msra.mxu0 0.0
        %1817 = vmatprep.subr.mxu0 0.0
        %1818 = vmatpush1.msra.mxu0 0.0
        %1819 = vmatprep.subr.mxu0 0.0
        %1820 = vmatpush1.msra.mxu0 0.0
        %1821 = vmatprep.subr.mxu0 0.0
        %1822 = vmatpush1.msra.mxu0 0.0
        %1823 = vmatprep.subr.mxu0 0.0
        %1824 = vmatpush1.msra.mxu0 0.0
        %1825 = vmatprep.subr.mxu0 0.0
        %1826 = vmatpush1.msra.mxu0 0.0
        %1827 = vmatprep.subr.mxu0 0.0
        %1828 = vmatpush1.msra.mxu0 0.0
        %1829 = vmatprep.subr.mxu0 0.0
        %1830 = vmatpush1.msra.mxu0 0.0
        %1831 = vmatprep.subr.mxu0 0.0
        %1832 = vmatpush1.msra.mxu0 0.0
        %1833 = vmatprep.subr.mxu0 0.0
        %1834 = vmatpush1.msra.mxu0 0.0
        %1835 = vmatprep.subr.mxu0 0.0
        %1836 = vmatpush1.msra.mxu0 0.0
        %1837 = vmatprep.subr.mxu0 0.0
        %1838 = vmatpush1.msra.mxu0 0.0
        %1839 = vmatprep.subr.mxu0 0.0
        %1840 = vmatpush1.msra.mxu0 0.0
        %1841 = vmatprep.subr.mxu0 0.0
        %1842 = vmatpush1.msra.mxu0 0.0
        %1843 = vmatprep.subr.mxu0 0.0
        %1844 = vmatpush1.msra.mxu0 0.0
        %1845 = vmatprep.subr.mxu0 0.0
        %1846 = vmatpush1.msra.mxu0 0.0
        %1847 = vmatprep.subr.mxu0 0.0
        %1848 = vmatpush1.msra.mxu0 0.0
        %1849 = vmatprep.subr.mxu0 0.0
        %1850 = vmatpush1.msra.mxu0 0.0
        %1851 = vmatprep.subr.mxu0 0.0
        %1852 = vmatpush1.msra.mxu0 0.0
        %1853 = vmatprep.subr.mxu0 0.0
        %1854 = vmatpush1.msra.mxu0 0.0
        %1855 = vmatprep.subr.mxu0 0.0
        %1856 = vmatpush1.msra.mxu0 0.0
        %1857 = vmatprep.mubr.f32.mxu0 0.0
        %v1858 = vand.u32 %v280, 4294901760
        %v1859 = vsub.f32 %v280, %v1858
        %v1860 = vand.u32 %v1859, 4294901760
        %v1861 = vsub.f32 %v1859, %v1860
        %v1862 = vand.u32 %v1861, 4294901760
        %1863 = vmatmul.mubr.f32.gmra.mrb[0].mxu0 %v1862
        %v1864 = vpop.f32.mrb[0].mxu0
        %v1865 = vadd.f32 0.0, %v1864
        %v1866 = vpop.f32.mrb[0].mxu0
        %1867 = vmatprep.mubr.f32.mxu0 0.0
        %v1868 = vand.u32 %v283, 4294901760
        %v1869 = vsub.f32 %v283, %v1868
        %v1870 = vand.u32 %v1869, 4294901760
        %v1871 = vsub.f32 %v1869, %v1870
        %v1872 = vand.u32 %v1871, 4294901760
        %1873 = vmatmul.mubr.f32.gmra.mrb[0].mxu0 %v1872
        %v1874 = vpop.f32.mrb[0].mxu0
        %v1875 = vadd.f32 0.0, %v1874
        %v1876 = vpop.f32.mrb[0].mxu0
        %1877 = vdwg.mxu0
        %1878 = vmatprep.subr.mxu0 0.0
        %v1879 = vand.u32 %v272, 4294901760
        %v1880 = vsub.f32 %v272, %v1879
        %v1881 = vand.u32 %v1880, 4294901760
        %v1882 = vsub.f32 %v1880, %v1881
        %v1883 = vand.u32 %v1882, 4294901760
        %1884 = vmatpush1.msra.mxu0 %v1883
        %1885 = vmatprep.subr.mxu0 0.0
        %v1886 = vand.u32 %v273, 4294901760
        %v1887 = vsub.f32 %v273, %v1886
        %v1888 = vand.u32 %v1887, 4294901760
        %v1889 = vsub.f32 %v1887, %v1888
        %v1890 = vand.u32 %v1889, 4294901760
        %1891 = vmatpush1.msra.mxu0 %v1890
        %1892 = vmatprep.subr.mxu0 0.0
        %1893 = vmatpush1.msra.mxu0 0.0
        %1894 = vmatprep.subr.mxu0 0.0
        %1895 = vmatpush1.msra.mxu0 0.0
        %1896 = vmatprep.subr.mxu0 0.0
        %1897 = vmatpush1.msra.mxu0 0.0
        %1898 = vmatprep.subr.mxu0 0.0
        %1899 = vmatpush1.msra.mxu0 0.0
        %1900 = vmatprep.subr.mxu0 0.0
        %1901 = vmatpush1.msra.mxu0 0.0
        %1902 = vmatprep.subr.mxu0 0.0
        %1903 = vmatpush1.msra.mxu0 0.0
        %1904 = vmatprep.subr.mxu0 0.0
        %1905 = vmatpush1.msra.mxu0 0.0
        %1906 = vmatprep.subr.mxu0 0.0
        %1907 = vmatpush1.msra.mxu0 0.0
        %1908 = vmatprep.subr.mxu0 0.0
        %1909 = vmatpush1.msra.mxu0 0.0
        %1910 = vmatprep.subr.mxu0 0.0
        %1911 = vmatpush1.msra.mxu0 0.0
        %1912 = vmatprep.subr.mxu0 0.0
        %1913 = vmatpush1.msra.mxu0 0.0
        %1914 = vmatprep.subr.mxu0 0.0
        %1915 = vmatpush1.msra.mxu0 0.0
        %1916 = vmatprep.subr.mxu0 0.0
        %1917 = vmatpush1.msra.mxu0 0.0
        %1918 = vmatprep.subr.mxu0 0.0
        %1919 = vmatpush1.msra.mxu0 0.0
        %1920 = vmatprep.subr.mxu0 0.0
        %1921 = vmatpush1.msra.mxu0 0.0
        %1922 = vmatprep.subr.mxu0 0.0
        %1923 = vmatpush1.msra.mxu0 0.0
        %1924 = vmatprep.subr.mxu0 0.0
        %1925 = vmatpush1.msra.mxu0 0.0
        %1926 = vmatprep.subr.mxu0 0.0
        %1927 = vmatpush1.msra.mxu0 0.0
        %1928 = vmatprep.subr.mxu0 0.0
        %1929 = vmatpush1.msra.mxu0 0.0
        %1930 = vmatprep.subr.mxu0 0.0
        %1931 = vmatpush1.msra.mxu0 0.0
        %1932 = vmatprep.subr.mxu0 0.0
        %1933 = vmatpush1.msra.mxu0 0.0
        %1934 = vmatprep.subr.mxu0 0.0
        %1935 = vmatpush1.msra.mxu0 0.0
        %1936 = vmatprep.subr.mxu0 0.0
        %1937 = vmatpush1.msra.mxu0 0.0
        %1938 = vmatprep.subr.mxu0 0.0
        %1939 = vmatpush1.msra.mxu0 0.0
        %1940 = vmatprep.subr.mxu0 0.0
        %1941 = vmatpush1.msra.mxu0 0.0
        %1942 = vmatprep.subr.mxu0 0.0
        %1943 = vmatpush1.msra.mxu0 0.0
        %1944 = vmatprep.subr.mxu0 0.0
        %1945 = vmatpush1.msra.mxu0 0.0
        %1946 = vmatprep.subr.mxu0 0.0
        %1947 = vmatpush1.msra.mxu0 0.0
        %1948 = vmatprep.subr.mxu0 0.0
        %1949 = vmatpush1.msra.mxu0 0.0
        %1950 = vmatprep.subr.mxu0 0.0
        %1951 = vmatpush1.msra.mxu0 0.0
        %1952 = vmatprep.mubr.f32.mxu0 0.0
        %v1953 = vand.u32 %v280, 4294901760
        %1954 = vmatmul.mubr.f32.gmra.mrb[0].mxu0 %v1953
        %v1955 = vpop.f32.mrb[0].mxu0
        %v1956 = vadd.f32 %v1865, %v1955
        %v1957 = vpop.f32.mrb[0].mxu0
        %1958 = vmatprep.mubr.f32.mxu0 0.0
        %v1959 = vand.u32 %v283, 4294901760
        %1960 = vmatmul.mubr.f32.gmra.mrb[0].mxu0 %v1959
        %v1961 = vpop.f32.mrb[0].mxu0
        %v1962 = vadd.f32 %v1875, %v1961
        %v1963 = vpop.f32.mrb[0].mxu0
        %1964 = vdwg.mxu0
        %1965 = vmatprep.subr.mxu0 0.0
        %v1966 = vand.u32 %v272, 4294901760
        %v1967 = vsub.f32 %v272, %v1966
        %1968 = vmatpush1.msra.mxu0 %v1967
        %1969 = vmatprep.subr.mxu0 0.0
        %v1970 = vand.u32 %v273, 4294901760
        %v1971 = vsub.f32 %v273, %v1970
        %1972 = vmatpush1.msra.mxu0 %v1971
        %1973 = vmatprep.subr.mxu0 0.0
        %1974 = vmatpush1.msra.mxu0 0.0
        %1975 = vmatprep.subr.mxu0 0.0
        %1976 = vmatpush1.msra.mxu0 0.0
        %1977 = vmatprep.subr.mxu0 0.0
        %1978 = vmatpush1.msra.mxu0 0.0
        %1979 = vmatprep.subr.mxu0 0.0
        %1980 = vmatpush1.msra.mxu0 0.0
        %1981 = vmatprep.subr.mxu0 0.0
        %1982 = vmatpush1.msra.mxu0 0.0
        %1983 = vmatprep.subr.mxu0 0.0
        %1984 = vmatpush1.msra.mxu0 0.0
        %1985 = vmatprep.subr.mxu0 0.0
        %1986 = vmatpush1.msra.mxu0 0.0
        %1987 = vmatprep.subr.mxu0 0.0
        %1988 = vmatpush1.msra.mxu0 0.0
        %1989 = vmatprep.subr.mxu0 0.0
        %1990 = vmatpush1.msra.mxu0 0.0
        %1991 = vmatprep.subr.mxu0 0.0
        %1992 = vmatpush1.msra.mxu0 0.0
        %1993 = vmatprep.subr.mxu0 0.0
        %1994 = vmatpush1.msra.mxu0 0.0
        %1995 = vmatprep.subr.mxu0 0.0
        %1996 = vmatpush1.msra.mxu0 0.0
        %1997 = vmatprep.subr.mxu0 0.0
        %1998 = vmatpush1.msra.mxu0 0.0
        %1999 = vmatprep.subr.mxu0 0.0
        %2000 = vmatpush1.msra.mxu0 0.0
        %2001 = vmatprep.subr.mxu0 0.0
        %2002 = vmatpush1.msra.mxu0 0.0
        %2003 = vmatprep.subr.mxu0 0.0
        %2004 = vmatpush1.msra.mxu0 0.0
        %2005 = vmatprep.subr.mxu0 0.0
        %2006 = vmatpush1.msra.mxu0 0.0
        %2007 = vmatprep.subr.mxu0 0.0
        %2008 = vmatpush1.msra.mxu0 0.0
        %2009 = vmatprep.subr.mxu0 0.0
        %2010 = vmatpush1.msra.mxu0 0.0
        %2011 = vmatprep.subr.mxu0 0.0
        %2012 = vmatpush1.msra.mxu0 0.0
        %2013 = vmatprep.subr.mxu0 0.0
        %2014 = vmatpush1.msra.mxu0 0.0
        %2015 = vmatprep.subr.mxu0 0.0
        %2016 = vmatpush1.msra.mxu0 0.0
        %2017 = vmatprep.subr.mxu0 0.0
        %2018 = vmatpush1.msra.mxu0 0.0
        %2019 = vmatprep.subr.mxu0 0.0
        %2020 = vmatpush1.msra.mxu0 0.0
        %2021 = vmatprep.subr.mxu0 0.0
        %2022 = vmatpush1.msra.mxu0 0.0
        %2023 = vmatprep.subr.mxu0 0.0
        %2024 = vmatpush1.msra.mxu0 0.0
        %2025 = vmatprep.subr.mxu0 0.0
        %2026 = vmatpush1.msra.mxu0 0.0
        %2027 = vmatprep.subr.mxu0 0.0
        %2028 = vmatpush1.msra.mxu0 0.0
        %2029 = vmatprep.subr.mxu0 0.0
        %2030 = vmatpush1.msra.mxu0 0.0
        %2031 = vmatprep.subr.mxu0 0.0
        %2032 = vmatpush1.msra.mxu0 0.0
        %2033 = vmatprep.mubr.f32.mxu0 0.0
        %v2034 = vand.u32 %v280, 4294901760
        %v2035 = vsub.f32 %v280, %v2034
        %2036 = vmatmul.mubr.f32.gmra.mrb[0].mxu0 %v2035
        %v2037 = vpop.f32.mrb[0].mxu0
        %v2038 = vadd.f32 %v1956, %v2037
        %v2039 = vpop.f32.mrb[0].mxu0
        %2040 = vmatprep.mubr.f32.mxu0 0.0
        %v2041 = vand.u32 %v283, 4294901760
        %v2042 = vsub.f32 %v283, %v2041
        %2043 = vmatmul.mubr.f32.gmra.mrb[0].mxu0 %v2042
        %v2044 = vpop.f32.mrb[0].mxu0
        %v2045 = vadd.f32 %v1962, %v2044
        %v2046 = vpop.f32.mrb[0].mxu0
        %2047 = vdwg.mxu0
        %2048 = vmatprep.subr.mxu0 0.0
        %v2049 = vand.u32 %v272, 4294901760
        %2050 = vmatpush1.msra.mxu0 %v2049
        %2051 = vmatprep.subr.mxu0 0.0
        %v2052 = vand.u32 %v273, 4294901760
        %2053 = vmatpush1.msra.mxu0 %v2052
        %2054 = vmatprep.subr.mxu0 0.0
        %2055 = vmatpush1.msra.mxu0 0.0
        %2056 = vmatprep.subr.mxu0 0.0
        %2057 = vmatpush1.msra.mxu0 0.0
        %2058 = vmatprep.subr.mxu0 0.0
        %2059 = vmatpush1.msra.mxu0 0.0
        %2060 = vmatprep.subr.mxu0 0.0
        %2061 = vmatpush1.msra.mxu0 0.0
        %2062 = vmatprep.subr.mxu0 0.0
        %2063 = vmatpush1.msra.mxu0 0.0
        %2064 = vmatprep.subr.mxu0 0.0
        %2065 = vmatpush1.msra.mxu0 0.0
        %2066 = vmatprep.subr.mxu0 0.0
        %2067 = vmatpush1.msra.mxu0 0.0
        %2068 = vmatprep.subr.mxu0 0.0
        %2069 = vmatpush1.msra.mxu0 0.0
        %2070 = vmatprep.subr.mxu0 0.0
        %2071 = vmatpush1.msra.mxu0 0.0
        %2072 = vmatprep.subr.mxu0 0.0
        %2073 = vmatpush1.msra.mxu0 0.0
        %2074 = vmatprep.subr.mxu0 0.0
        %2075 = vmatpush1.msra.mxu0 0.0
        %2076 = vmatprep.subr.mxu0 0.0
        %2077 = vmatpush1.msra.mxu0 0.0
        %2078 = vmatprep.subr.mxu0 0.0
        %2079 = vmatpush1.msra.mxu0 0.0
        %2080 = vmatprep.subr.mxu0 0.0
        %2081 = vmatpush1.msra.mxu0 0.0
        %2082 = vmatprep.subr.mxu0 0.0
        %2083 = vmatpush1.msra.mxu0 0.0
        %2084 = vmatprep.subr.mxu0 0.0
        %2085 = vmatpush1.msra.mxu0 0.0
        %2086 = vmatprep.subr.mxu0 0.0
        %2087 = vmatpush1.msra.mxu0 0.0
        %2088 = vmatprep.subr.mxu0 0.0
        %2089 = vmatpush1.msra.mxu0 0.0
        %2090 = vmatprep.subr.mxu0 0.0
        %2091 = vmatpush1.msra.mxu0 0.0
        %2092 = vmatprep.subr.mxu0 0.0
        %2093 = vmatpush1.msra.mxu0 0.0
        %2094 = vmatprep.subr.mxu0 0.0
        %2095 = vmatpush1.msra.mxu0 0.0
        %2096 = vmatprep.subr.mxu0 0.0
        %2097 = vmatpush1.msra.mxu0 0.0
        %2098 = vmatprep.subr.mxu0 0.0
        %2099 = vmatpush1.msra.mxu0 0.0
        %2100 = vmatprep.subr.mxu0 0.0
        %2101 = vmatpush1.msra.mxu0 0.0
        %2102 = vmatprep.subr.mxu0 0.0
        %2103 = vmatpush1.msra.mxu0 0.0
        %2104 = vmatprep.subr.mxu0 0.0
        %2105 = vmatpush1.msra.mxu0 0.0
        %2106 = vmatprep.subr.mxu0 0.0
        %2107 = vmatpush1.msra.mxu0 0.0
        %2108 = vmatprep.subr.mxu0 0.0
        %2109 = vmatpush1.msra.mxu0 0.0
        %2110 = vmatprep.subr.mxu0 0.0
        %2111 = vmatpush1.msra.mxu0 0.0
        %2112 = vmatprep.subr.mxu0 0.0
        %2113 = vmatpush1.msra.mxu0 0.0
        %2114 = vmatprep.mubr.f32.mxu0 0.0
        %v2115 = vand.u32 %v280, 4294901760
        %v2116 = vsub.f32 %v280, %v2115
        %v2117 = vand.u32 %v2116, 4294901760
        %2118 = vmatmul.mubr.f32.gmra.mrb[0].mxu0 %v2117
        %v2119 = vpop.f32.mrb[0].mxu0
        %v2120 = vadd.f32 %v2038, %v2119
        %v2121 = vpop.f32.mrb[0].mxu0
        %2122 = vmatprep.mubr.f32.mxu0 0.0
        %v2123 = vand.u32 %v283, 4294901760
        %v2124 = vsub.f32 %v283, %v2123
        %v2125 = vand.u32 %v2124, 4294901760
        %2126 = vmatmul.mubr.f32.gmra.mrb[0].mxu0 %v2125
        %v2127 = vpop.f32.mrb[0].mxu0
        %v2128 = vadd.f32 %v2045, %v2127
        %v2129 = vpop.f32.mrb[0].mxu0
        %2130 = vdwg.mxu0
        %2131 = vmatprep.subr.mxu0 0.0
        %v2132 = vand.u32 %v272, 4294901760
        %v2133 = vsub.f32 %v272, %v2132
        %v2134 = vand.u32 %v2133, 4294901760
        %2135 = vmatpush1.msra.mxu0 %v2134
        %2136 = vmatprep.subr.mxu0 0.0
        %v2137 = vand.u32 %v273, 4294901760
        %v2138 = vsub.f32 %v273, %v2137
        %v2139 = vand.u32 %v2138, 4294901760
        %2140 = vmatpush1.msra.mxu0 %v2139
        %2141 = vmatprep.subr.mxu0 0.0
        %2142 = vmatpush1.msra.mxu0 0.0
        %2143 = vmatprep.subr.mxu0 0.0
        %2144 = vmatpush1.msra.mxu0 0.0
        %2145 = vmatprep.subr.mxu0 0.0
        %2146 = vmatpush1.msra.mxu0 0.0
        %2147 = vmatprep.subr.mxu0 0.0
        %2148 = vmatpush1.msra.mxu0 0.0
        %2149 = vmatprep.subr.mxu0 0.0
        %2150 = vmatpush1.msra.mxu0 0.0
        %2151 = vmatprep.subr.mxu0 0.0
        %2152 = vmatpush1.msra.mxu0 0.0
        %2153 = vmatprep.subr.mxu0 0.0
        %2154 = vmatpush1.msra.mxu0 0.0
        %2155 = vmatprep.subr.mxu0 0.0
        %2156 = vmatpush1.msra.mxu0 0.0
        %2157 = vmatprep.subr.mxu0 0.0
        %2158 = vmatpush1.msra.mxu0 0.0
        %2159 = vmatprep.subr.mxu0 0.0
        %2160 = vmatpush1.msra.mxu0 0.0
        %2161 = vmatprep.subr.mxu0 0.0
        %2162 = vmatpush1.msra.mxu0 0.0
        %2163 = vmatprep.subr.mxu0 0.0
        %2164 = vmatpush1.msra.mxu0 0.0
        %2165 = vmatprep.subr.mxu0 0.0
        %2166 = vmatpush1.msra.mxu0 0.0
        %2167 = vmatprep.subr.mxu0 0.0
        %2168 = vmatpush1.msra.mxu0 0.0
        %2169 = vmatprep.subr.mxu0 0.0
        %2170 = vmatpush1.msra.mxu0 0.0
        %2171 = vmatprep.subr.mxu0 0.0
        %2172 = vmatpush1.msra.mxu0 0.0
        %2173 = vmatprep.subr.mxu0 0.0
        %2174 = vmatpush1.msra.mxu0 0.0
        %2175 = vmatprep.subr.mxu0 0.0
        %2176 = vmatpush1.msra.mxu0 0.0
        %2177 = vmatprep.subr.mxu0 0.0
        %2178 = vmatpush1.msra.mxu0 0.0
        %2179 = vmatprep.subr.mxu0 0.0
        %2180 = vmatpush1.msra.mxu0 0.0
        %2181 = vmatprep.subr.mxu0 0.0
        %2182 = vmatpush1.msra.mxu0 0.0
        %2183 = vmatprep.subr.mxu0 0.0
        %2184 = vmatpush1.msra.mxu0 0.0
        %2185 = vmatprep.subr.mxu0 0.0
        %2186 = vmatpush1.msra.mxu0 0.0
        %2187 = vmatprep.subr.mxu0 0.0
        %2188 = vmatpush1.msra.mxu0 0.0
        %2189 = vmatprep.subr.mxu0 0.0
        %2190 = vmatpush1.msra.mxu0 0.0
        %2191 = vmatprep.subr.mxu0 0.0
        %2192 = vmatpush1.msra.mxu0 0.0
        %2193 = vmatprep.subr.mxu0 0.0
        %2194 = vmatpush1.msra.mxu0 0.0
        %2195 = vmatprep.subr.mxu0 0.0
        %2196 = vmatpush1.msra.mxu0 0.0
        %2197 = vmatprep.subr.mxu0 0.0
        %2198 = vmatpush1.msra.mxu0 0.0
        %2199 = vmatprep.subr.mxu0 0.0
        %2200 = vmatpush1.msra.mxu0 0.0
        %2201 = vmatprep.mubr.f32.mxu0 0.0
        %v2202 = vand.u32 %v280, 4294901760
        %2203 = vmatmul.mubr.f32.gmra.mrb[0].mxu0 %v2202
        %v2204 = vpop.f32.mrb[0].mxu0
        %v2205 = vadd.f32 %v2120, %v2204
        %v2206 = vpop.f32.mrb[0].mxu0
        %2207 = vmatprep.mubr.f32.mxu0 0.0
        %v2208 = vand.u32 %v283, 4294901760
        %2209 = vmatmul.mubr.f32.gmra.mrb[0].mxu0 %v2208
        %v2210 = vpop.f32.mrb[0].mxu0
        %v2211 = vadd.f32 %v2128, %v2210
        %v2212 = vpop.f32.mrb[0].mxu0
        %2213 = vdwg.mxu0
        %2214 = vmatprep.subr.mxu0 0.0
        %v2215 = vand.u32 %v272, 4294901760
        %2216 = vmatpush1.msra.mxu0 %v2215
        %2217 = vmatprep.subr.mxu0 0.0
        %v2218 = vand.u32 %v273, 4294901760
        %2219 = vmatpush1.msra.mxu0 %v2218
        %2220 = vmatprep.subr.mxu0 0.0
        %2221 = vmatpush1.msra.mxu0 0.0
        %2222 = vmatprep.subr.mxu0 0.0
        %2223 = vmatpush1.msra.mxu0 0.0
        %2224 = vmatprep.subr.mxu0 0.0
        %2225 = vmatpush1.msra.mxu0 0.0
        %2226 = vmatprep.subr.mxu0 0.0
        %2227 = vmatpush1.msra.mxu0 0.0
        %2228 = vmatprep.subr.mxu0 0.0
        %2229 = vmatpush1.msra.mxu0 0.0
        %2230 = vmatprep.subr.mxu0 0.0
        %2231 = vmatpush1.msra.mxu0 0.0
        %2232 = vmatprep.subr.mxu0 0.0
        %2233 = vmatpush1.msra.mxu0 0.0
        %2234 = vmatprep.subr.mxu0 0.0
        %2235 = vmatpush1.msra.mxu0 0.0
        %2236 = vmatprep.subr.mxu0 0.0
        %2237 = vmatpush1.msra.mxu0 0.0
        %2238 = vmatprep.subr.mxu0 0.0
        %2239 = vmatpush1.msra.mxu0 0.0
        %2240 = vmatprep.subr.mxu0 0.0
        %2241 = vmatpush1.msra.mxu0 0.0
        %2242 = vmatprep.subr.mxu0 0.0
        %2243 = vmatpush1.msra.mxu0 0.0
        %2244 = vmatprep.subr.mxu0 0.0
        %2245 = vmatpush1.msra.mxu0 0.0
        %2246 = vmatprep.subr.mxu0 0.0
        %2247 = vmatpush1.msra.mxu0 0.0
        %2248 = vmatprep.subr.mxu0 0.0
        %2249 = vmatpush1.msra.mxu0 0.0
        %2250 = vmatprep.subr.mxu0 0.0
        %2251 = vmatpush1.msra.mxu0 0.0
        %2252 = vmatprep.subr.mxu0 0.0
        %2253 = vmatpush1.msra.mxu0 0.0
        %2254 = vmatprep.subr.mxu0 0.0
        %2255 = vmatpush1.msra.mxu0 0.0
        %2256 = vmatprep.subr.mxu0 0.0
        %2257 = vmatpush1.msra.mxu0 0.0
        %2258 = vmatprep.subr.mxu0 0.0
        %2259 = vmatpush1.msra.mxu0 0.0
        %2260 = vmatprep.subr.mxu0 0.0
        %2261 = vmatpush1.msra.mxu0 0.0
        %2262 = vmatprep.subr.mxu0 0.0
        %2263 = vmatpush1.msra.mxu0 0.0
        %2264 = vmatprep.subr.mxu0 0.0
        %2265 = vmatpush1.msra.mxu0 0.0
        %2266 = vmatprep.subr.mxu0 0.0
        %2267 = vmatpush1.msra.mxu0 0.0
        %2268 = vmatprep.subr.mxu0 0.0
        %2269 = vmatpush1.msra.mxu0 0.0
        %2270 = vmatprep.subr.mxu0 0.0
        %2271 = vmatpush1.msra.mxu0 0.0
        %2272 = vmatprep.subr.mxu0 0.0
        %2273 = vmatpush1.msra.mxu0 0.0
        %2274 = vmatprep.subr.mxu0 0.0
        %2275 = vmatpush1.msra.mxu0 0.0
        %2276 = vmatprep.subr.mxu0 0.0
        %2277 = vmatpush1.msra.mxu0 0.0
        %2278 = vmatprep.subr.mxu0 0.0
        %2279 = vmatpush1.msra.mxu0 0.0
        %2280 = vmatprep.mubr.f32.mxu0 0.0
        %v2281 = vand.u32 %v280, 4294901760
        %2282 = vmatmul.mubr.f32.gmra.mrb[0].mxu0 %v2281
        %v2283 = vpop.f32.mrb[0].mxu0
        %v2284 = vadd.f32 %v2205, %v2283
        %v2285 = vpop.f32.mrb[0].mxu0
        %2286 = vmatprep.mubr.f32.mxu0 0.0
        %v2287 = vand.u32 %v283, 4294901760
        %2288 = vmatmul.mubr.f32.gmra.mrb[0].mxu0 %v2287
        %v2289 = vpop.f32.mrb[0].mxu0
        %v2290 = vadd.f32 %v2211, %v2289
        %v2291 = vpop.f32.mrb[0].mxu0
        %2292 = vdwg.mxu0
        %v2294 = vsel %vm278, %v778, 0
        %v2297 = vsel %vm278, %v784, 0
        %2299 = vmatprep.subr.mxu0 0.0
        %v2300 = vand.u32 %v276, 4294901760
        %2301 = vmatpush1.msra.mxu0 %v2300
        %2302 = vmatprep.subr.mxu0 0.0
        %v2303 = vand.u32 %v277, 4294901760
        %2304 = vmatpush1.msra.mxu0 %v2303
        %2305 = vmatprep.subr.mxu0 0.0
        %2306 = vmatpush1.msra.mxu0 0.0
        %2307 = vmatprep.subr.mxu0 0.0
        %2308 = vmatpush1.msra.mxu0 0.0
        %2309 = vmatprep.subr.mxu0 0.0
        %2310 = vmatpush1.msra.mxu0 0.0
        %2311 = vmatprep.subr.mxu0 0.0
        %2312 = vmatpush1.msra.mxu0 0.0
        %2313 = vmatprep.subr.mxu0 0.0
        %2314 = vmatpush1.msra.mxu0 0.0
        %2315 = vmatprep.subr.mxu0 0.0
        %2316 = vmatpush1.msra.mxu0 0.0
        %2317 = vmatprep.subr.mxu0 0.0
        %2318 = vmatpush1.msra.mxu0 0.0
        %2319 = vmatprep.subr.mxu0 0.0
        %2320 = vmatpush1.msra.mxu0 0.0
        %2321 = vmatprep.subr.mxu0 0.0
        %2322 = vmatpush1.msra.mxu0 0.0
        %2323 = vmatprep.subr.mxu0 0.0
        %2324 = vmatpush1.msra.mxu0 0.0
        %2325 = vmatprep.subr.mxu0 0.0
        %2326 = vmatpush1.msra.mxu0 0.0
        %2327 = vmatprep.subr.mxu0 0.0
        %2328 = vmatpush1.msra.mxu0 0.0
        %2329 = vmatprep.subr.mxu0 0.0
        %2330 = vmatpush1.msra.mxu0 0.0
        %2331 = vmatprep.subr.mxu0 0.0
        %2332 = vmatpush1.msra.mxu0 0.0
        %2333 = vmatprep.subr.mxu0 0.0
        %2334 = vmatpush1.msra.mxu0 0.0
        %2335 = vmatprep.subr.mxu0 0.0
        %2336 = vmatpush1.msra.mxu0 0.0
        %2337 = vmatprep.subr.mxu0 0.0
        %2338 = vmatpush1.msra.mxu0 0.0
        %2339 = vmatprep.subr.mxu0 0.0
        %2340 = vmatpush1.msra.mxu0 0.0
        %2341 = vmatprep.subr.mxu0 0.0
        %2342 = vmatpush1.msra.mxu0 0.0
        %2343 = vmatprep.subr.mxu0 0.0
        %2344 = vmatpush1.msra.mxu0 0.0
        %2345 = vmatprep.subr.mxu0 0.0
        %2346 = vmatpush1.msra.mxu0 0.0
        %2347 = vmatprep.subr.mxu0 0.0
        %2348 = vmatpush1.msra.mxu0 0.0
        %2349 = vmatprep.subr.mxu0 0.0
        %2350 = vmatpush1.msra.mxu0 0.0
        %2351 = vmatprep.subr.mxu0 0.0
        %2352 = vmatpush1.msra.mxu0 0.0
        %2353 = vmatprep.subr.mxu0 0.0
        %2354 = vmatpush1.msra.mxu0 0.0
        %2355 = vmatprep.subr.mxu0 0.0
        %2356 = vmatpush1.msra.mxu0 0.0
        %2357 = vmatprep.subr.mxu0 0.0
        %2358 = vmatpush1.msra.mxu0 0.0
        %2359 = vmatprep.subr.mxu0 0.0
        %2360 = vmatpush1.msra.mxu0 0.0
        %2361 = vmatprep.subr.mxu0 0.0
        %2362 = vmatpush1.msra.mxu0 0.0
        %2363 = vmatprep.subr.mxu0 0.0
        %2364 = vmatpush1.msra.mxu0 0.0
        %2365 = vmatprep.mubr.f32.mxu0 0.0
        %v2366 = vand.u32 %v2294, 4294901760
        %v2367 = vsub.f32 %v2294, %v2366
        %v2368 = vand.u32 %v2367, 4294901760
        %v2369 = vsub.f32 %v2367, %v2368
        %v2370 = vand.u32 %v2369, 4294901760
        %2371 = vmatmul.mubr.f32.gmra.mrb[0].mxu0 %v2370
        %v2372 = vpop.f32.mrb[0].mxu0
        %v2373 = vadd.f32 0.0, %v2372
        %v2374 = vpop.f32.mrb[0].mxu0
        %2375 = vmatprep.mubr.f32.mxu0 0.0
        %v2376 = vand.u32 %v2297, 4294901760
        %v2377 = vsub.f32 %v2297, %v2376
        %v2378 = vand.u32 %v2377, 4294901760
        %v2379 = vsub.f32 %v2377, %v2378
        %v2380 = vand.u32 %v2379, 4294901760
        %2381 = vmatmul.mubr.f32.gmra.mrb[0].mxu0 %v2380
        %v2382 = vpop.f32.mrb[0].mxu0
        %v2383 = vadd.f32 0.0, %v2382
        %v2384 = vpop.f32.mrb[0].mxu0
        %2385 = vdwg.mxu0
        %2386 = vmatprep.subr.mxu0 0.0
        %v2387 = vand.u32 %v276, 4294901760
        %v2388 = vsub.f32 %v276, %v2387
        %v2389 = vand.u32 %v2388, 4294901760
        %v2390 = vsub.f32 %v2388, %v2389
        %v2391 = vand.u32 %v2390, 4294901760
        %2392 = vmatpush1.msra.mxu0 %v2391
        %2393 = vmatprep.subr.mxu0 0.0
        %v2394 = vand.u32 %v277, 4294901760
        %v2395 = vsub.f32 %v277, %v2394
        %v2396 = vand.u32 %v2395, 4294901760
        %v2397 = vsub.f32 %v2395, %v2396
        %v2398 = vand.u32 %v2397, 4294901760
        %2399 = vmatpush1.msra.mxu0 %v2398
        %2400 = vmatprep.subr.mxu0 0.0
        %2401 = vmatpush1.msra.mxu0 0.0
        %2402 = vmatprep.subr.mxu0 0.0
        %2403 = vmatpush1.msra.mxu0 0.0
        %2404 = vmatprep.subr.mxu0 0.0
        %2405 = vmatpush1.msra.mxu0 0.0
        %2406 = vmatprep.subr.mxu0 0.0
        %2407 = vmatpush1.msra.mxu0 0.0
        %2408 = vmatprep.subr.mxu0 0.0
        %2409 = vmatpush1.msra.mxu0 0.0
        %2410 = vmatprep.subr.mxu0 0.0
        %2411 = vmatpush1.msra.mxu0 0.0
        %2412 = vmatprep.subr.mxu0 0.0
        %2413 = vmatpush1.msra.mxu0 0.0
        %2414 = vmatprep.subr.mxu0 0.0
        %2415 = vmatpush1.msra.mxu0 0.0
        %2416 = vmatprep.subr.mxu0 0.0
        %2417 = vmatpush1.msra.mxu0 0.0
        %2418 = vmatprep.subr.mxu0 0.0
        %2419 = vmatpush1.msra.mxu0 0.0
        %2420 = vmatprep.subr.mxu0 0.0
        %2421 = vmatpush1.msra.mxu0 0.0
        %2422 = vmatprep.subr.mxu0 0.0
        %2423 = vmatpush1.msra.mxu0 0.0
        %2424 = vmatprep.subr.mxu0 0.0
        %2425 = vmatpush1.msra.mxu0 0.0
        %2426 = vmatprep.subr.mxu0 0.0
        %2427 = vmatpush1.msra.mxu0 0.0
        %2428 = vmatprep.subr.mxu0 0.0
        %2429 = vmatpush1.msra.mxu0 0.0
        %2430 = vmatprep.subr.mxu0 0.0
        %2431 = vmatpush1.msra.mxu0 0.0
        %2432 = vmatprep.subr.mxu0 0.0
        %2433 = vmatpush1.msra.mxu0 0.0
        %2434 = vmatprep.subr.mxu0 0.0
        %2435 = vmatpush1.msra.mxu0 0.0
        %2436 = vmatprep.subr.mxu0 0.0
        %2437 = vmatpush1.msra.mxu0 0.0
        %2438 = vmatprep.subr.mxu0 0.0
        %2439 = vmatpush1.msra.mxu0 0.0
        %2440 = vmatprep.subr.mxu0 0.0
        %2441 = vmatpush1.msra.mxu0 0.0
        %2442 = vmatprep.subr.mxu0 0.0
        %2443 = vmatpush1.msra.mxu0 0.0
        %2444 = vmatprep.subr.mxu0 0.0
        %2445 = vmatpush1.msra.mxu0 0.0
        %2446 = vmatprep.subr.mxu0 0.0
        %2447 = vmatpush1.msra.mxu0 0.0
        %2448 = vmatprep.subr.mxu0 0.0
        %2449 = vmatpush1.msra.mxu0 0.0
        %2450 = vmatprep.subr.mxu0 0.0
        %2451 = vmatpush1.msra.mxu0 0.0
        %2452 = vmatprep.subr.mxu0 0.0
        %2453 = vmatpush1.msra.mxu0 0.0
        %2454 = vmatprep.subr.mxu0 0.0
        %2455 = vmatpush1.msra.mxu0 0.0
        %2456 = vmatprep.subr.mxu0 0.0
        %2457 = vmatpush1.msra.mxu0 0.0
        %2458 = vmatprep.subr.mxu0 0.0
        %2459 = vmatpush1.msra.mxu0 0.0
        %2460 = vmatprep.mubr.f32.mxu0 0.0
        %v2461 = vand.u32 %v2294, 4294901760
        %2462 = vmatmul.mubr.f32.gmra.mrb[0].mxu0 %v2461
        %v2463 = vpop.f32.mrb[0].mxu0
        %v2464 = vadd.f32 %v2373, %v2463
        %v2465 = vpop.f32.mrb[0].mxu0
        %2466 = vmatprep.mubr.f32.mxu0 0.0
        %v2467 = vand.u32 %v2297, 4294901760
        %2468 = vmatmul.mubr.f32.gmra.mrb[0].mxu0 %v2467
        %v2469 = vpop.f32.mrb[0].mxu0
        %v2470 = vadd.f32 %v2383, %v2469
        %v2471 = vpop.f32.mrb[0].mxu0
        %2472 = vdwg.mxu0
        %2473 = vmatprep.subr.mxu0 0.0
        %v2474 = vand.u32 %v276, 4294901760
        %v2475 = vsub.f32 %v276, %v2474
        %2476 = vmatpush1.msra.mxu0 %v2475
        %2477 = vmatprep.subr.mxu0 0.0
        %v2478 = vand.u32 %v277, 4294901760
        %v2479 = vsub.f32 %v277, %v2478
        %2480 = vmatpush1.msra.mxu0 %v2479
        %2481 = vmatprep.subr.mxu0 0.0
        %2482 = vmatpush1.msra.mxu0 0.0
        %2483 = vmatprep.subr.mxu0 0.0
        %2484 = vmatpush1.msra.mxu0 0.0
        %2485 = vmatprep.subr.mxu0 0.0
        %2486 = vmatpush1.msra.mxu0 0.0
        %2487 = vmatprep.subr.mxu0 0.0
        %2488 = vmatpush1.msra.mxu0 0.0
        %2489 = vmatprep.subr.mxu0 0.0
        %2490 = vmatpush1.msra.mxu0 0.0
        %2491 = vmatprep.subr.mxu0 0.0
        %2492 = vmatpush1.msra.mxu0 0.0
        %2493 = vmatprep.subr.mxu0 0.0
        %2494 = vmatpush1.msra.mxu0 0.0
        %2495 = vmatprep.subr.mxu0 0.0
        %2496 = vmatpush1.msra.mxu0 0.0
        %2497 = vmatprep.subr.mxu0 0.0
        %2498 = vmatpush1.msra.mxu0 0.0
        %2499 = vmatprep.subr.mxu0 0.0
        %2500 = vmatpush1.msra.mxu0 0.0
        %2501 = vmatprep.subr.mxu0 0.0
        %2502 = vmatpush1.msra.mxu0 0.0
        %2503 = vmatprep.subr.mxu0 0.0
        %2504 = vmatpush1.msra.mxu0 0.0
        %2505 = vmatprep.subr.mxu0 0.0
        %2506 = vmatpush1.msra.mxu0 0.0
        %2507 = vmatprep.subr.mxu0 0.0
        %2508 = vmatpush1.msra.mxu0 0.0
        %2509 = vmatprep.subr.mxu0 0.0
        %2510 = vmatpush1.msra.mxu0 0.0
        %2511 = vmatprep.subr.mxu0 0.0
        %2512 = vmatpush1.msra.mxu0 0.0
        %2513 = vmatprep.subr.mxu0 0.0
        %2514 = vmatpush1.msra.mxu0 0.0
        %2515 = vmatprep.subr.mxu0 0.0
        %2516 = vmatpush1.msra.mxu0 0.0
        %2517 = vmatprep.subr.mxu0 0.0
        %2518 = vmatpush1.msra.mxu0 0.0
        %2519 = vmatprep.subr.mxu0 0.0
        %2520 = vmatpush1.msra.mxu0 0.0
        %2521 = vmatprep.subr.mxu0 0.0
        %2522 = vmatpush1.msra.mxu0 0.0
        %2523 = vmatprep.subr.mxu0 0.0
        %2524 = vmatpush1.msra.mxu0 0.0
        %2525 = vmatprep.subr.mxu0 0.0
        %2526 = vmatpush1.msra.mxu0 0.0
        %2527 = vmatprep.subr.mxu0 0.0
        %2528 = vmatpush1.msra.mxu0 0.0
        %2529 = vmatprep.subr.mxu0 0.0
        %2530 = vmatpush1.msra.mxu0 0.0
        %2531 = vmatprep.subr.mxu0 0.0
        %2532 = vmatpush1.msra.mxu0 0.0
        %2533 = vmatprep.subr.mxu0 0.0
        %2534 = vmatpush1.msra.mxu0 0.0
        %2535 = vmatprep.subr.mxu0 0.0
        %2536 = vmatpush1.msra.mxu0 0.0
        %2537 = vmatprep.subr.mxu0 0.0
        %2538 = vmatpush1.msra.mxu0 0.0
        %2539 = vmatprep.subr.mxu0 0.0
        %2540 = vmatpush1.msra.mxu0 0.0
        %2541 = vmatprep.mubr.f32.mxu0 0.0
        %v2542 = vand.u32 %v2294, 4294901760
        %v2543 = vsub.f32 %v2294, %v2542
        %2544 = vmatmul.mubr.f32.gmra.mrb[0].mxu0 %v2543
        %v2545 = vpop.f32.mrb[0].mxu0
        %v2546 = vadd.f32 %v2464, %v2545
        %v2547 = vpop.f32.mrb[0].mxu0
        %2548 = vmatprep.mubr.f32.mxu0 0.0
        %v2549 = vand.u32 %v2297, 4294901760
        %v2550 = vsub.f32 %v2297, %v2549
        %2551 = vmatmul.mubr.f32.gmra.mrb[0].mxu0 %v2550
        %v2552 = vpop.f32.mrb[0].mxu0
        %v2553 = vadd.f32 %v2470, %v2552
        %v2554 = vpop.f32.mrb[0].mxu0
        %2555 = vdwg.mxu0
        %2556 = vmatprep.subr.mxu0 0.0
        %v2557 = vand.u32 %v276, 4294901760
        %2558 = vmatpush1.msra.mxu0 %v2557
        %2559 = vmatprep.subr.mxu0 0.0
        %v2560 = vand.u32 %v277, 4294901760
        %2561 = vmatpush1.msra.mxu0 %v2560
        %2562 = vmatprep.subr.mxu0 0.0
        %2563 = vmatpush1.msra.mxu0 0.0
        %2564 = vmatprep.subr.mxu0 0.0
        %2565 = vmatpush1.msra.mxu0 0.0
        %2566 = vmatprep.subr.mxu0 0.0
        %2567 = vmatpush1.msra.mxu0 0.0
        %2568 = vmatprep.subr.mxu0 0.0
        %2569 = vmatpush1.msra.mxu0 0.0
        %2570 = vmatprep.subr.mxu0 0.0
        %2571 = vmatpush1.msra.mxu0 0.0
        %2572 = vmatprep.subr.mxu0 0.0
        %2573 = vmatpush1.msra.mxu0 0.0
        %2574 = vmatprep.subr.mxu0 0.0
        %2575 = vmatpush1.msra.mxu0 0.0
        %2576 = vmatprep.subr.mxu0 0.0
        %2577 = vmatpush1.msra.mxu0 0.0
        %2578 = vmatprep.subr.mxu0 0.0
        %2579 = vmatpush1.msra.mxu0 0.0
        %2580 = vmatprep.subr.mxu0 0.0
        %2581 = vmatpush1.msra.mxu0 0.0
        %2582 = vmatprep.subr.mxu0 0.0
        %2583 = vmatpush1.msra.mxu0 0.0
        %2584 = vmatprep.subr.mxu0 0.0
        %2585 = vmatpush1.msra.mxu0 0.0
        %2586 = vmatprep.subr.mxu0 0.0
        %2587 = vmatpush1.msra.mxu0 0.0
        %2588 = vmatprep.subr.mxu0 0.0
        %2589 = vmatpush1.msra.mxu0 0.0
        %2590 = vmatprep.subr.mxu0 0.0
        %2591 = vmatpush1.msra.mxu0 0.0
        %2592 = vmatprep.subr.mxu0 0.0
        %2593 = vmatpush1.msra.mxu0 0.0
        %2594 = vmatprep.subr.mxu0 0.0
        %2595 = vmatpush1.msra.mxu0 0.0
        %2596 = vmatprep.subr.mxu0 0.0
        %2597 = vmatpush1.msra.mxu0 0.0
        %2598 = vmatprep.subr.mxu0 0.0
        %2599 = vmatpush1.msra.mxu0 0.0
        %2600 = vmatprep.subr.mxu0 0.0
        %2601 = vmatpush1.msra.mxu0 0.0
        %2602 = vmatprep.subr.mxu0 0.0
        %2603 = vmatpush1.msra.mxu0 0.0
        %2604 = vmatprep.subr.mxu0 0.0
        %2605 = vmatpush1.msra.mxu0 0.0
        %2606 = vmatprep.subr.mxu0 0.0
        %2607 = vmatpush1.msra.mxu0 0.0
        %2608 = vmatprep.subr.mxu0 0.0
        %2609 = vmatpush1.msra.mxu0 0.0
        %2610 = vmatprep.subr.mxu0 0.0
        %2611 = vmatpush1.msra.mxu0 0.0
        %2612 = vmatprep.subr.mxu0 0.0
        %2613 = vmatpush1.msra.mxu0 0.0
        %2614 = vmatprep.subr.mxu0 0.0
        %2615 = vmatpush1.msra.mxu0 0.0
        %2616 = vmatprep.subr.mxu0 0.0
        %2617 = vmatpush1.msra.mxu0 0.0
        %2618 = vmatprep.subr.mxu0 0.0
        %2619 = vmatpush1.msra.mxu0 0.0
        %2620 = vmatprep.subr.mxu0 0.0
        %2621 = vmatpush1.msra.mxu0 0.0
        %2622 = vmatprep.mubr.f32.mxu0 0.0
        %v2623 = vand.u32 %v2294, 4294901760
        %v2624 = vsub.f32 %v2294, %v2623
        %v2625 = vand.u32 %v2624, 4294901760
        %2626 = vmatmul.mubr.f32.gmra.mrb[0].mxu0 %v2625
        %v2627 = vpop.f32.mrb[0].mxu0
        %v2628 = vadd.f32 %v2546, %v2627
        %v2629 = vpop.f32.mrb[0].mxu0
        %2630 = vmatprep.mubr.f32.mxu0 0.0
        %v2631 = vand.u32 %v2297, 4294901760
        %v2632 = vsub.f32 %v2297, %v2631
        %v2633 = vand.u32 %v2632, 4294901760
        %2634 = vmatmul.mubr.f32.gmra.mrb[0].mxu0 %v2633
        %v2635 = vpop.f32.mrb[0].mxu0
        %v2636 = vadd.f32 %v2553, %v2635
        %v2637 = vpop.f32.mrb[0].mxu0
        %2638 = vdwg.mxu0
        %2639 = vmatprep.subr.mxu0 0.0
        %v2640 = vand.u32 %v276, 4294901760
        %v2641 = vsub.f32 %v276, %v2640
        %v2642 = vand.u32 %v2641, 4294901760
        %2643 = vmatpush1.msra.mxu0 %v2642
        %2644 = vmatprep.subr.mxu0 0.0
        %v2645 = vand.u32 %v277, 4294901760
        %v2646 = vsub.f32 %v277, %v2645
        %v2647 = vand.u32 %v2646, 4294901760
        %2648 = vmatpush1.msra.mxu0 %v2647
        %2649 = vmatprep.subr.mxu0 0.0
        %2650 = vmatpush1.msra.mxu0 0.0
        %2651 = vmatprep.subr.mxu0 0.0
        %2652 = vmatpush1.msra.mxu0 0.0
        %2653 = vmatprep.subr.mxu0 0.0
        %2654 = vmatpush1.msra.mxu0 0.0
        %2655 = vmatprep.subr.mxu0 0.0
        %2656 = vmatpush1.msra.mxu0 0.0
        %2657 = vmatprep.subr.mxu0 0.0
        %2658 = vmatpush1.msra.mxu0 0.0
        %2659 = vmatprep.subr.mxu0 0.0
        %2660 = vmatpush1.msra.mxu0 0.0
        %2661 = vmatprep.subr.mxu0 0.0
        %2662 = vmatpush1.msra.mxu0 0.0
        %2663 = vmatprep.subr.mxu0 0.0
        %2664 = vmatpush1.msra.mxu0 0.0
        %2665 = vmatprep.subr.mxu0 0.0
        %2666 = vmatpush1.msra.mxu0 0.0
        %2667 = vmatprep.subr.mxu0 0.0
        %2668 = vmatpush1.msra.mxu0 0.0
        %2669 = vmatprep.subr.mxu0 0.0
        %2670 = vmatpush1.msra.mxu0 0.0
        %2671 = vmatprep.subr.mxu0 0.0
        %2672 = vmatpush1.msra.mxu0 0.0
        %2673 = vmatprep.subr.mxu0 0.0
        %2674 = vmatpush1.msra.mxu0 0.0
        %2675 = vmatprep.subr.mxu0 0.0
        %2676 = vmatpush1.msra.mxu0 0.0
        %2677 = vmatprep.subr.mxu0 0.0
        %2678 = vmatpush1.msra.mxu0 0.0
        %2679 = vmatprep.subr.mxu0 0.0
        %2680 = vmatpush1.msra.mxu0 0.0
        %2681 = vmatprep.subr.mxu0 0.0
        %2682 = vmatpush1.msra.mxu0 0.0
        %2683 = vmatprep.subr.mxu0 0.0
        %2684 = vmatpush1.msra.mxu0 0.0
        %2685 = vmatprep.subr.mxu0 0.0
        %2686 = vmatpush1.msra.mxu0 0.0
        %2687 = vmatprep.subr.mxu0 0.0
        %2688 = vmatpush1.msra.mxu0 0.0
        %2689 = vmatprep.subr.mxu0 0.0
        %2690 = vmatpush1.msra.mxu0 0.0
        %2691 = vmatprep.subr.mxu0 0.0
        %2692 = vmatpush1.msra.mxu0 0.0
        %2693 = vmatprep.subr.mxu0 0.0
        %2694 = vmatpush1.msra.mxu0 0.0
        %2695 = vmatprep.subr.mxu0 0.0
        %2696 = vmatpush1.msra.mxu0 0.0
        %2697 = vmatprep.subr.mxu0 0.0
        %2698 = vmatpush1.msra.mxu0 0.0
        %2699 = vmatprep.subr.mxu0 0.0
        %2700 = vmatpush1.msra.mxu0 0.0
        %2701 = vmatprep.subr.mxu0 0.0
        %2702 = vmatpush1.msra.mxu0 0.0
        %2703 = vmatprep.subr.mxu0 0.0
        %2704 = vmatpush1.msra.mxu0 0.0
        %2705 = vmatprep.subr.mxu0 0.0
        %2706 = vmatpush1.msra.mxu0 0.0
        %2707 = vmatprep.subr.mxu0 0.0
        %2708 = vmatpush1.msra.mxu0 0.0
        %2709 = vmatprep.mubr.f32.mxu0 0.0
        %v2710 = vand.u32 %v2294, 4294901760
        %2711 = vmatmul.mubr.f32.gmra.mrb[0].mxu0 %v2710
        %v2712 = vpop.f32.mrb[0].mxu0
        %v2713 = vadd.f32 %v2628, %v2712
        %v2714 = vpop.f32.mrb[0].mxu0
        %2715 = vmatprep.mubr.f32.mxu0 0.0
        %v2716 = vand.u32 %v2297, 4294901760
        %2717 = vmatmul.mubr.f32.gmra.mrb[0].mxu0 %v2716
        %v2718 = vpop.f32.mrb[0].mxu0
        %v2719 = vadd.f32 %v2636, %v2718
        %v2720 = vpop.f32.mrb[0].mxu0
        %2721 = vdwg.mxu0
        %2722 = vmatprep.subr.mxu0 0.0
        %v2723 = vand.u32 %v276, 4294901760
        %2724 = vmatpush1.msra.mxu0 %v2723
        %2725 = vmatprep.subr.mxu0 0.0
        %v2726 = vand.u32 %v277, 4294901760
        %2727 = vmatpush1.msra.mxu0 %v2726
        %2728 = vmatprep.subr.mxu0 0.0
        %2729 = vmatpush1.msra.mxu0 0.0
        %2730 = vmatprep.subr.mxu0 0.0
        %2731 = vmatpush1.msra.mxu0 0.0
        %2732 = vmatprep.subr.mxu0 0.0
        %2733 = vmatpush1.msra.mxu0 0.0
        %2734 = vmatprep.subr.mxu0 0.0
        %2735 = vmatpush1.msra.mxu0 0.0
        %2736 = vmatprep.subr.mxu0 0.0
        %2737 = vmatpush1.msra.mxu0 0.0
        %2738 = vmatprep.subr.mxu0 0.0
        %2739 = vmatpush1.msra.mxu0 0.0
        %2740 = vmatprep.subr.mxu0 0.0
        %2741 = vmatpush1.msra.mxu0 0.0
        %2742 = vmatprep.subr.mxu0 0.0
        %2743 = vmatpush1.msra.mxu0 0.0
        %2744 = vmatprep.subr.mxu0 0.0
        %2745 = vmatpush1.msra.mxu0 0.0
        %2746 = vmatprep.subr.mxu0 0.0
        %2747 = vmatpush1.msra.mxu0 0.0
        %2748 = vmatprep.subr.mxu0 0.0
        %2749 = vmatpush1.msra.mxu0 0.0
        %2750 = vmatprep.subr.mxu0 0.0
        %2751 = vmatpush1.msra.mxu0 0.0
        %2752 = vmatprep.subr.mxu0 0.0
        %2753 = vmatpush1.msra.mxu0 0.0
        %2754 = vmatprep.subr.mxu0 0.0
        %2755 = vmatpush1.msra.mxu0 0.0
        %2756 = vmatprep.subr.mxu0 0.0
        %2757 = vmatpush1.msra.mxu0 0.0
        %2758 = vmatprep.subr.mxu0 0.0
        %2759 = vmatpush1.msra.mxu0 0.0
        %2760 = vmatprep.subr.mxu0 0.0
        %2761 = vmatpush1.msra.mxu0 0.0
        %2762 = vmatprep.subr.mxu0 0.0
        %2763 = vmatpush1.msra.mxu0 0.0
        %2764 = vmatprep.subr.mxu0 0.0
        %2765 = vmatpush1.msra.mxu0 0.0
        %2766 = vmatprep.subr.mxu0 0.0
        %2767 = vmatpush1.msra.mxu0 0.0
        %2768 = vmatprep.subr.mxu0 0.0
        %2769 = vmatpush1.msra.mxu0 0.0
        %2770 = vmatprep.subr.mxu0 0.0
        %2771 = vmatpush1.msra.mxu0 0.0
        %2772 = vmatprep.subr.mxu0 0.0
        %2773 = vmatpush1.msra.mxu0 0.0
        %2774 = vmatprep.subr.mxu0 0.0
        %2775 = vmatpush1.msra.mxu0 0.0
        %2776 = vmatprep.subr.mxu0 0.0
        %2777 = vmatpush1.msra.mxu0 0.0
        %2778 = vmatprep.subr.mxu0 0.0
        %2779 = vmatpush1.msra.mxu0 0.0
        %2780 = vmatprep.subr.mxu0 0.0
        %2781 = vmatpush1.msra.mxu0 0.0
        %2782 = vmatprep.subr.mxu0 0.0
        %2783 = vmatpush1.msra.mxu0 0.0
        %2784 = vmatprep.subr.mxu0 0.0
        %2785 = vmatpush1.msra.mxu0 0.0
        %2786 = vmatprep.subr.mxu0 0.0
        %2787 = vmatpush1.msra.mxu0 0.0
        %2788 = vmatprep.mubr.f32.mxu0 0.0
        %v2789 = vand.u32 %v2294, 4294901760
        %2790 = vmatmul.mubr.f32.gmra.mrb[0].mxu0 %v2789
        %v2791 = vpop.f32.mrb[0].mxu0
        %v2792 = vadd.f32 %v2713, %v2791
        %v2793 = vpop.f32.mrb[0].mxu0
        %2794 = vmatprep.mubr.f32.mxu0 0.0
        %v2795 = vand.u32 %v2297, 4294901760
        %2796 = vmatmul.mubr.f32.gmra.mrb[0].mxu0 %v2795
        %v2797 = vpop.f32.mrb[0].mxu0
        %v2798 = vadd.f32 %v2719, %v2797
        %v2799 = vpop.f32.mrb[0].mxu0
        %2800 = vdwg.mxu0
        %v2802 = vsel %vm278, %v1280, 0
        %v2805 = vsel %vm278, %v1286, 0
        %2807 = vmatprep.subr.mxu0 0.0
        %v2808 = vand.u32 %v276, 4294901760
        %2809 = vmatpush1.msra.mxu0 %v2808
        %2810 = vmatprep.subr.mxu0 0.0
        %v2811 = vand.u32 %v277, 4294901760
        %2812 = vmatpush1.msra.mxu0 %v2811
        %2813 = vmatprep.subr.mxu0 0.0
        %2814 = vmatpush1.msra.mxu0 0.0
        %2815 = vmatprep.subr.mxu0 0.0
        %2816 = vmatpush1.msra.mxu0 0.0
        %2817 = vmatprep.subr.mxu0 0.0
        %2818 = vmatpush1.msra.mxu0 0.0
        %2819 = vmatprep.subr.mxu0 0.0
        %2820 = vmatpush1.msra.mxu0 0.0
        %2821 = vmatprep.subr.mxu0 0.0
        %2822 = vmatpush1.msra.mxu0 0.0
        %2823 = vmatprep.subr.mxu0 0.0
        %2824 = vmatpush1.msra.mxu0 0.0
        %2825 = vmatprep.subr.mxu0 0.0
        %2826 = vmatpush1.msra.mxu0 0.0
        %2827 = vmatprep.subr.mxu0 0.0
        %2828 = vmatpush1.msra.mxu0 0.0
        %2829 = vmatprep.subr.mxu0 0.0
        %2830 = vmatpush1.msra.mxu0 0.0
        %2831 = vmatprep.subr.mxu0 0.0
        %2832 = vmatpush1.msra.mxu0 0.0
        %2833 = vmatprep.subr.mxu0 0.0
        %2834 = vmatpush1.msra.mxu0 0.0
        %2835 = vmatprep.subr.mxu0 0.0
        %2836 = vmatpush1.msra.mxu0 0.0
        %2837 = vmatprep.subr.mxu0 0.0
        %2838 = vmatpush1.msra.mxu0 0.0
        %2839 = vmatprep.subr.mxu0 0.0
        %2840 = vmatpush1.msra.mxu0 0.0
        %2841 = vmatprep.subr.mxu0 0.0
        %2842 = vmatpush1.msra.mxu0 0.0
        %2843 = vmatprep.subr.mxu0 0.0
        %2844 = vmatpush1.msra.mxu0 0.0
        %2845 = vmatprep.subr.mxu0 0.0
        %2846 = vmatpush1.msra.mxu0 0.0
        %2847 = vmatprep.subr.mxu0 0.0
        %2848 = vmatpush1.msra.mxu0 0.0
        %2849 = vmatprep.subr.mxu0 0.0
        %2850 = vmatpush1.msra.mxu0 0.0
        %2851 = vmatprep.subr.mxu0 0.0
        %2852 = vmatpush1.msra.mxu0 0.0
        %2853 = vmatprep.subr.mxu0 0.0
        %2854 = vmatpush1.msra.mxu0 0.0
        %2855 = vmatprep.subr.mxu0 0.0
        %2856 = vmatpush1.msra.mxu0 0.0
        %2857 = vmatprep.subr.mxu0 0.0
        %2858 = vmatpush1.msra.mxu0 0.0
        %2859 = vmatprep.subr.mxu0 0.0
        %2860 = vmatpush1.msra.mxu0 0.0
        %2861 = vmatprep.subr.mxu0 0.0
        %2862 = vmatpush1.msra.mxu0 0.0
        %2863 = vmatprep.subr.mxu0 0.0
        %2864 = vmatpush1.msra.mxu0 0.0
        %2865 = vmatprep.subr.mxu0 0.0
        %2866 = vmatpush1.msra.mxu0 0.0
        %2867 = vmatprep.subr.mxu0 0.0
        %2868 = vmatpush1.msra.mxu0 0.0
        %2869 = vmatprep.subr.mxu0 0.0
        %2870 = vmatpush1.msra.mxu0 0.0
        %2871 = vmatprep.subr.mxu0 0.0
        %2872 = vmatpush1.msra.mxu0 0.0
        %2873 = vmatprep.mubr.f32.mxu0 0.0
        %v2874 = vand.u32 %v2802, 4294901760
        %v2875 = vsub.f32 %v2802, %v2874
        %v2876 = vand.u32 %v2875, 4294901760
        %v2877 = vsub.f32 %v2875, %v2876
        %v2878 = vand.u32 %v2877, 4294901760
        %2879 = vmatmul.mubr.f32.gmra.mrb[0].mxu0 %v2878
        %v2880 = vpop.f32.mrb[0].mxu0
        %v2881 = vadd.f32 0.0, %v2880
        %v2882 = vpop.f32.mrb[0].mxu0
        %2883 = vmatprep.mubr.f32.mxu0 0.0
        %v2884 = vand.u32 %v2805, 4294901760
        %v2885 = vsub.f32 %v2805, %v2884
        %v2886 = vand.u32 %v2885, 4294901760
        %v2887 = vsub.f32 %v2885, %v2886
        %v2888 = vand.u32 %v2887, 4294901760
        %2889 = vmatmul.mubr.f32.gmra.mrb[0].mxu0 %v2888
        %v2890 = vpop.f32.mrb[0].mxu0
        %v2891 = vadd.f32 0.0, %v2890
        %v2892 = vpop.f32.mrb[0].mxu0
        %2893 = vdwg.mxu0
        %2894 = vmatprep.subr.mxu0 0.0
        %v2895 = vand.u32 %v276, 4294901760
        %v2896 = vsub.f32 %v276, %v2895
        %v2897 = vand.u32 %v2896, 4294901760
        %v2898 = vsub.f32 %v2896, %v2897
        %v2899 = vand.u32 %v2898, 4294901760
        %2900 = vmatpush1.msra.mxu0 %v2899
        %2901 = vmatprep.subr.mxu0 0.0
        %v2902 = vand.u32 %v277, 4294901760
        %v2903 = vsub.f32 %v277, %v2902
        %v2904 = vand.u32 %v2903, 4294901760
        %v2905 = vsub.f32 %v2903, %v2904
        %v2906 = vand.u32 %v2905, 4294901760
        %2907 = vmatpush1.msra.mxu0 %v2906
        %2908 = vmatprep.subr.mxu0 0.0
        %2909 = vmatpush1.msra.mxu0 0.0
        %2910 = vmatprep.subr.mxu0 0.0
        %2911 = vmatpush1.msra.mxu0 0.0
        %2912 = vmatprep.subr.mxu0 0.0
        %2913 = vmatpush1.msra.mxu0 0.0
        %2914 = vmatprep.subr.mxu0 0.0
        %2915 = vmatpush1.msra.mxu0 0.0
        %2916 = vmatprep.subr.mxu0 0.0
        %2917 = vmatpush1.msra.mxu0 0.0
        %2918 = vmatprep.subr.mxu0 0.0
        %2919 = vmatpush1.msra.mxu0 0.0
        %2920 = vmatprep.subr.mxu0 0.0
        %2921 = vmatpush1.msra.mxu0 0.0
        %2922 = vmatprep.subr.mxu0 0.0
        %2923 = vmatpush1.msra.mxu0 0.0
        %2924 = vmatprep.subr.mxu0 0.0
        %2925 = vmatpush1.msra.mxu0 0.0
        %2926 = vmatprep.subr.mxu0 0.0
        %2927 = vmatpush1.msra.mxu0 0.0
        %2928 = vmatprep.subr.mxu0 0.0
        %2929 = vmatpush1.msra.mxu0 0.0
        %2930 = vmatprep.subr.mxu0 0.0
        %2931 = vmatpush1.msra.mxu0 0.0
        %2932 = vmatprep.subr.mxu0 0.0
        %2933 = vmatpush1.msra.mxu0 0.0
        %2934 = vmatprep.subr.mxu0 0.0
        %2935 = vmatpush1.msra.mxu0 0.0
        %2936 = vmatprep.subr.mxu0 0.0
        %2937 = vmatpush1.msra.mxu0 0.0
        %2938 = vmatprep.subr.mxu0 0.0
        %2939 = vmatpush1.msra.mxu0 0.0
        %2940 = vmatprep.subr.mxu0 0.0
        %2941 = vmatpush1.msra.mxu0 0.0
        %2942 = vmatprep.subr.mxu0 0.0
        %2943 = vmatpush1.msra.mxu0 0.0
        %2944 = vmatprep.subr.mxu0 0.0
        %2945 = vmatpush1.msra.mxu0 0.0
        %2946 = vmatprep.subr.mxu0 0.0
        %2947 = vmatpush1.msra.mxu0 0.0
        %2948 = vmatprep.subr.mxu0 0.0
        %2949 = vmatpush1.msra.mxu0 0.0
        %2950 = vmatprep.subr.mxu0 0.0
        %2951 = vmatpush1.msra.mxu0 0.0
        %2952 = vmatprep.subr.mxu0 0.0
        %2953 = vmatpush1.msra.mxu0 0.0
        %2954 = vmatprep.subr.mxu0 0.0
        %2955 = vmatpush1.msra.mxu0 0.0
        %2956 = vmatprep.subr.mxu0 0.0
        %2957 = vmatpush1.msra.mxu0 0.0
        %2958 = vmatprep.subr.mxu0 0.0
        %2959 = vmatpush1.msra.mxu0 0.0
        %2960 = vmatprep.subr.mxu0 0.0
        %2961 = vmatpush1.msra.mxu0 0.0
        %2962 = vmatprep.subr.mxu0 0.0
        %2963 = vmatpush1.msra.mxu0 0.0
        %2964 = vmatprep.subr.mxu0 0.0
        %2965 = vmatpush1.msra.mxu0 0.0
        %2966 = vmatprep.subr.mxu0 0.0
        %2967 = vmatpush1.msra.mxu0 0.0
        %2968 = vmatprep.mubr.f32.mxu0 0.0
        %v2969 = vand.u32 %v2802, 4294901760
        %2970 = vmatmul.mubr.f32.gmra.mrb[0].mxu0 %v2969
        %v2971 = vpop.f32.mrb[0].mxu0
        %v2972 = vadd.f32 %v2881, %v2971
        %v2973 = vpop.f32.mrb[0].mxu0
        %2974 = vmatprep.mubr.f32.mxu0 0.0
        %v2975 = vand.u32 %v2805, 4294901760
        %2976 = vmatmul.mubr.f32.gmra.mrb[0].mxu0 %v2975
        %v2977 = vpop.f32.mrb[0].mxu0
        %v2978 = vadd.f32 %v2891, %v2977
        %v2979 = vpop.f32.mrb[0].mxu0
        %2980 = vdwg.mxu0
        %2981 = vmatprep.subr.mxu0 0.0
        %v2982 = vand.u32 %v276, 4294901760
        %v2983 = vsub.f32 %v276, %v2982
        %2984 = vmatpush1.msra.mxu0 %v2983
        %2985 = vmatprep.subr.mxu0 0.0
        %v2986 = vand.u32 %v277, 4294901760
        %v2987 = vsub.f32 %v277, %v2986
        %2988 = vmatpush1.msra.mxu0 %v2987
        %2989 = vmatprep.subr.mxu0 0.0
        %2990 = vmatpush1.msra.mxu0 0.0
        %2991 = vmatprep.subr.mxu0 0.0
        %2992 = vmatpush1.msra.mxu0 0.0
        %2993 = vmatprep.subr.mxu0 0.0
        %2994 = vmatpush1.msra.mxu0 0.0
        %2995 = vmatprep.subr.mxu0 0.0
        %2996 = vmatpush1.msra.mxu0 0.0
        %2997 = vmatprep.subr.mxu0 0.0
        %2998 = vmatpush1.msra.mxu0 0.0
        %2999 = vmatprep.subr.mxu0 0.0
        %3000 = vmatpush1.msra.mxu0 0.0
        %3001 = vmatprep.subr.mxu0 0.0
        %3002 = vmatpush1.msra.mxu0 0.0
        %3003 = vmatprep.subr.mxu0 0.0
        %3004 = vmatpush1.msra.mxu0 0.0
        %3005 = vmatprep.subr.mxu0 0.0
        %3006 = vmatpush1.msra.mxu0 0.0
        %3007 = vmatprep.subr.mxu0 0.0
        %3008 = vmatpush1.msra.mxu0 0.0
        %3009 = vmatprep.subr.mxu0 0.0
        %3010 = vmatpush1.msra.mxu0 0.0
        %3011 = vmatprep.subr.mxu0 0.0
        %3012 = vmatpush1.msra.mxu0 0.0
        %3013 = vmatprep.subr.mxu0 0.0
        %3014 = vmatpush1.msra.mxu0 0.0
        %3015 = vmatprep.subr.mxu0 0.0
        %3016 = vmatpush1.msra.mxu0 0.0
        %3017 = vmatprep.subr.mxu0 0.0
        %3018 = vmatpush1.msra.mxu0 0.0
        %3019 = vmatprep.subr.mxu0 0.0
        %3020 = vmatpush1.msra.mxu0 0.0
        %3021 = vmatprep.subr.mxu0 0.0
        %3022 = vmatpush1.msra.mxu0 0.0
        %3023 = vmatprep.subr.mxu0 0.0
        %3024 = vmatpush1.msra.mxu0 0.0
        %3025 = vmatprep.subr.mxu0 0.0
        %3026 = vmatpush1.msra.mxu0 0.0
        %3027 = vmatprep.subr.mxu0 0.0
        %3028 = vmatpush1.msra.mxu0 0.0
        %3029 = vmatprep.subr.mxu0 0.0
        %3030 = vmatpush1.msra.mxu0 0.0
        %3031 = vmatprep.subr.mxu0 0.0
        %3032 = vmatpush1.msra.mxu0 0.0
        %3033 = vmatprep.subr.mxu0 0.0
        %3034 = vmatpush1.msra.mxu0 0.0
        %3035 = vmatprep.subr.mxu0 0.0
        %3036 = vmatpush1.msra.mxu0 0.0
        %3037 = vmatprep.subr.mxu0 0.0
        %3038 = vmatpush1.msra.mxu0 0.0
        %3039 = vmatprep.subr.mxu0 0.0
        %3040 = vmatpush1.msra.mxu0 0.0
        %3041 = vmatprep.subr.mxu0 0.0
        %3042 = vmatpush1.msra.mxu0 0.0
        %3043 = vmatprep.subr.mxu0 0.0
        %3044 = vmatpush1.msra.mxu0 0.0
        %3045 = vmatprep.subr.mxu0 0.0
        %3046 = vmatpush1.msra.mxu0 0.0
        %3047 = vmatprep.subr.mxu0 0.0
        %3048 = vmatpush1.msra.mxu0 0.0
        %3049 = vmatprep.mubr.f32.mxu0 0.0
        %v3050 = vand.u32 %v2802, 4294901760
        %v3051 = vsub.f32 %v2802, %v3050
        %3052 = vmatmul.mubr.f32.gmra.mrb[0].mxu0 %v3051
        %v3053 = vpop.f32.mrb[0].mxu0
        %v3054 = vadd.f32 %v2972, %v3053
        %v3055 = vpop.f32.mrb[0].mxu0
        %3056 = vmatprep.mubr.f32.mxu0 0.0
        %v3057 = vand.u32 %v2805, 4294901760
        %v3058 = vsub.f32 %v2805, %v3057
        %3059 = vmatmul.mubr.f32.gmra.mrb[0].mxu0 %v3058
        %v3060 = vpop.f32.mrb[0].mxu0
        %v3061 = vadd.f32 %v2978, %v3060
        %v3062 = vpop.f32.mrb[0].mxu0
        %3063 = vdwg.mxu0
        %3064 = vmatprep.subr.mxu0 0.0
        %v3065 = vand.u32 %v276, 4294901760
        %3066 = vmatpush1.msra.mxu0 %v3065
        %3067 = vmatprep.subr.mxu0 0.0
        %v3068 = vand.u32 %v277, 4294901760
        %3069 = vmatpush1.msra.mxu0 %v3068
        %3070 = vmatprep.subr.mxu0 0.0
        %3071 = vmatpush1.msra.mxu0 0.0
        %3072 = vmatprep.subr.mxu0 0.0
        %3073 = vmatpush1.msra.mxu0 0.0
        %3074 = vmatprep.subr.mxu0 0.0
        %3075 = vmatpush1.msra.mxu0 0.0
        %3076 = vmatprep.subr.mxu0 0.0
        %3077 = vmatpush1.msra.mxu0 0.0
        %3078 = vmatprep.subr.mxu0 0.0
        %3079 = vmatpush1.msra.mxu0 0.0
        %3080 = vmatprep.subr.mxu0 0.0
        %3081 = vmatpush1.msra.mxu0 0.0
        %3082 = vmatprep.subr.mxu0 0.0
        %3083 = vmatpush1.msra.mxu0 0.0
        %3084 = vmatprep.subr.mxu0 0.0
        %3085 = vmatpush1.msra.mxu0 0.0
        %3086 = vmatprep.subr.mxu0 0.0
        %3087 = vmatpush1.msra.mxu0 0.0
        %3088 = vmatprep.subr.mxu0 0.0
        %3089 = vmatpush1.msra.mxu0 0.0
        %3090 = vmatprep.subr.mxu0 0.0
        %3091 = vmatpush1.msra.mxu0 0.0
        %3092 = vmatprep.subr.mxu0 0.0
        %3093 = vmatpush1.msra.mxu0 0.0
        %3094 = vmatprep.subr.mxu0 0.0
        %3095 = vmatpush1.msra.mxu0 0.0
        %3096 = vmatprep.subr.mxu0 0.0
        %3097 = vmatpush1.msra.mxu0 0.0
        %3098 = vmatprep.subr.mxu0 0.0
        %3099 = vmatpush1.msra.mxu0 0.0
        %3100 = vmatprep.subr.mxu0 0.0
        %3101 = vmatpush1.msra.mxu0 0.0
        %3102 = vmatprep.subr.mxu0 0.0
        %3103 = vmatpush1.msra.mxu0 0.0
        %3104 = vmatprep.subr.mxu0 0.0
        %3105 = vmatpush1.msra.mxu0 0.0
        %3106 = vmatprep.subr.mxu0 0.0
        %3107 = vmatpush1.msra.mxu0 0.0
        %3108 = vmatprep.subr.mxu0 0.0
        %3109 = vmatpush1.msra.mxu0 0.0
        %3110 = vmatprep.subr.mxu0 0.0
        %3111 = vmatpush1.msra.mxu0 0.0
        %3112 = vmatprep.subr.mxu0 0.0
        %3113 = vmatpush1.msra.mxu0 0.0
        %3114 = vmatprep.subr.mxu0 0.0
        %3115 = vmatpush1.msra.mxu0 0.0
        %3116 = vmatprep.subr.mxu0 0.0
        %3117 = vmatpush1.msra.mxu0 0.0
        %3118 = vmatprep.subr.mxu0 0.0
        %3119 = vmatpush1.msra.mxu0 0.0
        %3120 = vmatprep.subr.mxu0 0.0
        %3121 = vmatpush1.msra.mxu0 0.0
        %3122 = vmatprep.subr.mxu0 0.0
        %3123 = vmatpush1.msra.mxu0 0.0
        %3124 = vmatprep.subr.mxu0 0.0
        %3125 = vmatpush1.msra.mxu0 0.0
        %3126 = vmatprep.subr.mxu0 0.0
        %3127 = vmatpush1.msra.mxu0 0.0
        %3128 = vmatprep.subr.mxu0 0.0
        %3129 = vmatpush1.msra.mxu0 0.0
        %3130 = vmatprep.mubr.f32.mxu0 0.0
        %v3131 = vand.u32 %v2802, 4294901760
        %v3132 = vsub.f32 %v2802, %v3131
        %v3133 = vand.u32 %v3132, 4294901760
        %3134 = vmatmul.mubr.f32.gmra.mrb[0].mxu0 %v3133
        %v3135 = vpop.f32.mrb[0].mxu0
        %v3136 = vadd.f32 %v3054, %v3135
        %v3137 = vpop.f32.mrb[0].mxu0
        %3138 = vmatprep.mubr.f32.mxu0 0.0
        %v3139 = vand.u32 %v2805, 4294901760
        %v3140 = vsub.f32 %v2805, %v3139
        %v3141 = vand.u32 %v3140, 4294901760
        %3142 = vmatmul.mubr.f32.gmra.mrb[0].mxu0 %v3141
        %v3143 = vpop.f32.mrb[0].mxu0
        %v3144 = vadd.f32 %v3061, %v3143
        %v3145 = vpop.f32.mrb[0].mxu0
        %3146 = vdwg.mxu0
        %3147 = vmatprep.subr.mxu0 0.0
        %v3148 = vand.u32 %v276, 4294901760
        %v3149 = vsub.f32 %v276, %v3148
        %v3150 = vand.u32 %v3149, 4294901760
        %3151 = vmatpush1.msra.mxu0 %v3150
        %3152 = vmatprep.subr.mxu0 0.0
        %v3153 = vand.u32 %v277, 4294901760
        %v3154 = vsub.f32 %v277, %v3153
        %v3155 = vand.u32 %v3154, 4294901760
        %3156 = vmatpush1.msra.mxu0 %v3155
        %3157 = vmatprep.subr.mxu0 0.0
        %3158 = vmatpush1.msra.mxu0 0.0
        %3159 = vmatprep.subr.mxu0 0.0
        %3160 = vmatpush1.msra.mxu0 0.0
        %3161 = vmatprep.subr.mxu0 0.0
        %3162 = vmatpush1.msra.mxu0 0.0
        %3163 = vmatprep.subr.mxu0 0.0
        %3164 = vmatpush1.msra.mxu0 0.0
        %3165 = vmatprep.subr.mxu0 0.0
        %3166 = vmatpush1.msra.mxu0 0.0
        %3167 = vmatprep.subr.mxu0 0.0
        %3168 = vmatpush1.msra.mxu0 0.0
        %3169 = vmatprep.subr.mxu0 0.0
        %3170 = vmatpush1.msra.mxu0 0.0
        %3171 = vmatprep.subr.mxu0 0.0
        %3172 = vmatpush1.msra.mxu0 0.0
        %3173 = vmatprep.subr.mxu0 0.0
        %3174 = vmatpush1.msra.mxu0 0.0
        %3175 = vmatprep.subr.mxu0 0.0
        %3176 = vmatpush1.msra.mxu0 0.0
        %3177 = vmatprep.subr.mxu0 0.0
        %3178 = vmatpush1.msra.mxu0 0.0
        %3179 = vmatprep.subr.mxu0 0.0
        %3180 = vmatpush1.msra.mxu0 0.0
        %3181 = vmatprep.subr.mxu0 0.0
        %3182 = vmatpush1.msra.mxu0 0.0
        %3183 = vmatprep.subr.mxu0 0.0
        %3184 = vmatpush1.msra.mxu0 0.0
        %3185 = vmatprep.subr.mxu0 0.0
        %3186 = vmatpush1.msra.mxu0 0.0
        %3187 = vmatprep.subr.mxu0 0.0
        %3188 = vmatpush1.msra.mxu0 0.0
        %3189 = vmatprep.subr.mxu0 0.0
        %3190 = vmatpush1.msra.mxu0 0.0
        %3191 = vmatprep.subr.mxu0 0.0
        %3192 = vmatpush1.msra.mxu0 0.0
        %3193 = vmatprep.subr.mxu0 0.0
        %3194 = vmatpush1.msra.mxu0 0.0
        %3195 = vmatprep.subr.mxu0 0.0
        %3196 = vmatpush1.msra.mxu0 0.0
        %3197 = vmatprep.subr.mxu0 0.0
        %3198 = vmatpush1.msra.mxu0 0.0
        %3199 = vmatprep.subr.mxu0 0.0
        %3200 = vmatpush1.msra.mxu0 0.0
        %3201 = vmatprep.subr.mxu0 0.0
        %3202 = vmatpush1.msra.mxu0 0.0
        %3203 = vmatprep.subr.mxu0 0.0
        %3204 = vmatpush1.msra.mxu0 0.0
        %3205 = vmatprep.subr.mxu0 0.0
        %3206 = vmatpush1.msra.mxu0 0.0
        %3207 = vmatprep.subr.mxu0 0.0
        %3208 = vmatpush1.msra.mxu0 0.0
        %3209 = vmatprep.subr.mxu0 0.0
        %3210 = vmatpush1.msra.mxu0 0.0
        %3211 = vmatprep.subr.mxu0 0.0
        %3212 = vmatpush1.msra.mxu0 0.0
        %3213 = vmatprep.subr.mxu0 0.0
        %3214 = vmatpush1.msra.mxu0 0.0
        %3215 = vmatprep.subr.mxu0 0.0
        %3216 = vmatpush1.msra.mxu0 0.0
        %3217 = vmatprep.mubr.f32.mxu0 0.0
        %v3218 = vand.u32 %v2802, 4294901760
        %3219 = vmatmul.mubr.f32.gmra.mrb[0].mxu0 %v3218
        %v3220 = vpop.f32.mrb[0].mxu0
        %v3221 = vadd.f32 %v3136, %v3220
        %v3222 = vpop.f32.mrb[0].mxu0
        %3223 = vmatprep.mubr.f32.mxu0 0.0
        %v3224 = vand.u32 %v2805, 4294901760
        %3225 = vmatmul.mubr.f32.gmra.mrb[0].mxu0 %v3224
        %v3226 = vpop.f32.mrb[0].mxu0
        %v3227 = vadd.f32 %v3144, %v3226
        %v3228 = vpop.f32.mrb[0].mxu0
        %3229 = vdwg.mxu0
        %3230 = vmatprep.subr.mxu0 0.0
        %v3231 = vand.u32 %v276, 4294901760
        %3232 = vmatpush1.msra.mxu0 %v3231
        %3233 = vmatprep.subr.mxu0 0.0
        %v3234 = vand.u32 %v277, 4294901760
        %3235 = vmatpush1.msra.mxu0 %v3234
        %3236 = vmatprep.subr.mxu0 0.0
        %3237 = vmatpush1.msra.mxu0 0.0
        %3238 = vmatprep.subr.mxu0 0.0
        %3239 = vmatpush1.msra.mxu0 0.0
        %3240 = vmatprep.subr.mxu0 0.0
        %3241 = vmatpush1.msra.mxu0 0.0
        %3242 = vmatprep.subr.mxu0 0.0
        %3243 = vmatpush1.msra.mxu0 0.0
        %3244 = vmatprep.subr.mxu0 0.0
        %3245 = vmatpush1.msra.mxu0 0.0
        %3246 = vmatprep.subr.mxu0 0.0
        %3247 = vmatpush1.msra.mxu0 0.0
        %3248 = vmatprep.subr.mxu0 0.0
        %3249 = vmatpush1.msra.mxu0 0.0
        %3250 = vmatprep.subr.mxu0 0.0
        %3251 = vmatpush1.msra.mxu0 0.0
        %3252 = vmatprep.subr.mxu0 0.0
        %3253 = vmatpush1.msra.mxu0 0.0
        %3254 = vmatprep.subr.mxu0 0.0
        %3255 = vmatpush1.msra.mxu0 0.0
        %3256 = vmatprep.subr.mxu0 0.0
        %3257 = vmatpush1.msra.mxu0 0.0
        %3258 = vmatprep.subr.mxu0 0.0
        %3259 = vmatpush1.msra.mxu0 0.0
        %3260 = vmatprep.subr.mxu0 0.0
        %3261 = vmatpush1.msra.mxu0 0.0
        %3262 = vmatprep.subr.mxu0 0.0
        %3263 = vmatpush1.msra.mxu0 0.0
        %3264 = vmatprep.subr.mxu0 0.0
        %3265 = vmatpush1.msra.mxu0 0.0
        %3266 = vmatprep.subr.mxu0 0.0
        %3267 = vmatpush1.msra.mxu0 0.0
        %3268 = vmatprep.subr.mxu0 0.0
        %3269 = vmatpush1.msra.mxu0 0.0
        %3270 = vmatprep.subr.mxu0 0.0
        %3271 = vmatpush1.msra.mxu0 0.0
        %3272 = vmatprep.subr.mxu0 0.0
        %3273 = vmatpush1.msra.mxu0 0.0
        %3274 = vmatprep.subr.mxu0 0.0
        %3275 = vmatpush1.msra.mxu0 0.0
        %3276 = vmatprep.subr.mxu0 0.0
        %3277 = vmatpush1.msra.mxu0 0.0
        %3278 = vmatprep.subr.mxu0 0.0
        %3279 = vmatpush1.msra.mxu0 0.0
        %3280 = vmatprep.subr.mxu0 0.0
        %3281 = vmatpush1.msra.mxu0 0.0
        %3282 = vmatprep.subr.mxu0 0.0
        %3283 = vmatpush1.msra.mxu0 0.0
        %3284 = vmatprep.subr.mxu0 0.0
        %3285 = vmatpush1.msra.mxu0 0.0
        %3286 = vmatprep.subr.mxu0 0.0
        %3287 = vmatpush1.msra.mxu0 0.0
        %3288 = vmatprep.subr.mxu0 0.0
        %3289 = vmatpush1.msra.mxu0 0.0
        %3290 = vmatprep.subr.mxu0 0.0
        %3291 = vmatpush1.msra.mxu0 0.0
        %3292 = vmatprep.subr.mxu0 0.0
        %3293 = vmatpush1.msra.mxu0 0.0
        %3294 = vmatprep.subr.mxu0 0.0
        %3295 = vmatpush1.msra.mxu0 0.0
        %3296 = vmatprep.mubr.f32.mxu0 0.0
        %v3297 = vand.u32 %v2802, 4294901760
        %3298 = vmatmul.mubr.f32.gmra.mrb[0].mxu0 %v3297
        %v3299 = vpop.f32.mrb[0].mxu0
        %v3300 = vadd.f32 %v3221, %v3299
        %v3301 = vpop.f32.mrb[0].mxu0
        %3302 = vmatprep.mubr.f32.mxu0 0.0
        %v3303 = vand.u32 %v2805, 4294901760
        %3304 = vmatmul.mubr.f32.gmra.mrb[0].mxu0 %v3303
        %v3305 = vpop.f32.mrb[0].mxu0
        %v3306 = vadd.f32 %v3227, %v3305
        %v3307 = vpop.f32.mrb[0].mxu0
        %3308 = vdwg.mxu0
        %v3310 = vsel %vm278, %v1782, 0
        %v3313 = vsel %vm278, %v1788, 0
        %3315 = vmatprep.subr.mxu0 0.0
        %v3316 = vand.u32 %v276, 4294901760
        %3317 = vmatpush1.msra.mxu0 %v3316
        %3318 = vmatprep.subr.mxu0 0.0
        %v3319 = vand.u32 %v277, 4294901760
        %3320 = vmatpush1.msra.mxu0 %v3319
        %3321 = vmatprep.subr.mxu0 0.0
        %3322 = vmatpush1.msra.mxu0 0.0
        %3323 = vmatprep.subr.mxu0 0.0
        %3324 = vmatpush1.msra.mxu0 0.0
        %3325 = vmatprep.subr.mxu0 0.0
        %3326 = vmatpush1.msra.mxu0 0.0
        %3327 = vmatprep.subr.mxu0 0.0
        %3328 = vmatpush1.msra.mxu0 0.0
        %3329 = vmatprep.subr.mxu0 0.0
        %3330 = vmatpush1.msra.mxu0 0.0
        %3331 = vmatprep.subr.mxu0 0.0
        %3332 = vmatpush1.msra.mxu0 0.0
        %3333 = vmatprep.subr.mxu0 0.0
        %3334 = vmatpush1.msra.mxu0 0.0
        %3335 = vmatprep.subr.mxu0 0.0
        %3336 = vmatpush1.msra.mxu0 0.0
        %3337 = vmatprep.subr.mxu0 0.0
        %3338 = vmatpush1.msra.mxu0 0.0
        %3339 = vmatprep.subr.mxu0 0.0
        %3340 = vmatpush1.msra.mxu0 0.0
        %3341 = vmatprep.subr.mxu0 0.0
        %3342 = vmatpush1.msra.mxu0 0.0
        %3343 = vmatprep.subr.mxu0 0.0
        %3344 = vmatpush1.msra.mxu0 0.0
        %3345 = vmatprep.subr.mxu0 0.0
        %3346 = vmatpush1.msra.mxu0 0.0
        %3347 = vmatprep.subr.mxu0 0.0
        %3348 = vmatpush1.msra.mxu0 0.0
        %3349 = vmatprep.subr.mxu0 0.0
        %3350 = vmatpush1.msra.mxu0 0.0
        %3351 = vmatprep.subr.mxu0 0.0
        %3352 = vmatpush1.msra.mxu0 0.0
        %3353 = vmatprep.subr.mxu0 0.0
        %3354 = vmatpush1.msra.mxu0 0.0
        %3355 = vmatprep.subr.mxu0 0.0
        %3356 = vmatpush1.msra.mxu0 0.0
        %3357 = vmatprep.subr.mxu0 0.0
        %3358 = vmatpush1.msra.mxu0 0.0
        %3359 = vmatprep.subr.mxu0 0.0
        %3360 = vmatpush1.msra.mxu0 0.0
        %3361 = vmatprep.subr.mxu0 0.0
        %3362 = vmatpush1.msra.mxu0 0.0
        %3363 = vmatprep.subr.mxu0 0.0
        %3364 = vmatpush1.msra.mxu0 0.0
        %3365 = vmatprep.subr.mxu0 0.0
        %3366 = vmatpush1.msra.mxu0 0.0
        %3367 = vmatprep.subr.mxu0 0.0
        %3368 = vmatpush1.msra.mxu0 0.0
        %3369 = vmatprep.subr.mxu0 0.0
        %3370 = vmatpush1.msra.mxu0 0.0
        %3371 = vmatprep.subr.mxu0 0.0
        %3372 = vmatpush1.msra.mxu0 0.0
        %3373 = vmatprep.subr.mxu0 0.0
        %3374 = vmatpush1.msra.mxu0 0.0
        %3375 = vmatprep.subr.mxu0 0.0
        %3376 = vmatpush1.msra.mxu0 0.0
        %3377 = vmatprep.subr.mxu0 0.0
        %3378 = vmatpush1.msra.mxu0 0.0
        %3379 = vmatprep.subr.mxu0 0.0
        %3380 = vmatpush1.msra.mxu0 0.0
        %3381 = vmatprep.mubr.f32.mxu0 0.0
        %v3382 = vand.u32 %v3310, 4294901760
        %v3383 = vsub.f32 %v3310, %v3382
        %v3384 = vand.u32 %v3383, 4294901760
        %v3385 = vsub.f32 %v3383, %v3384
        %v3386 = vand.u32 %v3385, 4294901760
        %3387 = vmatmul.mubr.f32.gmra.mrb[0].mxu0 %v3386
        %v3388 = vpop.f32.mrb[0].mxu0
        %v3389 = vadd.f32 0.0, %v3388
        %v3390 = vpop.f32.mrb[0].mxu0
        %3391 = vmatprep.mubr.f32.mxu0 0.0
        %v3392 = vand.u32 %v3313, 4294901760
        %v3393 = vsub.f32 %v3313, %v3392
        %v3394 = vand.u32 %v3393, 4294901760
        %v3395 = vsub.f32 %v3393, %v3394
        %v3396 = vand.u32 %v3395, 4294901760
        %3397 = vmatmul.mubr.f32.gmra.mrb[0].mxu0 %v3396
        %v3398 = vpop.f32.mrb[0].mxu0
        %v3399 = vadd.f32 0.0, %v3398
        %v3400 = vpop.f32.mrb[0].mxu0
        %3401 = vdwg.mxu0
        %3402 = vmatprep.subr.mxu0 0.0
        %v3403 = vand.u32 %v276, 4294901760
        %v3404 = vsub.f32 %v276, %v3403
        %v3405 = vand.u32 %v3404, 4294901760
        %v3406 = vsub.f32 %v3404, %v3405
        %v3407 = vand.u32 %v3406, 4294901760
        %3408 = vmatpush1.msra.mxu0 %v3407
        %3409 = vmatprep.subr.mxu0 0.0
        %v3410 = vand.u32 %v277, 4294901760
        %v3411 = vsub.f32 %v277, %v3410
        %v3412 = vand.u32 %v3411, 4294901760
        %v3413 = vsub.f32 %v3411, %v3412
        %v3414 = vand.u32 %v3413, 4294901760
        %3415 = vmatpush1.msra.mxu0 %v3414
        %3416 = vmatprep.subr.mxu0 0.0
        %3417 = vmatpush1.msra.mxu0 0.0
        %3418 = vmatprep.subr.mxu0 0.0
        %3419 = vmatpush1.msra.mxu0 0.0
        %3420 = vmatprep.subr.mxu0 0.0
        %3421 = vmatpush1.msra.mxu0 0.0
        %3422 = vmatprep.subr.mxu0 0.0
        %3423 = vmatpush1.msra.mxu0 0.0
        %3424 = vmatprep.subr.mxu0 0.0
        %3425 = vmatpush1.msra.mxu0 0.0
        %3426 = vmatprep.subr.mxu0 0.0
        %3427 = vmatpush1.msra.mxu0 0.0
        %3428 = vmatprep.subr.mxu0 0.0
        %3429 = vmatpush1.msra.mxu0 0.0
        %3430 = vmatprep.subr.mxu0 0.0
        %3431 = vmatpush1.msra.mxu0 0.0
        %3432 = vmatprep.subr.mxu0 0.0
        %3433 = vmatpush1.msra.mxu0 0.0
        %3434 = vmatprep.subr.mxu0 0.0
        %3435 = vmatpush1.msra.mxu0 0.0
        %3436 = vmatprep.subr.mxu0 0.0
        %3437 = vmatpush1.msra.mxu0 0.0
        %3438 = vmatprep.subr.mxu0 0.0
        %3439 = vmatpush1.msra.mxu0 0.0
        %3440 = vmatprep.subr.mxu0 0.0
        %3441 = vmatpush1.msra.mxu0 0.0
        %3442 = vmatprep.subr.mxu0 0.0
        %3443 = vmatpush1.msra.mxu0 0.0
        %3444 = vmatprep.subr.mxu0 0.0
        %3445 = vmatpush1.msra.mxu0 0.0
        %3446 = vmatprep.subr.mxu0 0.0
        %3447 = vmatpush1.msra.mxu0 0.0
        %3448 = vmatprep.subr.mxu0 0.0
        %3449 = vmatpush1.msra.mxu0 0.0
        %3450 = vmatprep.subr.mxu0 0.0
        %3451 = vmatpush1.msra.mxu0 0.0
        %3452 = vmatprep.subr.mxu0 0.0
        %3453 = vmatpush1.msra.mxu0 0.0
        %3454 = vmatprep.subr.mxu0 0.0
        %3455 = vmatpush1.msra.mxu0 0.0
        %3456 = vmatprep.subr.mxu0 0.0
        %3457 = vmatpush1.msra.mxu0 0.0
        %3458 = vmatprep.subr.mxu0 0.0
        %3459 = vmatpush1.msra.mxu0 0.0
        %3460 = vmatprep.subr.mxu0 0.0
        %3461 = vmatpush1.msra.mxu0 0.0
        %3462 = vmatprep.subr.mxu0 0.0
        %3463 = vmatpush1.msra.mxu0 0.0
        %3464 = vmatprep.subr.mxu0 0.0
        %3465 = vmatpush1.msra.mxu0 0.0
        %3466 = vmatprep.subr.mxu0 0.0
        %3467 = vmatpush1.msra.mxu0 0.0
        %3468 = vmatprep.subr.mxu0 0.0
        %3469 = vmatpush1.msra.mxu0 0.0
        %3470 = vmatprep.subr.mxu0 0.0
        %3471 = vmatpush1.msra.mxu0 0.0
        %3472 = vmatprep.subr.mxu0 0.0
        %3473 = vmatpush1.msra.mxu0 0.0
        %3474 = vmatprep.subr.mxu0 0.0
        %3475 = vmatpush1.msra.mxu0 0.0
        %3476 = vmatprep.mubr.f32.mxu0 0.0
        %v3477 = vand.u32 %v3310, 4294901760
        %3478 = vmatmul.mubr.f32.gmra.mrb[0].mxu0 %v3477
        %v3479 = vpop.f32.mrb[0].mxu0
        %v3480 = vadd.f32 %v3389, %v3479
        %v3481 = vpop.f32.mrb[0].mxu0
        %3482 = vmatprep.mubr.f32.mxu0 0.0
        %v3483 = vand.u32 %v3313, 4294901760
        %3484 = vmatmul.mubr.f32.gmra.mrb[0].mxu0 %v3483
        %v3485 = vpop.f32.mrb[0].mxu0
        %v3486 = vadd.f32 %v3399, %v3485
        %v3487 = vpop.f32.mrb[0].mxu0
        %3488 = vdwg.mxu0
        %3489 = vmatprep.subr.mxu0 0.0
        %v3490 = vand.u32 %v276, 4294901760
        %v3491 = vsub.f32 %v276, %v3490
        %3492 = vmatpush1.msra.mxu0 %v3491
        %3493 = vmatprep.subr.mxu0 0.0
        %v3494 = vand.u32 %v277, 4294901760
        %v3495 = vsub.f32 %v277, %v3494
        %3496 = vmatpush1.msra.mxu0 %v3495
        %3497 = vmatprep.subr.mxu0 0.0
        %3498 = vmatpush1.msra.mxu0 0.0
        %3499 = vmatprep.subr.mxu0 0.0
        %3500 = vmatpush1.msra.mxu0 0.0
        %3501 = vmatprep.subr.mxu0 0.0
        %3502 = vmatpush1.msra.mxu0 0.0
        %3503 = vmatprep.subr.mxu0 0.0
        %3504 = vmatpush1.msra.mxu0 0.0
        %3505 = vmatprep.subr.mxu0 0.0
        %3506 = vmatpush1.msra.mxu0 0.0
        %3507 = vmatprep.subr.mxu0 0.0
        %3508 = vmatpush1.msra.mxu0 0.0
        %3509 = vmatprep.subr.mxu0 0.0
        %3510 = vmatpush1.msra.mxu0 0.0
        %3511 = vmatprep.subr.mxu0 0.0
        %3512 = vmatpush1.msra.mxu0 0.0
        %3513 = vmatprep.subr.mxu0 0.0
        %3514 = vmatpush1.msra.mxu0 0.0
        %3515 = vmatprep.subr.mxu0 0.0
        %3516 = vmatpush1.msra.mxu0 0.0
        %3517 = vmatprep.subr.mxu0 0.0
        %3518 = vmatpush1.msra.mxu0 0.0
        %3519 = vmatprep.subr.mxu0 0.0
        %3520 = vmatpush1.msra.mxu0 0.0
        %3521 = vmatprep.subr.mxu0 0.0
        %3522 = vmatpush1.msra.mxu0 0.0
        %3523 = vmatprep.subr.mxu0 0.0
        %3524 = vmatpush1.msra.mxu0 0.0
        %3525 = vmatprep.subr.mxu0 0.0
        %3526 = vmatpush1.msra.mxu0 0.0
        %3527 = vmatprep.subr.mxu0 0.0
        %3528 = vmatpush1.msra.mxu0 0.0
        %3529 = vmatprep.subr.mxu0 0.0
        %3530 = vmatpush1.msra.mxu0 0.0
        %3531 = vmatprep.subr.mxu0 0.0
        %3532 = vmatpush1.msra.mxu0 0.0
        %3533 = vmatprep.subr.mxu0 0.0
        %3534 = vmatpush1.msra.mxu0 0.0
        %3535 = vmatprep.subr.mxu0 0.0
        %3536 = vmatpush1.msra.mxu0 0.0
        %3537 = vmatprep.subr.mxu0 0.0
        %3538 = vmatpush1.msra.mxu0 0.0
        %3539 = vmatprep.subr.mxu0 0.0
        %3540 = vmatpush1.msra.mxu0 0.0
        %3541 = vmatprep.subr.mxu0 0.0
        %3542 = vmatpush1.msra.mxu0 0.0
        %3543 = vmatprep.subr.mxu0 0.0
        %3544 = vmatpush1.msra.mxu0 0.0
        %3545 = vmatprep.subr.mxu0 0.0
        %3546 = vmatpush1.msra.mxu0 0.0
        %3547 = vmatprep.subr.mxu0 0.0
        %3548 = vmatpush1.msra.mxu0 0.0
        %3549 = vmatprep.subr.mxu0 0.0
        %3550 = vmatpush1.msra.mxu0 0.0
        %3551 = vmatprep.subr.mxu0 0.0
        %3552 = vmatpush1.msra.mxu0 0.0
        %3553 = vmatprep.subr.mxu0 0.0
        %3554 = vmatpush1.msra.mxu0 0.0
        %3555 = vmatprep.subr.mxu0 0.0
        %3556 = vmatpush1.msra.mxu0 0.0
        %3557 = vmatprep.mubr.f32.mxu0 0.0
        %v3558 = vand.u32 %v3310, 4294901760
        %v3559 = vsub.f32 %v3310, %v3558
        %3560 = vmatmul.mubr.f32.gmra.mrb[0].mxu0 %v3559
        %v3561 = vpop.f32.mrb[0].mxu0
        %v3562 = vadd.f32 %v3480, %v3561
        %v3563 = vpop.f32.mrb[0].mxu0
        %3564 = vmatprep.mubr.f32.mxu0 0.0
        %v3565 = vand.u32 %v3313, 4294901760
        %v3566 = vsub.f32 %v3313, %v3565
        %3567 = vmatmul.mubr.f32.gmra.mrb[0].mxu0 %v3566
        %v3568 = vpop.f32.mrb[0].mxu0
        %v3569 = vadd.f32 %v3486, %v3568
        %v3570 = vpop.f32.mrb[0].mxu0
        %3571 = vdwg.mxu0
        %3572 = vmatprep.subr.mxu0 0.0
        %v3573 = vand.u32 %v276, 4294901760
        %3574 = vmatpush1.msra.mxu0 %v3573
        %3575 = vmatprep.subr.mxu0 0.0
        %v3576 = vand.u32 %v277, 4294901760
        %3577 = vmatpush1.msra.mxu0 %v3576
        %3578 = vmatprep.subr.mxu0 0.0
        %3579 = vmatpush1.msra.mxu0 0.0
        %3580 = vmatprep.subr.mxu0 0.0
        %3581 = vmatpush1.msra.mxu0 0.0
        %3582 = vmatprep.subr.mxu0 0.0
        %3583 = vmatpush1.msra.mxu0 0.0
        %3584 = vmatprep.subr.mxu0 0.0
        %3585 = vmatpush1.msra.mxu0 0.0
        %3586 = vmatprep.subr.mxu0 0.0
        %3587 = vmatpush1.msra.mxu0 0.0
        %3588 = vmatprep.subr.mxu0 0.0
        %3589 = vmatpush1.msra.mxu0 0.0
        %3590 = vmatprep.subr.mxu0 0.0
        %3591 = vmatpush1.msra.mxu0 0.0
        %3592 = vmatprep.subr.mxu0 0.0
        %3593 = vmatpush1.msra.mxu0 0.0
        %3594 = vmatprep.subr.mxu0 0.0
        %3595 = vmatpush1.msra.mxu0 0.0
        %3596 = vmatprep.subr.mxu0 0.0
        %3597 = vmatpush1.msra.mxu0 0.0
        %3598 = vmatprep.subr.mxu0 0.0
        %3599 = vmatpush1.msra.mxu0 0.0
        %3600 = vmatprep.subr.mxu0 0.0
        %3601 = vmatpush1.msra.mxu0 0.0
        %3602 = vmatprep.subr.mxu0 0.0
        %3603 = vmatpush1.msra.mxu0 0.0
        %3604 = vmatprep.subr.mxu0 0.0
        %3605 = vmatpush1.msra.mxu0 0.0
        %3606 = vmatprep.subr.mxu0 0.0
        %3607 = vmatpush1.msra.mxu0 0.0
        %3608 = vmatprep.subr.mxu0 0.0
        %3609 = vmatpush1.msra.mxu0 0.0
        %3610 = vmatprep.subr.mxu0 0.0
        %3611 = vmatpush1.msra.mxu0 0.0
        %3612 = vmatprep.subr.mxu0 0.0
        %3613 = vmatpush1.msra.mxu0 0.0
        %3614 = vmatprep.subr.mxu0 0.0
        %3615 = vmatpush1.msra.mxu0 0.0
        %3616 = vmatprep.subr.mxu0 0.0
        %3617 = vmatpush1.msra.mxu0 0.0
        %3618 = vmatprep.subr.mxu0 0.0
        %3619 = vmatpush1.msra.mxu0 0.0
        %3620 = vmatprep.subr.mxu0 0.0
        %3621 = vmatpush1.msra.mxu0 0.0
        %3622 = vmatprep.subr.mxu0 0.0
        %3623 = vmatpush1.msra.mxu0 0.0
        %3624 = vmatprep.subr.mxu0 0.0
        %3625 = vmatpush1.msra.mxu0 0.0
        %3626 = vmatprep.subr.mxu0 0.0
        %3627 = vmatpush1.msra.mxu0 0.0
        %3628 = vmatprep.subr.mxu0 0.0
        %3629 = vmatpush1.msra.mxu0 0.0
        %3630 = vmatprep.subr.mxu0 0.0
        %3631 = vmatpush1.msra.mxu0 0.0
        %3632 = vmatprep.subr.mxu0 0.0
        %3633 = vmatpush1.msra.mxu0 0.0
        %3634 = vmatprep.subr.mxu0 0.0
        %3635 = vmatpush1.msra.mxu0 0.0
        %3636 = vmatprep.subr.mxu0 0.0
        %3637 = vmatpush1.msra.mxu0 0.0
        %3638 = vmatprep.mubr.f32.mxu0 0.0
        %v3639 = vand.u32 %v3310, 4294901760
        %v3640 = vsub.f32 %v3310, %v3639
        %v3641 = vand.u32 %v3640, 4294901760
        %3642 = vmatmul.mubr.f32.gmra.mrb[0].mxu0 %v3641
        %v3643 = vpop.f32.mrb[0].mxu0
        %v3644 = vadd.f32 %v3562, %v3643
        %v3645 = vpop.f32.mrb[0].mxu0
        %3646 = vmatprep.mubr.f32.mxu0 0.0
        %v3647 = vand.u32 %v3313, 4294901760
        %v3648 = vsub.f32 %v3313, %v3647
        %v3649 = vand.u32 %v3648, 4294901760
        %3650 = vmatmul.mubr.f32.gmra.mrb[0].mxu0 %v3649
        %v3651 = vpop.f32.mrb[0].mxu0
        %v3652 = vadd.f32 %v3569, %v3651
        %v3653 = vpop.f32.mrb[0].mxu0
        %3654 = vdwg.mxu0
        %3655 = vmatprep.subr.mxu0 0.0
        %v3656 = vand.u32 %v276, 4294901760
        %v3657 = vsub.f32 %v276, %v3656
        %v3658 = vand.u32 %v3657, 4294901760
        %3659 = vmatpush1.msra.mxu0 %v3658
        %3660 = vmatprep.subr.mxu0 0.0
        %v3661 = vand.u32 %v277, 4294901760
        %v3662 = vsub.f32 %v277, %v3661
        %v3663 = vand.u32 %v3662, 4294901760
        %3664 = vmatpush1.msra.mxu0 %v3663
        %3665 = vmatprep.subr.mxu0 0.0
        %3666 = vmatpush1.msra.mxu0 0.0
        %3667 = vmatprep.subr.mxu0 0.0
        %3668 = vmatpush1.msra.mxu0 0.0
        %3669 = vmatprep.subr.mxu0 0.0
        %3670 = vmatpush1.msra.mxu0 0.0
        %3671 = vmatprep.subr.mxu0 0.0
        %3672 = vmatpush1.msra.mxu0 0.0
        %3673 = vmatprep.subr.mxu0 0.0
        %3674 = vmatpush1.msra.mxu0 0.0
        %3675 = vmatprep.subr.mxu0 0.0
        %3676 = vmatpush1.msra.mxu0 0.0
        %3677 = vmatprep.subr.mxu0 0.0
        %3678 = vmatpush1.msra.mxu0 0.0
        %3679 = vmatprep.subr.mxu0 0.0
        %3680 = vmatpush1.msra.mxu0 0.0
        %3681 = vmatprep.subr.mxu0 0.0
        %3682 = vmatpush1.msra.mxu0 0.0
        %3683 = vmatprep.subr.mxu0 0.0
        %3684 = vmatpush1.msra.mxu0 0.0
        %3685 = vmatprep.subr.mxu0 0.0
        %3686 = vmatpush1.msra.mxu0 0.0
        %3687 = vmatprep.subr.mxu0 0.0
        %3688 = vmatpush1.msra.mxu0 0.0
        %3689 = vmatprep.subr.mxu0 0.0
        %3690 = vmatpush1.msra.mxu0 0.0
        %3691 = vmatprep.subr.mxu0 0.0
        %3692 = vmatpush1.msra.mxu0 0.0
        %3693 = vmatprep.subr.mxu0 0.0
        %3694 = vmatpush1.msra.mxu0 0.0
        %3695 = vmatprep.subr.mxu0 0.0
        %3696 = vmatpush1.msra.mxu0 0.0
        %3697 = vmatprep.subr.mxu0 0.0
        %3698 = vmatpush1.msra.mxu0 0.0
        %3699 = vmatprep.subr.mxu0 0.0
        %3700 = vmatpush1.msra.mxu0 0.0
        %3701 = vmatprep.subr.mxu0 0.0
        %3702 = vmatpush1.msra.mxu0 0.0
        %3703 = vmatprep.subr.mxu0 0.0
        %3704 = vmatpush1.msra.mxu0 0.0
        %3705 = vmatprep.subr.mxu0 0.0
        %3706 = vmatpush1.msra.mxu0 0.0
        %3707 = vmatprep.subr.mxu0 0.0
        %3708 = vmatpush1.msra.mxu0 0.0
        %3709 = vmatprep.subr.mxu0 0.0
        %3710 = vmatpush1.msra.mxu0 0.0
        %3711 = vmatprep.subr.mxu0 0.0
        %3712 = vmatpush1.msra.mxu0 0.0
        %3713 = vmatprep.subr.mxu0 0.0
        %3714 = vmatpush1.msra.mxu0 0.0
        %3715 = vmatprep.subr.mxu0 0.0
        %3716 = vmatpush1.msra.mxu0 0.0
        %3717 = vmatprep.subr.mxu0 0.0
        %3718 = vmatpush1.msra.mxu0 0.0
        %3719 = vmatprep.subr.mxu0 0.0
        %3720 = vmatpush1.msra.mxu0 0.0
        %3721 = vmatprep.subr.mxu0 0.0
        %3722 = vmatpush1.msra.mxu0 0.0
        %3723 = vmatprep.subr.mxu0 0.0
        %3724 = vmatpush1.msra.mxu0 0.0
        %3725 = vmatprep.mubr.f32.mxu0 0.0
        %v3726 = vand.u32 %v3310, 4294901760
        %3727 = vmatmul.mubr.f32.gmra.mrb[0].mxu0 %v3726
        %v3728 = vpop.f32.mrb[0].mxu0
        %v3729 = vadd.f32 %v3644, %v3728
        %v3730 = vpop.f32.mrb[0].mxu0
        %3731 = vmatprep.mubr.f32.mxu0 0.0
        %v3732 = vand.u32 %v3313, 4294901760
        %3733 = vmatmul.mubr.f32.gmra.mrb[0].mxu0 %v3732
        %v3734 = vpop.f32.mrb[0].mxu0
        %v3735 = vadd.f32 %v3652, %v3734
        %v3736 = vpop.f32.mrb[0].mxu0
        %3737 = vdwg.mxu0
        %3738 = vmatprep.subr.mxu0 0.0
        %v3739 = vand.u32 %v276, 4294901760
        %3740 = vmatpush1.msra.mxu0 %v3739
        %3741 = vmatprep.subr.mxu0 0.0
        %v3742 = vand.u32 %v277, 4294901760
        %3743 = vmatpush1.msra.mxu0 %v3742
        %3744 = vmatprep.subr.mxu0 0.0
        %3745 = vmatpush1.msra.mxu0 0.0
        %3746 = vmatprep.subr.mxu0 0.0
        %3747 = vmatpush1.msra.mxu0 0.0
        %3748 = vmatprep.subr.mxu0 0.0
        %3749 = vmatpush1.msra.mxu0 0.0
        %3750 = vmatprep.subr.mxu0 0.0
        %3751 = vmatpush1.msra.mxu0 0.0
        %3752 = vmatprep.subr.mxu0 0.0
        %3753 = vmatpush1.msra.mxu0 0.0
        %3754 = vmatprep.subr.mxu0 0.0
        %3755 = vmatpush1.msra.mxu0 0.0
        %3756 = vmatprep.subr.mxu0 0.0
        %3757 = vmatpush1.msra.mxu0 0.0
        %3758 = vmatprep.subr.mxu0 0.0
        %3759 = vmatpush1.msra.mxu0 0.0
        %3760 = vmatprep.subr.mxu0 0.0
        %3761 = vmatpush1.msra.mxu0 0.0
        %3762 = vmatprep.subr.mxu0 0.0
        %3763 = vmatpush1.msra.mxu0 0.0
        %3764 = vmatprep.subr.mxu0 0.0
        %3765 = vmatpush1.msra.mxu0 0.0
        %3766 = vmatprep.subr.mxu0 0.0
        %3767 = vmatpush1.msra.mxu0 0.0
        %3768 = vmatprep.subr.mxu0 0.0
        %3769 = vmatpush1.msra.mxu0 0.0
        %3770 = vmatprep.subr.mxu0 0.0
        %3771 = vmatpush1.msra.mxu0 0.0
        %3772 = vmatprep.subr.mxu0 0.0
        %3773 = vmatpush1.msra.mxu0 0.0
        %3774 = vmatprep.subr.mxu0 0.0
        %3775 = vmatpush1.msra.mxu0 0.0
        %3776 = vmatprep.subr.mxu0 0.0
        %3777 = vmatpush1.msra.mxu0 0.0
        %3778 = vmatprep.subr.mxu0 0.0
        %3779 = vmatpush1.msra.mxu0 0.0
        %3780 = vmatprep.subr.mxu0 0.0
        %3781 = vmatpush1.msra.mxu0 0.0
        %3782 = vmatprep.subr.mxu0 0.0
        %3783 = vmatpush1.msra.mxu0 0.0
        %3784 = vmatprep.subr.mxu0 0.0
        %3785 = vmatpush1.msra.mxu0 0.0
        %3786 = vmatprep.subr.mxu0 0.0
        %3787 = vmatpush1.msra.mxu0 0.0
        %3788 = vmatprep.subr.mxu0 0.0
        %3789 = vmatpush1.msra.mxu0 0.0
        %3790 = vmatprep.subr.mxu0 0.0
        %3791 = vmatpush1.msra.mxu0 0.0
        %3792 = vmatprep.subr.mxu0 0.0
        %3793 = vmatpush1.msra.mxu0 0.0
        %3794 = vmatprep.subr.mxu0 0.0
        %3795 = vmatpush1.msra.mxu0 0.0
        %3796 = vmatprep.subr.mxu0 0.0
        %3797 = vmatpush1.msra.mxu0 0.0
        %3798 = vmatprep.subr.mxu0 0.0
        %3799 = vmatpush1.msra.mxu0 0.0
        %3800 = vmatprep.subr.mxu0 0.0
        %3801 = vmatpush1.msra.mxu0 0.0
        %3802 = vmatprep.subr.mxu0 0.0
        %3803 = vmatpush1.msra.mxu0 0.0
        %3804 = vmatprep.mubr.f32.mxu0 0.0
        %v3805 = vand.u32 %v3310, 4294901760
        %3806 = vmatmul.mubr.f32.gmra.mrb[0].mxu0 %v3805
        %v3807 = vpop.f32.mrb[0].mxu0
        %v3808 = vadd.f32 %v3729, %v3807
        %v3809 = vpop.f32.mrb[0].mxu0
        %3810 = vmatprep.mubr.f32.mxu0 0.0
        %v3811 = vand.u32 %v3313, 4294901760
        %3812 = vmatmul.mubr.f32.gmra.mrb[0].mxu0 %v3811
        %v3813 = vpop.f32.mrb[0].mxu0
        %v3814 = vadd.f32 %v3735, %v3813
        %v3815 = vpop.f32.mrb[0].mxu0
        %3816 = vdwg.mxu0
        %v3818 = vsel %vm278, %v2284, 0
        %v3821 = vsel %vm278, %v2290, 0
        %3823 = vmatprep.subr.mxu0 0.0
        %v3824 = vand.u32 %v276, 4294901760
        %3825 = vmatpush1.msra.mxu0 %v3824
        %3826 = vmatprep.subr.mxu0 0.0
        %v3827 = vand.u32 %v277, 4294901760
        %3828 = vmatpush1.msra.mxu0 %v3827
        %3829 = vmatprep.subr.mxu0 0.0
        %3830 = vmatpush1.msra.mxu0 0.0
        %3831 = vmatprep.subr.mxu0 0.0
        %3832 = vmatpush1.msra.mxu0 0.0
        %3833 = vmatprep.subr.mxu0 0.0
        %3834 = vmatpush1.msra.mxu0 0.0
        %3835 = vmatprep.subr.mxu0 0.0
        %3836 = vmatpush1.msra.mxu0 0.0
        %3837 = vmatprep.subr.mxu0 0.0
        %3838 = vmatpush1.msra.mxu0 0.0
        %3839 = vmatprep.subr.mxu0 0.0
        %3840 = vmatpush1.msra.mxu0 0.0
        %3841 = vmatprep.subr.mxu0 0.0
        %3842 = vmatpush1.msra.mxu0 0.0
        %3843 = vmatprep.subr.mxu0 0.0
        %3844 = vmatpush1.msra.mxu0 0.0
        %3845 = vmatprep.subr.mxu0 0.0
        %3846 = vmatpush1.msra.mxu0 0.0
        %3847 = vmatprep.subr.mxu0 0.0
        %3848 = vmatpush1.msra.mxu0 0.0
        %3849 = vmatprep.subr.mxu0 0.0
        %3850 = vmatpush1.msra.mxu0 0.0
        %3851 = vmatprep.subr.mxu0 0.0
        %3852 = vmatpush1.msra.mxu0 0.0
        %3853 = vmatprep.subr.mxu0 0.0
        %3854 = vmatpush1.msra.mxu0 0.0
        %3855 = vmatprep.subr.mxu0 0.0
        %3856 = vmatpush1.msra.mxu0 0.0
        %3857 = vmatprep.subr.mxu0 0.0
        %3858 = vmatpush1.msra.mxu0 0.0
        %3859 = vmatprep.subr.mxu0 0.0
        %3860 = vmatpush1.msra.mxu0 0.0
        %3861 = vmatprep.subr.mxu0 0.0
        %3862 = vmatpush1.msra.mxu0 0.0
        %3863 = vmatprep.subr.mxu0 0.0
        %3864 = vmatpush1.msra.mxu0 0.0
        %3865 = vmatprep.subr.mxu0 0.0
        %3866 = vmatpush1.msra.mxu0 0.0
        %3867 = vmatprep.subr.mxu0 0.0
        %3868 = vmatpush1.msra.mxu0 0.0
        %3869 = vmatprep.subr.mxu0 0.0
        %3870 = vmatpush1.msra.mxu0 0.0
        %3871 = vmatprep.subr.mxu0 0.0
        %3872 = vmatpush1.msra.mxu0 0.0
        %3873 = vmatprep.subr.mxu0 0.0
        %3874 = vmatpush1.msra.mxu0 0.0
        %3875 = vmatprep.subr.mxu0 0.0
        %3876 = vmatpush1.msra.mxu0 0.0
        %3877 = vmatprep.subr.mxu0 0.0
        %3878 = vmatpush1.msra.mxu0 0.0
        %3879 = vmatprep.subr.mxu0 0.0
        %3880 = vmatpush1.msra.mxu0 0.0
        %3881 = vmatprep.subr.mxu0 0.0
        %3882 = vmatpush1.msra.mxu0 0.0
        %3883 = vmatprep.subr.mxu0 0.0
        %3884 = vmatpush1.msra.mxu0 0.0
        %3885 = vmatprep.subr.mxu0 0.0
        %3886 = vmatpush1.msra.mxu0 0.0
        %3887 = vmatprep.subr.mxu0 0.0
        %3888 = vmatpush1.msra.mxu0 0.0
        %3889 = vmatprep.mubr.f32.mxu0 0.0
        %v3890 = vand.u32 %v3818, 4294901760
        %v3891 = vsub.f32 %v3818, %v3890
        %v3892 = vand.u32 %v3891, 4294901760
        %v3893 = vsub.f32 %v3891, %v3892
        %v3894 = vand.u32 %v3893, 4294901760
        %3895 = vmatmul.mubr.f32.gmra.mrb[0].mxu0 %v3894
        %v3896 = vpop.f32.mrb[0].mxu0
        %v3897 = vadd.f32 0.0, %v3896
        %v3898 = vpop.f32.mrb[0].mxu0
        %3899 = vmatprep.mubr.f32.mxu0 0.0
        %v3900 = vand.u32 %v3821, 4294901760
        %v3901 = vsub.f32 %v3821, %v3900
        %v3902 = vand.u32 %v3901, 4294901760
        %v3903 = vsub.f32 %v3901, %v3902
        %v3904 = vand.u32 %v3903, 4294901760
        %3905 = vmatmul.mubr.f32.gmra.mrb[0].mxu0 %v3904
        %v3906 = vpop.f32.mrb[0].mxu0
        %v3907 = vadd.f32 0.0, %v3906
        %v3908 = vpop.f32.mrb[0].mxu0
        %3909 = vdwg.mxu0
        %3910 = vmatprep.subr.mxu0 0.0
        %v3911 = vand.u32 %v276, 4294901760
        %v3912 = vsub.f32 %v276, %v3911
        %v3913 = vand.u32 %v3912, 4294901760
        %v3914 = vsub.f32 %v3912, %v3913
        %v3915 = vand.u32 %v3914, 4294901760
        %3916 = vmatpush1.msra.mxu0 %v3915
        %3917 = vmatprep.subr.mxu0 0.0
        %v3918 = vand.u32 %v277, 4294901760
        %v3919 = vsub.f32 %v277, %v3918
        %v3920 = vand.u32 %v3919, 4294901760
        %v3921 = vsub.f32 %v3919, %v3920
        %v3922 = vand.u32 %v3921, 4294901760
        %3923 = vmatpush1.msra.mxu0 %v3922
        %3924 = vmatprep.subr.mxu0 0.0
        %3925 = vmatpush1.msra.mxu0 0.0
        %3926 = vmatprep.subr.mxu0 0.0
        %3927 = vmatpush1.msra.mxu0 0.0
        %3928 = vmatprep.subr.mxu0 0.0
        %3929 = vmatpush1.msra.mxu0 0.0
        %3930 = vmatprep.subr.mxu0 0.0
        %3931 = vmatpush1.msra.mxu0 0.0
        %3932 = vmatprep.subr.mxu0 0.0
        %3933 = vmatpush1.msra.mxu0 0.0
        %3934 = vmatprep.subr.mxu0 0.0
        %3935 = vmatpush1.msra.mxu0 0.0
        %3936 = vmatprep.subr.mxu0 0.0
        %3937 = vmatpush1.msra.mxu0 0.0
        %3938 = vmatprep.subr.mxu0 0.0
        %3939 = vmatpush1.msra.mxu0 0.0
        %3940 = vmatprep.subr.mxu0 0.0
        %3941 = vmatpush1.msra.mxu0 0.0
        %3942 = vmatprep.subr.mxu0 0.0
        %3943 = vmatpush1.msra.mxu0 0.0
        %3944 = vmatprep.subr.mxu0 0.0
        %3945 = vmatpush1.msra.mxu0 0.0
        %3946 = vmatprep.subr.mxu0 0.0
        %3947 = vmatpush1.msra.mxu0 0.0
        %3948 = vmatprep.subr.mxu0 0.0
        %3949 = vmatpush1.msra.mxu0 0.0
        %3950 = vmatprep.subr.mxu0 0.0
        %3951 = vmatpush1.msra.mxu0 0.0
        %3952 = vmatprep.subr.mxu0 0.0
        %3953 = vmatpush1.msra.mxu0 0.0
        %3954 = vmatprep.subr.mxu0 0.0
        %3955 = vmatpush1.msra.mxu0 0.0
        %3956 = vmatprep.subr.mxu0 0.0
        %3957 = vmatpush1.msra.mxu0 0.0
        %3958 = vmatprep.subr.mxu0 0.0
        %3959 = vmatpush1.msra.mxu0 0.0
        %3960 = vmatprep.subr.mxu0 0.0
        %3961 = vmatpush1.msra.mxu0 0.0
        %3962 = vmatprep.subr.mxu0 0.0
        %3963 = vmatpush1.msra.mxu0 0.0
        %3964 = vmatprep.subr.mxu0 0.0
        %3965 = vmatpush1.msra.mxu0 0.0
        %3966 = vmatprep.subr.mxu0 0.0
        %3967 = vmatpush1.msra.mxu0 0.0
        %3968 = vmatprep.subr.mxu0 0.0
        %3969 = vmatpush1.msra.mxu0 0.0
        %3970 = vmatprep.subr.mxu0 0.0
        %3971 = vmatpush1.msra.mxu0 0.0
        %3972 = vmatprep.subr.mxu0 0.0
        %3973 = vmatpush1.msra.mxu0 0.0
        %3974 = vmatprep.subr.mxu0 0.0
        %3975 = vmatpush1.msra.mxu0 0.0
        %3976 = vmatprep.subr.mxu0 0.0
        %3977 = vmatpush1.msra.mxu0 0.0
        %3978 = vmatprep.subr.mxu0 0.0
        %3979 = vmatpush1.msra.mxu0 0.0
        %3980 = vmatprep.subr.mxu0 0.0
        %3981 = vmatpush1.msra.mxu0 0.0
        %3982 = vmatprep.subr.mxu0 0.0
        %3983 = vmatpush1.msra.mxu0 0.0
        %3984 = vmatprep.mubr.f32.mxu0 0.0
        %v3985 = vand.u32 %v3818, 4294901760
        %3986 = vmatmul.mubr.f32.gmra.mrb[0].mxu0 %v3985
        %v3987 = vpop.f32.mrb[0].mxu0
        %v3988 = vadd.f32 %v3897, %v3987
        %v3989 = vpop.f32.mrb[0].mxu0
        %3990 = vmatprep.mubr.f32.mxu0 0.0
        %v3991 = vand.u32 %v3821, 4294901760
        %3992 = vmatmul.mubr.f32.gmra.mrb[0].mxu0 %v3991
        %v3993 = vpop.f32.mrb[0].mxu0
        %v3994 = vadd.f32 %v3907, %v3993
        %v3995 = vpop.f32.mrb[0].mxu0
        %3996 = vdwg.mxu0
        %3997 = vmatprep.subr.mxu0 0.0
        %v3998 = vand.u32 %v276, 4294901760
        %v3999 = vsub.f32 %v276, %v3998
        %4000 = vmatpush1.msra.mxu0 %v3999
        %4001 = vmatprep.subr.mxu0 0.0
        %v4002 = vand.u32 %v277, 4294901760
        %v4003 = vsub.f32 %v277, %v4002
        %4004 = vmatpush1.msra.mxu0 %v4003
        %4005 = vmatprep.subr.mxu0 0.0
        %4006 = vmatpush1.msra.mxu0 0.0
        %4007 = vmatprep.subr.mxu0 0.0
        %4008 = vmatpush1.msra.mxu0 0.0
        %4009 = vmatprep.subr.mxu0 0.0
        %4010 = vmatpush1.msra.mxu0 0.0
        %4011 = vmatprep.subr.mxu0 0.0
        %4012 = vmatpush1.msra.mxu0 0.0
        %4013 = vmatprep.subr.mxu0 0.0
        %4014 = vmatpush1.msra.mxu0 0.0
        %4015 = vmatprep.subr.mxu0 0.0
        %4016 = vmatpush1.msra.mxu0 0.0
        %4017 = vmatprep.subr.mxu0 0.0
        %4018 = vmatpush1.msra.mxu0 0.0
        %4019 = vmatprep.subr.mxu0 0.0
        %4020 = vmatpush1.msra.mxu0 0.0
        %4021 = vmatprep.subr.mxu0 0.0
        %4022 = vmatpush1.msra.mxu0 0.0
        %4023 = vmatprep.subr.mxu0 0.0
        %4024 = vmatpush1.msra.mxu0 0.0
        %4025 = vmatprep.subr.mxu0 0.0
        %4026 = vmatpush1.msra.mxu0 0.0
        %4027 = vmatprep.subr.mxu0 0.0
        %4028 = vmatpush1.msra.mxu0 0.0
        %4029 = vmatprep.subr.mxu0 0.0
        %4030 = vmatpush1.msra.mxu0 0.0
        %4031 = vmatprep.subr.mxu0 0.0
        %4032 = vmatpush1.msra.mxu0 0.0
        %4033 = vmatprep.subr.mxu0 0.0
        %4034 = vmatpush1.msra.mxu0 0.0
        %4035 = vmatprep.subr.mxu0 0.0
        %4036 = vmatpush1.msra.mxu0 0.0
        %4037 = vmatprep.subr.mxu0 0.0
        %4038 = vmatpush1.msra.mxu0 0.0
        %4039 = vmatprep.subr.mxu0 0.0
        %4040 = vmatpush1.msra.mxu0 0.0
        %4041 = vmatprep.subr.mxu0 0.0
        %4042 = vmatpush1.msra.mxu0 0.0
        %4043 = vmatprep.subr.mxu0 0.0
        %4044 = vmatpush1.msra.mxu0 0.0
        %4045 = vmatprep.subr.mxu0 0.0
        %4046 = vmatpush1.msra.mxu0 0.0
        %4047 = vmatprep.subr.mxu0 0.0
        %4048 = vmatpush1.msra.mxu0 0.0
        %4049 = vmatprep.subr.mxu0 0.0
        %4050 = vmatpush1.msra.mxu0 0.0
        %4051 = vmatprep.subr.mxu0 0.0
        %4052 = vmatpush1.msra.mxu0 0.0
        %4053 = vmatprep.subr.mxu0 0.0
        %4054 = vmatpush1.msra.mxu0 0.0
        %4055 = vmatprep.subr.mxu0 0.0
        %4056 = vmatpush1.msra.mxu0 0.0
        %4057 = vmatprep.subr.mxu0 0.0
        %4058 = vmatpush1.msra.mxu0 0.0
        %4059 = vmatprep.subr.mxu0 0.0
        %4060 = vmatpush1.msra.mxu0 0.0
        %4061 = vmatprep.subr.mxu0 0.0
        %4062 = vmatpush1.msra.mxu0 0.0
        %4063 = vmatprep.subr.mxu0 0.0
        %4064 = vmatpush1.msra.mxu0 0.0
        %4065 = vmatprep.mubr.f32.mxu0 0.0
        %v4066 = vand.u32 %v3818, 4294901760
        %v4067 = vsub.f32 %v3818, %v4066
        %4068 = vmatmul.mubr.f32.gmra.mrb[0].mxu0 %v4067
        %v4069 = vpop.f32.mrb[0].mxu0
        %v4070 = vadd.f32 %v3988, %v4069
        %v4071 = vpop.f32.mrb[0].mxu0
        %4072 = vmatprep.mubr.f32.mxu0 0.0
        %v4073 = vand.u32 %v3821, 4294901760
        %v4074 = vsub.f32 %v3821, %v4073
        %4075 = vmatmul.mubr.f32.gmra.mrb[0].mxu0 %v4074
        %v4076 = vpop.f32.mrb[0].mxu0
        %v4077 = vadd.f32 %v3994, %v4076
        %v4078 = vpop.f32.mrb[0].mxu0
        %4079 = vdwg.mxu0
        %4080 = vmatprep.subr.mxu0 0.0
        %v4081 = vand.u32 %v276, 4294901760
        %4082 = vmatpush1.msra.mxu0 %v4081
        %4083 = vmatprep.subr.mxu0 0.0
        %v4084 = vand.u32 %v277, 4294901760
        %4085 = vmatpush1.msra.mxu0 %v4084
        %4086 = vmatprep.subr.mxu0 0.0
        %4087 = vmatpush1.msra.mxu0 0.0
        %4088 = vmatprep.subr.mxu0 0.0
        %4089 = vmatpush1.msra.mxu0 0.0
        %4090 = vmatprep.subr.mxu0 0.0
        %4091 = vmatpush1.msra.mxu0 0.0
        %4092 = vmatprep.subr.mxu0 0.0
        %4093 = vmatpush1.msra.mxu0 0.0
        %4094 = vmatprep.subr.mxu0 0.0
        %4095 = vmatpush1.msra.mxu0 0.0
        %4096 = vmatprep.subr.mxu0 0.0
        %4097 = vmatpush1.msra.mxu0 0.0
        %4098 = vmatprep.subr.mxu0 0.0
        %4099 = vmatpush1.msra.mxu0 0.0
        %4100 = vmatprep.subr.mxu0 0.0
        %4101 = vmatpush1.msra.mxu0 0.0
        %4102 = vmatprep.subr.mxu0 0.0
        %4103 = vmatpush1.msra.mxu0 0.0
        %4104 = vmatprep.subr.mxu0 0.0
        %4105 = vmatpush1.msra.mxu0 0.0
        %4106 = vmatprep.subr.mxu0 0.0
        %4107 = vmatpush1.msra.mxu0 0.0
        %4108 = vmatprep.subr.mxu0 0.0
        %4109 = vmatpush1.msra.mxu0 0.0
        %4110 = vmatprep.subr.mxu0 0.0
        %4111 = vmatpush1.msra.mxu0 0.0
        %4112 = vmatprep.subr.mxu0 0.0
        %4113 = vmatpush1.msra.mxu0 0.0
        %4114 = vmatprep.subr.mxu0 0.0
        %4115 = vmatpush1.msra.mxu0 0.0
        %4116 = vmatprep.subr.mxu0 0.0
        %4117 = vmatpush1.msra.mxu0 0.0
        %4118 = vmatprep.subr.mxu0 0.0
        %4119 = vmatpush1.msra.mxu0 0.0
        %4120 = vmatprep.subr.mxu0 0.0
        %4121 = vmatpush1.msra.mxu0 0.0
        %4122 = vmatprep.subr.mxu0 0.0
        %4123 = vmatpush1.msra.mxu0 0.0
        %4124 = vmatprep.subr.mxu0 0.0
        %4125 = vmatpush1.msra.mxu0 0.0
        %4126 = vmatprep.subr.mxu0 0.0
        %4127 = vmatpush1.msra.mxu0 0.0
        %4128 = vmatprep.subr.mxu0 0.0
        %4129 = vmatpush1.msra.mxu0 0.0
        %4130 = vmatprep.subr.mxu0 0.0
        %4131 = vmatpush1.msra.mxu0 0.0
        %4132 = vmatprep.subr.mxu0 0.0
        %4133 = vmatpush1.msra.mxu0 0.0
        %4134 = vmatprep.subr.mxu0 0.0
        %4135 = vmatpush1.msra.mxu0 0.0
        %4136 = vmatprep.subr.mxu0 0.0
        %4137 = vmatpush1.msra.mxu0 0.0
        %4138 = vmatprep.subr.mxu0 0.0
        %4139 = vmatpush1.msra.mxu0 0.0
        %4140 = vmatprep.subr.mxu0 0.0
        %4141 = vmatpush1.msra.mxu0 0.0
        %4142 = vmatprep.subr.mxu0 0.0
        %4143 = vmatpush1.msra.mxu0 0.0
        %4144 = vmatprep.subr.mxu0 0.0
        %4145 = vmatpush1.msra.mxu0 0.0
        %4146 = vmatprep.mubr.f32.mxu0 0.0
        %v4147 = vand.u32 %v3818, 4294901760
        %v4148 = vsub.f32 %v3818, %v4147
        %v4149 = vand.u32 %v4148, 4294901760
        %4150 = vmatmul.mubr.f32.gmra.mrb[0].mxu0 %v4149
        %v4151 = vpop.f32.mrb[0].mxu0
        %v4152 = vadd.f32 %v4070, %v4151
        %v4153 = vpop.f32.mrb[0].mxu0
        %4154 = vmatprep.mubr.f32.mxu0 0.0
        %v4155 = vand.u32 %v3821, 4294901760
        %v4156 = vsub.f32 %v3821, %v4155
        %v4157 = vand.u32 %v4156, 4294901760
        %4158 = vmatmul.mubr.f32.gmra.mrb[0].mxu0 %v4157
        %v4159 = vpop.f32.mrb[0].mxu0
        %v4160 = vadd.f32 %v4077, %v4159
        %v4161 = vpop.f32.mrb[0].mxu0
        %4162 = vdwg.mxu0
        %4163 = vmatprep.subr.mxu0 0.0
        %v4164 = vand.u32 %v276, 4294901760
        %v4165 = vsub.f32 %v276, %v4164
        %v4166 = vand.u32 %v4165, 4294901760
        %4167 = vmatpush1.msra.mxu0 %v4166
        %4168 = vmatprep.subr.mxu0 0.0
        %v4169 = vand.u32 %v277, 4294901760
        %v4170 = vsub.f32 %v277, %v4169
        %v4171 = vand.u32 %v4170, 4294901760
        %4172 = vmatpush1.msra.mxu0 %v4171
        %4173 = vmatprep.subr.mxu0 0.0
        %4174 = vmatpush1.msra.mxu0 0.0
        %4175 = vmatprep.subr.mxu0 0.0
        %4176 = vmatpush1.msra.mxu0 0.0
        %4177 = vmatprep.subr.mxu0 0.0
        %4178 = vmatpush1.msra.mxu0 0.0
        %4179 = vmatprep.subr.mxu0 0.0
        %4180 = vmatpush1.msra.mxu0 0.0
        %4181 = vmatprep.subr.mxu0 0.0
        %4182 = vmatpush1.msra.mxu0 0.0
        %4183 = vmatprep.subr.mxu0 0.0
        %4184 = vmatpush1.msra.mxu0 0.0
        %4185 = vmatprep.subr.mxu0 0.0
        %4186 = vmatpush1.msra.mxu0 0.0
        %4187 = vmatprep.subr.mxu0 0.0
        %4188 = vmatpush1.msra.mxu0 0.0
        %4189 = vmatprep.subr.mxu0 0.0
        %4190 = vmatpush1.msra.mxu0 0.0
        %4191 = vmatprep.subr.mxu0 0.0
        %4192 = vmatpush1.msra.mxu0 0.0
        %4193 = vmatprep.subr.mxu0 0.0
        %4194 = vmatpush1.msra.mxu0 0.0
        %4195 = vmatprep.subr.mxu0 0.0
        %4196 = vmatpush1.msra.mxu0 0.0
        %4197 = vmatprep.subr.mxu0 0.0
        %4198 = vmatpush1.msra.mxu0 0.0
        %4199 = vmatprep.subr.mxu0 0.0
        %4200 = vmatpush1.msra.mxu0 0.0
        %4201 = vmatprep.subr.mxu0 0.0
        %4202 = vmatpush1.msra.mxu0 0.0
        %4203 = vmatprep.subr.mxu0 0.0
        %4204 = vmatpush1.msra.mxu0 0.0
        %4205 = vmatprep.subr.mxu0 0.0
        %4206 = vmatpush1.msra.mxu0 0.0
        %4207 = vmatprep.subr.mxu0 0.0
        %4208 = vmatpush1.msra.mxu0 0.0
        %4209 = vmatprep.subr.mxu0 0.0
        %4210 = vmatpush1.msra.mxu0 0.0
        %4211 = vmatprep.subr.mxu0 0.0
        %4212 = vmatpush1.msra.mxu0 0.0
        %4213 = vmatprep.subr.mxu0 0.0
        %4214 = vmatpush1.msra.mxu0 0.0
        %4215 = vmatprep.subr.mxu0 0.0
        %4216 = vmatpush1.msra.mxu0 0.0
        %4217 = vmatprep.subr.mxu0 0.0
        %4218 = vmatpush1.msra.mxu0 0.0
        %4219 = vmatprep.subr.mxu0 0.0
        %4220 = vmatpush1.msra.mxu0 0.0
        %4221 = vmatprep.subr.mxu0 0.0
        %4222 = vmatpush1.msra.mxu0 0.0
        %4223 = vmatprep.subr.mxu0 0.0
        %4224 = vmatpush1.msra.mxu0 0.0
        %4225 = vmatprep.subr.mxu0 0.0
        %4226 = vmatpush1.msra.mxu0 0.0
        %4227 = vmatprep.subr.mxu0 0.0
        %4228 = vmatpush1.msra.mxu0 0.0
        %4229 = vmatprep.subr.mxu0 0.0
        %4230 = vmatpush1.msra.mxu0 0.0
        %4231 = vmatprep.subr.mxu0 0.0
        %4232 = vmatpush1.msra.mxu0 0.0
        %4233 = vmatprep.mubr.f32.mxu0 0.0
        %v4234 = vand.u32 %v3818, 4294901760
        %4235 = vmatmul.mubr.f32.gmra.mrb[0].mxu0 %v4234
        %v4236 = vpop.f32.mrb[0].mxu0
        %v4237 = vadd.f32 %v4152, %v4236
        %v4238 = vpop.f32.mrb[0].mxu0
        %4239 = vmatprep.mubr.f32.mxu0 0.0
        %v4240 = vand.u32 %v3821, 4294901760
        %4241 = vmatmul.mubr.f32.gmra.mrb[0].mxu0 %v4240
        %v4242 = vpop.f32.mrb[0].mxu0
        %v4243 = vadd.f32 %v4160, %v4242
        %v4244 = vpop.f32.mrb[0].mxu0
        %4245 = vdwg.mxu0
        %4246 = vmatprep.subr.mxu0 0.0
        %v4247 = vand.u32 %v276, 4294901760
        %4248 = vmatpush1.msra.mxu0 %v4247
        %4249 = vmatprep.subr.mxu0 0.0
        %v4250 = vand.u32 %v277, 4294901760
        %4251 = vmatpush1.msra.mxu0 %v4250
        %4252 = vmatprep.subr.mxu0 0.0
        %4253 = vmatpush1.msra.mxu0 0.0
        %4254 = vmatprep.subr.mxu0 0.0
        %4255 = vmatpush1.msra.mxu0 0.0
        %4256 = vmatprep.subr.mxu0 0.0
        %4257 = vmatpush1.msra.mxu0 0.0
        %4258 = vmatprep.subr.mxu0 0.0
        %4259 = vmatpush1.msra.mxu0 0.0
        %4260 = vmatprep.subr.mxu0 0.0
        %4261 = vmatpush1.msra.mxu0 0.0
        %4262 = vmatprep.subr.mxu0 0.0
        %4263 = vmatpush1.msra.mxu0 0.0
        %4264 = vmatprep.subr.mxu0 0.0
        %4265 = vmatpush1.msra.mxu0 0.0
        %4266 = vmatprep.subr.mxu0 0.0
        %4267 = vmatpush1.msra.mxu0 0.0
        %4268 = vmatprep.subr.mxu0 0.0
        %4269 = vmatpush1.msra.mxu0 0.0
        %4270 = vmatprep.subr.mxu0 0.0
        %4271 = vmatpush1.msra.mxu0 0.0
        %4272 = vmatprep.subr.mxu0 0.0
        %4273 = vmatpush1.msra.mxu0 0.0
        %4274 = vmatprep.subr.mxu0 0.0
        %4275 = vmatpush1.msra.mxu0 0.0
        %4276 = vmatprep.subr.mxu0 0.0
        %4277 = vmatpush1.msra.mxu0 0.0
        %4278 = vmatprep.subr.mxu0 0.0
        %4279 = vmatpush1.msra.mxu0 0.0
        %4280 = vmatprep.subr.mxu0 0.0
        %4281 = vmatpush1.msra.mxu0 0.0
        %4282 = vmatprep.subr.mxu0 0.0
        %4283 = vmatpush1.msra.mxu0 0.0
        %4284 = vmatprep.subr.mxu0 0.0
        %4285 = vmatpush1.msra.mxu0 0.0
        %4286 = vmatprep.subr.mxu0 0.0
        %4287 = vmatpush1.msra.mxu0 0.0
        %4288 = vmatprep.subr.mxu0 0.0
        %4289 = vmatpush1.msra.mxu0 0.0
        %4290 = vmatprep.subr.mxu0 0.0
        %4291 = vmatpush1.msra.mxu0 0.0
        %4292 = vmatprep.subr.mxu0 0.0
        %4293 = vmatpush1.msra.mxu0 0.0
        %4294 = vmatprep.subr.mxu0 0.0
        %4295 = vmatpush1.msra.mxu0 0.0
        %4296 = vmatprep.subr.mxu0 0.0
        %4297 = vmatpush1.msra.mxu0 0.0
        %4298 = vmatprep.subr.mxu0 0.0
        %4299 = vmatpush1.msra.mxu0 0.0
        %4300 = vmatprep.subr.mxu0 0.0
        %4301 = vmatpush1.msra.mxu0 0.0
        %4302 = vmatprep.subr.mxu0 0.0
        %4303 = vmatpush1.msra.mxu0 0.0
        %4304 = vmatprep.subr.mxu0 0.0
        %4305 = vmatpush1.msra.mxu0 0.0
        %4306 = vmatprep.subr.mxu0 0.0
        %4307 = vmatpush1.msra.mxu0 0.0
        %4308 = vmatprep.subr.mxu0 0.0
        %4309 = vmatpush1.msra.mxu0 0.0
        %4310 = vmatprep.subr.mxu0 0.0
        %4311 = vmatpush1.msra.mxu0 0.0
        %4312 = vmatprep.mubr.f32.mxu0 0.0
        %v4313 = vand.u32 %v3818, 4294901760
        %4314 = vmatmul.mubr.f32.gmra.mrb[0].mxu0 %v4313
        %v4315 = vpop.f32.mrb[0].mxu0
        %v4316 = vadd.f32 %v4237, %v4315
        %v4317 = vpop.f32.mrb[0].mxu0
        %4318 = vmatprep.mubr.f32.mxu0 0.0
        %v4319 = vand.u32 %v3821, 4294901760
        %4320 = vmatmul.mubr.f32.gmra.mrb[0].mxu0 %v4319
        %v4321 = vpop.f32.mrb[0].mxu0
        %v4322 = vadd.f32 %v4243, %v4321
        %v4323 = vpop.f32.mrb[0].mxu0
        %4324 = vdwg.mxu0
        %4325 = vst.msk [vmem:[%s265] sm:$0xff] %vm278, %v2792
        %4326 = vst.msk [vmem:[%s265 + $0x8] sm:$0xff] %vm278, %v2798
        %4327 = vst.msk [vmem:[%s265 + $0x10] sm:$0xff] %vm278, %v3300
        %4328 = vst.msk [vmem:[%s265 + $0x18] sm:$0xff] %vm278, %v3306
        %4329 = vst.msk [vmem:[%s265 + $0x20] sm:$0xff] %vm278, %v3808
        %4330 = vst.msk [vmem:[%s265 + $0x28] sm:$0xff] %vm278, %v3814
        %4331 = vst.msk [vmem:[%s265 + $0x30] sm:$0xff] %vm278, %v4316
        %4332 = vst.msk [vmem:[%s265 + $0x38] sm:$0xff] %vm278, %v4322
        %s4333 = sand.u32 %s109, 1
        %s4334 = scalar_lea.sflag [#allocation4], %s4333
        %s4335 = sand.u32 %s109, 1
        %s4336 = smul.addr %s4335, 64
        %s4337 = scalar_lea.vmem [#allocation8], %s4336
        // Predicated region
        $region45: #{tpu_custom_call.1} parent=31 // pred_check
          %p4338 = pneg %p119
        $region46: #{tpu_custom_call.1} parent=31 // pred_check_branch
          %4340 = sbr.rel (%p4338) target = $region48
        $region47: #{tpu_custom_call.1} parent=31 // pred_region
          %s4342 = ssub.s32 1024, 1024
          %4343 = vsyncadd %s4334, %s4342
          %s4344 = smul.addr %s23, 8
          %s4345 = smul.addr %s4344, 128
          %s4346 = scalar_lea.hbm %s3, %s4345
          %s4347 = sshll.u32 %s4337, 4
          %s4348 = int_to_ptr.vmem [resolvable:$true] %s4347
          %4353 = dma.vmem_to_hbm [thread:$0]  %s4348, 1024, %s4346, %s4334, 128, 128, 8
        $region48: #{tpu_custom_call.1} parent=31 // pred_fallthru
          _
      $region32: #{tpu_custom_call.1} parent=5 // pred_fallthru
        _
      %p4354 = scmp.le.s32.totalorder 2, %s18
      // Predicated region
      $region49: #{tpu_custom_call.1} parent=5 // pred_check
        %p4355 = pneg %p4354
      $region50: #{tpu_custom_call.1} parent=5 // pred_check_branch
        %4357 = sbr.rel (%p4355) target = $region52
      $region51: #{tpu_custom_call.1} parent=5 // pred_region
        %s4358 = ssub.s32 %s18, 2
        // Predicated region
        $region53: #{tpu_custom_call.1} parent=51 // pred_check
          %p4359 = pneg %p125
        $region54: #{tpu_custom_call.1} parent=51 // pred_check_branch
          %4361 = sbr.rel (%p4359) target = $region56
        $region55: #{tpu_custom_call.1} parent=51 // pred_region
          %s4362 = sand.u32 %s110, 1
          %s4363 = scalar_lea.sflag [#allocation4], %s4362
          %s4364 = sand.u32 %s110, 1
          %s4365 = smul.addr %s4364, 64
          %s4366 = scalar_lea.vmem [#allocation8], %s4365
          %4367 = dma.done %s4363, 1024
        $region56: #{tpu_custom_call.1} parent=51 // pred_fallthru
          _
      $region52: #{tpu_custom_call.1} parent=5 // pred_fallthru
        _
    $region6: #{tpu_custom_call.1} parent=1 // loop_footer
      %s22 = sadd.s32 1, %s18
    $region7: #{tpu_custom_call.1} parent=1 // loop_footer_branch
      %17 = sbr.rel target = $region3
    $region8: #{tpu_custom_call.1} parent=1 // loop_exit
      _
    %4368 = vsyncpa [#allocation3], 1
    %s4369 = scalar_lea.sflag [#allocation3], 1
    %4370 = vsyncpa %s4369, 1
    %4371 = vsyncpa [#allocation6], 1
    %s4372 = scalar_lea.sflag [#allocation6], 1
    %4373 = vsyncpa %s4372, 1
    %4374 = vsyncpa [#allocation4], 1
    %s4375 = scalar_lea.sflag [#allocation4], 1
    %4376 = vsyncpa %s4375, 1

</llo_original>
